<compile_context>
chip_gen: v7x
topology: tpu7x:2x2x1
jax: 0.10.0
libtpu: 0.0.40
codegen_flags: <defaults>
</compile_context>

<pallas_src>
import functools

import jax
import jax.numpy as jnp
from jax.experimental import pallas as pl
from jax.experimental.pallas import tpu as pltpu


def _round_up(x, m):
    return (x + m - 1) // m * m


def _pick_tile(m, target=512):
    """Largest row tile <= target that divides m (falls back to the full extent)."""
    for d in (target, 256, 128, 64, 32, 16, 8):
        if d <= m and m % d == 0:
            return d
    return m


# ----------------------------------------------------------------------------
# Kernel 1: conv1 (1x1 + BN + ReLU) fused with all 4 sub-pixel phases of
#           ConvTranspose2d(3, stride=2, padding=1, output_padding=1) + BN + ReLU.
# Grid: (N,) -- one batch element per step; h never leaves VMEM.
# ----------------------------------------------------------------------------
def _conv_deconv_kernel(x_ref, w1_ref, b1_ref, wd0_ref, wd1_ref, wd2_ref,
                        wd3_ref, b2_ref, up_ref, sum_ref, *, H, W, C):
    HW = H * W

    # --- conv1: 1x1 conv + folded BN + ReLU (one MXU matmul) ------------------
    h = jnp.dot(x_ref[0], w1_ref[...], preferred_element_type=jnp.float32)
    h = jnp.maximum(h + b1_ref[...], 0.0)                        # (HW, C) f32

    # --- shifted copies of h (flat row = r*W + c), zero at spatial boundary ---
    zero1 = jnp.zeros((1, C), jnp.float32)
    zeroW = jnp.zeros((W, C), jnp.float32)
    col = jax.lax.broadcasted_iota(jnp.int32, (HW, 1), 0) % W
    not_last_col = col != (W - 1)

    h_r = jnp.concatenate([h[1:, :], zero1], axis=0)             # h[r, c+1] (wraps)
    h_r = jnp.where(not_last_col, h_r, 0.0)                      # kill the wrap
    h_d = jnp.concatenate([h[W:, :], zeroW], axis=0)             # h[r+1, c]
    h_dr = jnp.concatenate([h_d[1:, :], zero1], axis=0)          # h[r+1, c+1]
    h_dr = jnp.where(not_last_col, h_dr, 0.0)

    hb, hrb, hdb, hdrb = (a.astype(jnp.bfloat16) for a in (h, h_r, h_d, h_dr))

    # --- deconv taps: 4 bf16 MXU matmuls covering all 9 kernel taps -----------
    d0 = jnp.dot(hb, wd0_ref[...], preferred_element_type=jnp.float32)    # (HW, 4C)
    d1 = jnp.dot(hrb, wd1_ref[...], preferred_element_type=jnp.float32)   # (HW, 2C)
    d2 = jnp.dot(hdb, wd2_ref[...], preferred_element_type=jnp.float32)   # (HW, 2C)
    d3 = jnp.dot(hdrb, wd3_ref[...], preferred_element_type=jnp.float32)  # (HW, C)

    b2 = b2_ref[...]
    # out[2r+dy, 2c+dx] phase equations (ConvTranspose2d(3, s=2, p=1, op=1)):
    p00 = jnp.maximum(d0[:, 0 * C:1 * C] + b2, 0.0)
    p01 = jnp.maximum(d0[:, 1 * C:2 * C] + d1[:, 0:C] + b2, 0.0)
    p10 = jnp.maximum(d0[:, 2 * C:3 * C] + d2[:, 0:C] + b2, 0.0)
    p11 = jnp.maximum(d0[:, 3 * C:4 * C] + d1[:, C:2 * C] + d2[:, C:2 * C] + d3 + b2,
                      0.0)

    up_ref[0, 0, 0] = p00.astype(up_ref.dtype)
    up_ref[0, 0, 1] = p01.astype(up_ref.dtype)
    up_ref[0, 1, 0] = p10.astype(up_ref.dtype)
    up_ref[0, 1, 1] = p11.astype(up_ref.dtype)
    # per-batch spatial sum for the global-att adaptive-avg-pool (saves an extra
    # HBM read pass over xup later).
    sum_ref[0] = jnp.sum(p00 + p01 + p10 + p11, axis=0, keepdims=True)


def conv1_deconv(x_flat, w1, b1, wd0, wd1, wd2, wd3, b2, *, H, W):
    N, HW, CinP = x_flat.shape
    Cp = w1.shape[1]
    kernel = functools.partial(_conv_deconv_kernel, H=H, W=W, C=Cp)
    out_shape = (jax.ShapeDtypeStruct((N, 2, 2, HW, Cp), jnp.bfloat16),
                 jax.ShapeDtypeStruct((N, 1, Cp), jnp.float32))
    return pl.pallas_call(
        kernel,
        out_shape=out_shape,
        grid=(N,),
        in_specs=[
            pl.BlockSpec((1, HW, CinP), lambda n: (n, 0, 0)),
            pl.BlockSpec((CinP, Cp), lambda n: (0, 0)),
            pl.BlockSpec((1, Cp), lambda n: (0, 0)),
            pl.BlockSpec((Cp, 4 * Cp), lambda n: (0, 0)),
            pl.BlockSpec((Cp, 2 * Cp), lambda n: (0, 0)),
            pl.BlockSpec((Cp, 2 * Cp), lambda n: (0, 0)),
            pl.BlockSpec((Cp, Cp), lambda n: (0, 0)),
            pl.BlockSpec((1, Cp), lambda n: (0, 0)),
        ],
        out_specs=(
            pl.BlockSpec((1, 2, 2, HW, Cp), lambda n: (n, 0, 0, 0, 0)),
            pl.BlockSpec((1, 1, Cp), lambda n: (n, 0, 0)),
        ),
        compiler_params=pltpu.CompilerParams(dimension_semantics=("parallel",)),
    )(x_flat, w1, b1, wd0, wd1, wd2, wd3, b2)


# ----------------------------------------------------------------------------
# Kernel 2: local_att (2 matmuls + folded BN + ReLU) + sigmoid gate + blend,
#           with xg broadcast in-kernel from a tiny per-batch row.
# Grid: (N, row_tiles).
# ----------------------------------------------------------------------------
def _attention_blend_kernel(xup_ref, res_ref, xg_ref, w1x_ref, w1r_ref, b1_ref,
                            w2_ref, b2_ref, o_ref):
    x = xup_ref[0]                                   # (tm, Cp) bf16
    r = res_ref[0]                                   # (tm, Cp) bf16
    # local_att layer 1: relu([x | r] @ W1 + b1); channel concat as split matmuls.
    t = jnp.dot(x, w1x_ref[...], preferred_element_type=jnp.float32)
    t = t + jnp.dot(r, w1r_ref[...], preferred_element_type=jnp.float32)
    t = jnp.maximum(t + b1_ref[...], 0.0)
    # local_att layer 2 (BN folded)
    xl = jnp.dot(t.astype(jnp.bfloat16), w2_ref[...],
                 preferred_element_type=jnp.float32) + b2_ref[...]
    # xg broadcast in-kernel (per-batch (1, Cp) row)
    wei = jax.nn.sigmoid(xl + xg_ref[0])
    xf = x.astype(jnp.float32)
    rf = r.astype(jnp.float32)
    o_ref[0] = (xf * wei + rf * (1.0 - wei)).astype(o_ref.dtype)


def attention_blend(xup_flat, res_flat, xg, w1x, w1r, b1, w2, b2, *, tm):
    N, M, Cp = xup_flat.shape
    IntP = w1x.shape[1]
    return pl.pallas_call(
        _attention_blend_kernel,
        out_shape=jax.ShapeDtypeStruct((N, M, Cp), jnp.float32),
        grid=(N, M // tm),
        in_specs=[
            pl.BlockSpec((1, tm, Cp), lambda n, t: (n, t, 0)),
            pl.BlockSpec((1, tm, Cp), lambda n, t: (n, t, 0)),
            pl.BlockSpec((1, 1, Cp), lambda n, t: (n, 0, 0)),
            pl.BlockSpec((Cp, IntP), lambda n, t: (0, 0)),
            pl.BlockSpec((Cp, IntP), lambda n, t: (0, 0)),
            pl.BlockSpec((1, IntP), lambda n, t: (0, 0)),
            pl.BlockSpec((IntP, Cp), lambda n, t: (0, 0)),
            pl.BlockSpec((1, Cp), lambda n, t: (0, 0)),
        ],
        out_specs=pl.BlockSpec((1, tm, Cp), lambda n, t: (n, t, 0)),
        compiler_params=pltpu.CompilerParams(
            dimension_semantics=("parallel", "parallel")),
    )(xup_flat, res_flat, xg, w1x, w1r, b1, w2, b2)


# ----------------------------------------------------------------------------
# Parameter setup / BN folding / one-time padding
# ----------------------------------------------------------------------------
def fold_bn(w, b, gamma, beta, mean, var, eps=1e-5):
    scale = gamma / jnp.sqrt(var + eps)
    return w * scale[None, :], (b - mean) * scale + beta


def _pad_w(w, kp, npad):
    return jnp.zeros((kp, npad), jnp.float32).at[:w.shape[0], :w.shape[1]].set(w)


def _pad_b(b, npad):
    return jnp.zeros((1, npad), jnp.float32).at[0, :b.shape[0]].set(b)


def init_params(key, cin, cout):
    inter = cout // 2
    ks = jax.random.split(key, 16)

    def w(k, shape, scale=0.1):
        return scale * jax.random.normal(k, shape, jnp.float32)

    def bn(k, c):
        k1, k2, k3, k4 = jax.random.split(k, 4)
        return (
            1.0 + 0.1 * jax.random.normal(k1, (c,), jnp.float32),   # gamma
            0.1 * jax.random.normal(k2, (c,), jnp.float32),          # beta
            0.1 * jax.random.normal(k3, (c,), jnp.float32),          # running_mean
            jax.random.uniform(k4, (c,), jnp.float32, 0.5, 1.5),     # running_var
        )

    return dict(
        conv1_w=w(ks[0], (cin, cout)), conv1_b=w(ks[1], (cout,)), bn1=bn(ks[2], cout),
        deconv_w=w(ks[3], (cout, cout, 3, 3)), deconv_b=w(ks[4], (cout,)), bn2=bn(ks[5], cout),
        la1_w=w(ks[6], (2 * cout, inter)), la1_b=w(ks[7], (inter,)), bn_la1=bn(ks[8], inter),
        la2_w=w(ks[9], (inter, cout)), la2_b=w(ks[10], (cout,)), bn_la2=bn(ks[11], cout),
        ga1_w=w(ks[12], (2 * cout, inter)), ga1_b=w(ks[13], (inter,)),
        ga2_w=w(ks[14], (inter, cout)), ga2_b=w(ks[15], (cout,)),
    )


def prepare_params(params, cin, cout):
    """Fold inference BN into conv weights, pad channels to 128-lane width and pack
    the deconv taps -- done ONCE, outside the per-step forward."""
    CinP, Cp = _round_up(cin, 128), _round_up(cout, 128)
    inter = cout // 2
    IntP = _round_up(inter, 128)
    bf = jnp.bfloat16

    # conv1 + bn1
    w1, b1 = fold_bn(params["conv1_w"], params["conv1_b"], *params["bn1"])

    # deconv2 + bn2: scale each tap's output channels, pack taps per shifted input.
    dw, db = params["deconv_w"], params["deconv_b"]          # (Cout, Cout, 3, 3)
    g2, be2, m2, v2 = params["bn2"]
    s2 = g2 / jnp.sqrt(v2 + 1e-5)

    def tap(ky, kx):
        return _pad_w(dw[:, :, ky, kx] * s2[None, :], Cp, Cp)

    # phase equations:
    #   p00 = h[r,c]W11
    #   p01 = h[r,c+1]W10 + h[r,c]W12
    #   p10 = h[r+1,c]W01 + h[r,c]W21
    #   p11 = h[r+1,c+1]W00 + h[r+1,c]W02 + h[r,c+1]W20 + h[r,c]W22
    wd0 = jnp.concatenate([tap(1, 1), tap(1, 2), tap(2, 1), tap(2, 2)], axis=1)
    wd1 = jnp.concatenate([tap(1, 0), tap(2, 0)], axis=1)    # applied to h[r, c+1]
    wd2 = jnp.concatenate([tap(0, 1), tap(0, 2)], axis=1)    # applied to h[r+1, c]
    wd3 = tap(0, 0)                                          # applied to h[r+1, c+1]
    b2 = (db - m2) * s2 + be2

    # local_att (two 1x1 convs, BN folded); split layer-1 rows into x / residual parts
    wl1, bl1 = fold_bn(params["la1_w"], params["la1_b"], *params["bn_la1"])
    wl2, bl2 = fold_bn(params["la2_w"], params["la2_b"], *params["bn_la2"])

    return dict(
        w1=_pad_w(w1, CinP, Cp).astype(bf), b1=_pad_b(b1, Cp),
        wd0=wd0.astype(bf), wd1=wd1.astype(bf), wd2=wd2.astype(bf),
        wd3=wd3.astype(bf), b2=_pad_b(b2, Cp),
        la_w1x=_pad_w(wl1[:cout, :], Cp, IntP).astype(bf),
        la_w1r=_pad_w(wl1[cout:, :], Cp, IntP).astype(bf),
        la_b1=_pad_b(bl1, IntP),
        la_w2=_pad_w(wl2, IntP, Cp).astype(bf), la_b2=_pad_b(bl2, Cp),
        # global_att branch stays tiny & unpadded (plain XLA ops)
        ga1_wx=params["ga1_w"][:cout, :], ga1_wr=params["ga1_w"][cout:, :],
        ga1_b=params["ga1_b"], ga2_w=params["ga2_w"], ga2_b=params["ga2_b"],
    )


# ----------------------------------------------------------------------------
# Forward pass
# ----------------------------------------------------------------------------
def decoder2_forward(kp, x_nchw, res_nchw):
    N, Cin, H, W = x_nchw.shape
    CinP = kp["w1"].shape[0]
    Cp = kp["w1"].shape[1]
    Cout = kp["ga2_w"].shape[1]
    HW = H * W

    # ---- one-time layout conversion: NCHW -> channel-padded bf16 -------------
    x_nhwc = jnp.transpose(x_nchw, (0, 2, 3, 1)).astype(jnp.bfloat16)
    x_flat = (jnp.zeros((N, H, W, CinP), jnp.bfloat16)
              .at[..., :Cin].set(x_nhwc).reshape(N, HW, CinP))

    # residual -> phase-ordered layout (n, dy, dx, r, c, ch), matching xup below.
    res6 = res_nchw.reshape(N, Cout, H, 2, W, 2).transpose(0, 3, 5, 2, 4, 1)
    res_flat = (jnp.zeros((N, 2, 2, H, W, Cp), jnp.bfloat16)
                .at[..., :Cout].set(res6.astype(jnp.bfloat16))
                .reshape(N, 4 * HW, Cp))

    # ---- kernel 1: conv1 + all four deconv phases (h never leaves VMEM) ------
    xup, xup_sum = conv1_deconv(x_flat, kp["w1"], kp["b1"], kp["wd0"], kp["wd1"],
                                kp["wd2"], kp["wd3"], kp["b2"], H=H, W=W)
    xup_flat = xup.reshape(N, 4 * HW, Cp)

    # ---- global attention branch: (N, 2*Cout)-sized work -> plain XLA --------
    mean_x = xup_sum[:, 0, :Cout] / jnp.float32(4 * HW)
    mean_r = jnp.mean(res_nchw, axis=(2, 3))
    g = jnp.maximum(mean_x @ kp["ga1_wx"] + mean_r @ kp["ga1_wr"] + kp["ga1_b"], 0.0)
    xg = g @ kp["ga2_w"] + kp["ga2_b"]
    xg_p = jnp.zeros((N, 1, Cp), jnp.float32).at[:, 0, :Cout].set(xg)

    # ---- kernel 2: local_att + sigmoid gate + blend, fused --------------------
    tm = _pick_tile(4 * HW)
    xo = attention_blend(xup_flat, res_flat, xg_p, kp["la_w1x"], kp["la_w1r"],
                         kp["la_b1"], kp["la_w2"], kp["la_b2"], tm=tm)

    # ---- phase-ordered -> NCHW (pixel shuffle merged with the layout transpose)
    xo = xo.reshape(N, 2, 2, H, W, Cp)[..., :Cout]
    xo = xo.transpose(0, 5, 3, 1, 4, 2).reshape(N, Cout, 2 * H, 2 * W)
    return xo


# ----------------------------------------------------------------------------
if __name__ == "__main__":
    N, Cin, Cout, H, W = 2, 4, 8, 8, 8
    kx, kr = jax.random.split(jax.random.PRNGKey(0))
    x = jax.random.normal(kx, (N, Cin, H, W), jnp.float32)
    residual = jax.random.normal(kr, (N, Cout, 2 * H, 2 * W), jnp.float32)

    params = init_params(jax.random.PRNGKey(42), Cin, Cout)
    kp = prepare_params(params, Cin, Cout)

    fwd = jax.jit(decoder2_forward)
    out = fwd(kp, x, residual)
    jax.block_until_ready(out)
    assert out.shape == (N, Cout, 2 * H, 2 * W), out.shape
    assert bool(jnp.all(jnp.isfinite(out)))
    print("KERNEL_OK")
</pallas_src>

<mosaic_0001>
module attributes {stable_mosaic.version = 11 : i64} {
  func.func @_conv_deconv_kernel(%arg0: i32, %arg1: memref<1x64x128xbf16, #tpu.memory_space<vmem>>, %arg2: memref<128x128xbf16, #tpu.memory_space<vmem>>, %arg3: memref<1x128xf32, #tpu.memory_space<vmem>>, %arg4: memref<128x512xbf16, #tpu.memory_space<vmem>>, %arg5: memref<128x256xbf16, #tpu.memory_space<vmem>>, %arg6: memref<128x256xbf16, #tpu.memory_space<vmem>>, %arg7: memref<128x128xbf16, #tpu.memory_space<vmem>>, %arg8: memref<1x128xf32, #tpu.memory_space<vmem>>, %arg9: memref<1x2x2x64x128xbf16, #tpu.memory_space<vmem>>, %arg10: memref<1x1x128xf32, #tpu.memory_space<vmem>>) attributes {dimension_semantics = [#tpu.dimension_semantics<parallel>], iteration_bounds = array<i64: 2>, scalar_prefetch = 0 : i64, scratch_operands = 0 : i64, tpu.core_type = #tpu.core_type<tc>, window_params = [{transform_indices = @transform_0, window_bounds = array<i64: 1, 64, 128>}, {pipeline_mode = #tpu.pipeline_mode<synchronous>, transform_indices = @transform_1, window_bounds = array<i64: 128, 128>}, {pipeline_mode = #tpu.pipeline_mode<synchronous>, transform_indices = @transform_2, window_bounds = array<i64: 1, 128>}, {pipeline_mode = #tpu.pipeline_mode<synchronous>, transform_indices = @transform_3, window_bounds = array<i64: 128, 512>}, {pipeline_mode = #tpu.pipeline_mode<synchronous>, transform_indices = @transform_4, window_bounds = array<i64: 128, 256>}, {pipeline_mode = #tpu.pipeline_mode<synchronous>, transform_indices = @transform_5, window_bounds = array<i64: 128, 256>}, {pipeline_mode = #tpu.pipeline_mode<synchronous>, transform_indices = @transform_6, window_bounds = array<i64: 128, 128>}, {pipeline_mode = #tpu.pipeline_mode<synchronous>, transform_indices = @transform_7, window_bounds = array<i64: 1, 128>}, {transform_indices = @transform_8, window_bounds = array<i64: 1, 2, 2, 64, 128>}, {transform_indices = @transform_9, window_bounds = array<i64: 1, 1, 128>}]} {
    %c0 = arith.constant 0 : index
    %c0_0 = arith.constant 0 : index
    %c0_1 = arith.constant 0 : index
    %0 = vector.load %arg1[%c0, %c0_0, %c0_1] : memref<1x64x128xbf16, #tpu.memory_space<vmem>>, vector<1x64x128xbf16>
    %1 = vector.shape_cast %0 : vector<1x64x128xbf16> to vector<64x128xbf16>
    %c0_2 = arith.constant 0 : index
    %c0_3 = arith.constant 0 : index
    %2 = vector.load %arg2[%c0_2, %c0_3] : memref<128x128xbf16, #tpu.memory_space<vmem>>, vector<128x128xbf16>
    %cst = arith.constant dense<0.000000e+00> : vector<64x128xf32>
    %3 = tpu.matmul %1, %2, %cst {dimension_numbers = #tpu.dot_dimension_numbers<[1], [0], [0], [1], [0, 0, 1, 1], [], []>} : vector<64x128xbf16>, vector<128x128xbf16>, vector<64x128xf32> -> vector<64x128xf32>
    %c0_4 = arith.constant 0 : index
    %c0_5 = arith.constant 0 : index
    %4 = vector.load %arg3[%c0_4, %c0_5] : memref<1x128xf32, #tpu.memory_space<vmem>>, vector<1x128xf32>
    %5 = vector.broadcast %4 : vector<1x128xf32> to vector<64x128xf32>
    %6 = arith.addf %3, %5 : vector<64x128xf32>
    %cst_6 = arith.constant 0.000000e+00 : f32
    %7 = vector.broadcast %cst_6 : f32 to vector<64x128xf32>
    %8 = arith.maximumf %6, %7 : vector<64x128xf32>
    %cst_7 = arith.constant 0.000000e+00 : f32
    %9 = vector.broadcast %cst_7 : f32 to vector<1x128xf32>
    %cst_8 = arith.constant 0.000000e+00 : f32
    %10 = vector.broadcast %cst_8 : f32 to vector<8x128xf32>
    %11 = tpu.iota {dimensions = array<i32: 0>} : vector<64x1xi32>
    %c8_i32 = arith.constant 8 : i32
    %c0_i32 = arith.constant 0 : i32
    %12 = arith.cmpi eq, %c8_i32, %c0_i32 : i32
    %c1_i32 = arith.constant 1 : i32
    %13 = arith.select %12, %c1_i32, %c8_i32 : i32
    %14 = vector.broadcast %13 : i32 to vector<64x1xi32>
    %15 = arith.remsi %11, %14 : vector<64x1xi32>
    %c0_i32_9 = arith.constant 0 : i32
    %16 = vector.broadcast %c0_i32_9 : i32 to vector<64x1xi32>
    %17 = arith.cmpi ne, %15, %16 : vector<64x1xi32>
    %c0_i32_10 = arith.constant 0 : i32
    %18 = vector.broadcast %c0_i32_10 : i32 to vector<64x1xi32>
    %19 = arith.cmpi slt, %15, %18 : vector<64x1xi32>
    %c0_i32_11 = arith.constant 0 : i32
    %20 = arith.cmpi slt, %13, %c0_i32_11 : i32
    %21 = vector.broadcast %20 : i1 to vector<64x1xi1>
    %22 = vector.broadcast %21 : vector<64x1xi1> to vector<64x1xi1>
    %23 = arith.xori %19, %22 : vector<64x1xi1>
    %24 = arith.andi %23, %17 : vector<64x1xi1>
    %25 = vector.broadcast %13 : i32 to vector<64x1xi32>
    %26 = arith.addi %15, %25 : vector<64x1xi32>
    %27 = arith.select %24, %26, %15 : vector<64x1xi1>, vector<64x1xi32>
    %c7_i32 = arith.constant 7 : i32
    %28 = vector.broadcast %c7_i32 : i32 to vector<64x1xi32>
    %29 = arith.cmpi ne, %27, %28 : vector<64x1xi32>
    %30 = vector.extract_strided_slice %8 {offsets = [1, 0], sizes = [63, 128], strides = [1, 1]} : vector<64x128xf32> to vector<63x128xf32>
    %31 = tpu.concatenate %30, %9 in 0 : vector<63x128xf32>, vector<1x128xf32> -> vector<64x128xf32>
    %cst_12 = arith.constant 0.000000e+00 : f32
    %32 = vector.shape_cast %29 : vector<64x1xi1> to vector<64x1xi1>
    %33 = vector.broadcast %32 : vector<64x1xi1> to vector<64x128xi1>
    %34 = vector.broadcast %cst_12 : f32 to vector<64x128xf32>
    %35 = arith.select %33, %31, %34 : vector<64x128xi1>, vector<64x128xf32>
    %36 = vector.extract_strided_slice %8 {offsets = [8, 0], sizes = [56, 128], strides = [1, 1]} : vector<64x128xf32> to vector<56x128xf32>
    %37 = tpu.concatenate %36, %10 in 0 : vector<56x128xf32>, vector<8x128xf32> -> vector<64x128xf32>
    %38 = vector.extract_strided_slice %37 {offsets = [1, 0], sizes = [63, 128], strides = [1, 1]} : vector<64x128xf32> to vector<63x128xf32>
    %39 = tpu.concatenate %38, %9 in 0 : vector<63x128xf32>, vector<1x128xf32> -> vector<64x128xf32>
    %cst_13 = arith.constant 0.000000e+00 : f32
    %40 = vector.shape_cast %29 : vector<64x1xi1> to vector<64x1xi1>
    %41 = vector.broadcast %40 : vector<64x1xi1> to vector<64x128xi1>
    %42 = vector.broadcast %cst_13 : f32 to vector<64x128xf32>
    %43 = arith.select %41, %39, %42 : vector<64x128xi1>, vector<64x128xf32>
    %44 = arith.truncf %8 : vector<64x128xf32> to vector<64x128xbf16>
    %45 = arith.truncf %35 : vector<64x128xf32> to vector<64x128xbf16>
    %46 = arith.truncf %37 : vector<64x128xf32> to vector<64x128xbf16>
    %47 = arith.truncf %43 : vector<64x128xf32> to vector<64x128xbf16>
    %c0_14 = arith.constant 0 : index
    %c0_15 = arith.constant 0 : index
    %48 = vector.load %arg4[%c0_14, %c0_15] : memref<128x512xbf16, #tpu.memory_space<vmem>>, vector<128x512xbf16>
    %cst_16 = arith.constant dense<0.000000e+00> : vector<64x512xf32>
    %49 = tpu.matmul %44, %48, %cst_16 {dimension_numbers = #tpu.dot_dimension_numbers<[1], [0], [0], [1], [0, 0, 1, 1], [], []>} : vector<64x128xbf16>, vector<128x512xbf16>, vector<64x512xf32> -> vector<64x512xf32>
    %c0_17 = arith.constant 0 : index
    %c0_18 = arith.constant 0 : index
    %50 = vector.load %arg5[%c0_17, %c0_18] : memref<128x256xbf16, #tpu.memory_space<vmem>>, vector<128x256xbf16>
    %cst_19 = arith.constant dense<0.000000e+00> : vector<64x256xf32>
    %51 = tpu.matmul %45, %50, %cst_19 {dimension_numbers = #tpu.dot_dimension_numbers<[1], [0], [0], [1], [0, 0, 1, 1], [], []>} : vector<64x128xbf16>, vector<128x256xbf16>, vector<64x256xf32> -> vector<64x256xf32>
    %c0_20 = arith.constant 0 : index
    %c0_21 = arith.constant 0 : index
    %52 = vector.load %arg6[%c0_20, %c0_21] : memref<128x256xbf16, #tpu.memory_space<vmem>>, vector<128x256xbf16>
    %cst_22 = arith.constant dense<0.000000e+00> : vector<64x256xf32>
    %53 = tpu.matmul %46, %52, %cst_22 {dimension_numbers = #tpu.dot_dimension_numbers<[1], [0], [0], [1], [0, 0, 1, 1], [], []>} : vector<64x128xbf16>, vector<128x256xbf16>, vector<64x256xf32> -> vector<64x256xf32>
    %c0_23 = arith.constant 0 : index
    %c0_24 = arith.constant 0 : index
    %54 = vector.load %arg7[%c0_23, %c0_24] : memref<128x128xbf16, #tpu.memory_space<vmem>>, vector<128x128xbf16>
    %cst_25 = arith.constant dense<0.000000e+00> : vector<64x128xf32>
    %55 = tpu.matmul %47, %54, %cst_25 {dimension_numbers = #tpu.dot_dimension_numbers<[1], [0], [0], [1], [0, 0, 1, 1], [], []>} : vector<64x128xbf16>, vector<128x128xbf16>, vector<64x128xf32> -> vector<64x128xf32>
    %c0_26 = arith.constant 0 : index
    %c0_27 = arith.constant 0 : index
    %56 = vector.load %arg8[%c0_26, %c0_27] : memref<1x128xf32, #tpu.memory_space<vmem>>, vector<1x128xf32>
    %57 = vector.extract_strided_slice %49 {offsets = [0, 0], sizes = [64, 128], strides = [1, 1]} : vector<64x512xf32> to vector<64x128xf32>
    %58 = vector.broadcast %56 : vector<1x128xf32> to vector<64x128xf32>
    %59 = arith.addf %57, %58 : vector<64x128xf32>
    %cst_28 = arith.constant 0.000000e+00 : f32
    %60 = vector.broadcast %cst_28 : f32 to vector<64x128xf32>
    %61 = arith.maximumf %59, %60 : vector<64x128xf32>
    %62 = vector.extract_strided_slice %49 {offsets = [0, 128], sizes = [64, 128], strides = [1, 1]} : vector<64x512xf32> to vector<64x128xf32>
    %63 = vector.extract_strided_slice %51 {offsets = [0, 0], sizes = [64, 128], strides = [1, 1]} : vector<64x256xf32> to vector<64x128xf32>
    %64 = arith.addf %62, %63 : vector<64x128xf32>
    %65 = vector.broadcast %56 : vector<1x128xf32> to vector<64x128xf32>
    %66 = arith.addf %64, %65 : vector<64x128xf32>
    %cst_29 = arith.constant 0.000000e+00 : f32
    %67 = vector.broadcast %cst_29 : f32 to vector<64x128xf32>
    %68 = arith.maximumf %66, %67 : vector<64x128xf32>
    %69 = vector.extract_strided_slice %49 {offsets = [0, 256], sizes = [64, 128], strides = [1, 1]} : vector<64x512xf32> to vector<64x128xf32>
    %70 = vector.extract_strided_slice %53 {offsets = [0, 0], sizes = [64, 128], strides = [1, 1]} : vector<64x256xf32> to vector<64x128xf32>
    %71 = arith.addf %69, %70 : vector<64x128xf32>
    %72 = vector.broadcast %56 : vector<1x128xf32> to vector<64x128xf32>
    %73 = arith.addf %71, %72 : vector<64x128xf32>
    %cst_30 = arith.constant 0.000000e+00 : f32
    %74 = vector.broadcast %cst_30 : f32 to vector<64x128xf32>
    %75 = arith.maximumf %73, %74 : vector<64x128xf32>
    %76 = vector.extract_strided_slice %49 {offsets = [0, 384], sizes = [64, 128], strides = [1, 1]} : vector<64x512xf32> to vector<64x128xf32>
    %77 = vector.extract_strided_slice %51 {offsets = [0, 128], sizes = [64, 128], strides = [1, 1]} : vector<64x256xf32> to vector<64x128xf32>
    %78 = arith.addf %76, %77 : vector<64x128xf32>
    %79 = vector.extract_strided_slice %53 {offsets = [0, 128], sizes = [64, 128], strides = [1, 1]} : vector<64x256xf32> to vector<64x128xf32>
    %80 = arith.addf %78, %79 : vector<64x128xf32>
    %81 = arith.addf %80, %55 : vector<64x128xf32>
    %82 = vector.broadcast %56 : vector<1x128xf32> to vector<64x128xf32>
    %83 = arith.addf %81, %82 : vector<64x128xf32>
    %cst_31 = arith.constant 0.000000e+00 : f32
    %84 = vector.broadcast %cst_31 : f32 to vector<64x128xf32>
    %85 = arith.maximumf %83, %84 : vector<64x128xf32>
    %86 = arith.truncf %61 : vector<64x128xf32> to vector<64x128xbf16>
    %c0_32 = arith.constant 0 : index
    %c0_33 = arith.constant 0 : index
    %c0_34 = arith.constant 0 : index
    %c0_35 = arith.constant 0 : index
    %c0_36 = arith.constant 0 : index
    %87 = vector.load %arg9[%c0_32, %c0_33, %c0_34, %c0_35, %c0_36] : memref<1x2x2x64x128xbf16, #tpu.memory_space<vmem>>, vector<1x1x1x64x128xbf16>
    %88 = vector.shape_cast %87 : vector<1x1x1x64x128xbf16> to vector<64x128xbf16>
    %89 = vector.shape_cast %86 : vector<64x128xbf16> to vector<1x1x1x64x128xbf16>
    tpu.vector_store %arg9[%c0_32, %c0_33, %c0_34, %c0_35, %c0_36], %89 {strides = array<i32>} : memref<1x2x2x64x128xbf16, #tpu.memory_space<vmem>>, vector<1x1x1x64x128xbf16>,
    %90 = arith.truncf %68 : vector<64x128xf32> to vector<64x128xbf16>
    %c0_37 = arith.constant 0 : index
    %c0_38 = arith.constant 0 : index
    %c1 = arith.constant 1 : index
    %c0_39 = arith.constant 0 : index
    %c0_40 = arith.constant 0 : index
    %91 = vector.load %arg9[%c0_37, %c0_38, %c1, %c0_39, %c0_40] : memref<1x2x2x64x128xbf16, #tpu.memory_space<vmem>>, vector<1x1x1x64x128xbf16>
    %92 = vector.shape_cast %91 : vector<1x1x1x64x128xbf16> to vector<64x128xbf16>
    %93 = vector.shape_cast %90 : vector<64x128xbf16> to vector<1x1x1x64x128xbf16>
    tpu.vector_store %arg9[%c0_37, %c0_38, %c1, %c0_39, %c0_40], %93 {strides = array<i32>} : memref<1x2x2x64x128xbf16, #tpu.memory_space<vmem>>, vector<1x1x1x64x128xbf16>,
    %94 = arith.truncf %75 : vector<64x128xf32> to vector<64x128xbf16>
    %c0_41 = arith.constant 0 : index
    %c1_42 = arith.constant 1 : index
    %c0_43 = arith.constant 0 : index
    %c0_44 = arith.constant 0 : index
    %c0_45 = arith.constant 0 : index
    %95 = vector.load %arg9[%c0_41, %c1_42, %c0_43, %c0_44, %c0_45] : memref<1x2x2x64x128xbf16, #tpu.memory_space<vmem>>, vector<1x1x1x64x128xbf16>
    %96 = vector.shape_cast %95 : vector<1x1x1x64x128xbf16> to vector<64x128xbf16>
    %97 = vector.shape_cast %94 : vector<64x128xbf16> to vector<1x1x1x64x128xbf16>
    tpu.vector_store %arg9[%c0_41, %c1_42, %c0_43, %c0_44, %c0_45], %97 {strides = array<i32>} : memref<1x2x2x64x128xbf16, #tpu.memory_space<vmem>>, vector<1x1x1x64x128xbf16>,
    %98 = arith.truncf %85 : vector<64x128xf32> to vector<64x128xbf16>
    %c0_46 = arith.constant 0 : index
    %c1_47 = arith.constant 1 : index
    %c1_48 = arith.constant 1 : index
    %c0_49 = arith.constant 0 : index
    %c0_50 = arith.constant 0 : index
    %99 = vector.load %arg9[%c0_46, %c1_47, %c1_48, %c0_49, %c0_50] : memref<1x2x2x64x128xbf16, #tpu.memory_space<vmem>>, vector<1x1x1x64x128xbf16>
    %100 = vector.shape_cast %99 : vector<1x1x1x64x128xbf16> to vector<64x128xbf16>
    %101 = vector.shape_cast %98 : vector<64x128xbf16> to vector<1x1x1x64x128xbf16>
    tpu.vector_store %arg9[%c0_46, %c1_47, %c1_48, %c0_49, %c0_50], %101 {strides = array<i32>} : memref<1x2x2x64x128xbf16, #tpu.memory_space<vmem>>, vector<1x1x1x64x128xbf16>,
    %102 = arith.addf %61, %68 : vector<64x128xf32>
    %103 = arith.addf %102, %75 : vector<64x128xf32>
    %104 = arith.addf %103, %85 : vector<64x128xf32>
    %cst_51 = arith.constant dense<0.000000e+00> : vector<128xf32>
    %105 = vector.multi_reduction <add>, %104, %cst_51 [0] : vector<64x128xf32> to vector<128xf32>
    %106 = vector.shape_cast %105 : vector<128xf32> to vector<1x128xf32>
    %c0_52 = arith.constant 0 : index
    %c0_53 = arith.constant 0 : index
    %c0_54 = arith.constant 0 : index
    %107 = vector.load %arg10[%c0_52, %c0_53, %c0_54] : memref<1x1x128xf32, #tpu.memory_space<vmem>>, vector<1x1x128xf32>
    %108 = vector.shape_cast %107 : vector<1x1x128xf32> to vector<1x128xf32>
    %109 = vector.shape_cast %106 : vector<1x128xf32> to vector<1x1x128xf32>
    tpu.vector_store %arg10[%c0_52, %c0_53, %c0_54], %109 {strides = array<i32>} : memref<1x1x128xf32, #tpu.memory_space<vmem>>, vector<1x1x128xf32>,
    return
  }
  func.func @transform_0(%arg0: i32) -> (i32, i32, i32) {
    %c0_i32 = arith.constant 0 : i32
    %c0_i32_0 = arith.constant 0 : i32
    %c0_i32_1 = arith.constant 0 : i32
    return %arg0, %c0_i32, %c0_i32_0 : i32, i32, i32
  }
  func.func @transform_1(%arg0: i32) -> (i32, i32) {
    %c0_i32 = arith.constant 0 : i32
    %c0_i32_0 = arith.constant 0 : i32
    %c0_i32_1 = arith.constant 0 : i32
    return %c0_i32, %c0_i32_0 : i32, i32
  }
  func.func @transform_2(%arg0: i32) -> (i32, i32) {
    %c0_i32 = arith.constant 0 : i32
    %c0_i32_0 = arith.constant 0 : i32
    %c0_i32_1 = arith.constant 0 : i32
    return %c0_i32, %c0_i32_0 : i32, i32
  }
  func.func @transform_3(%arg0: i32) -> (i32, i32) {
    %c0_i32 = arith.constant 0 : i32
    %c0_i32_0 = arith.constant 0 : i32
    %c0_i32_1 = arith.constant 0 : i32
    return %c0_i32, %c0_i32_0 : i32, i32
  }
  func.func @transform_4(%arg0: i32) -> (i32, i32) {
    %c0_i32 = arith.constant 0 : i32
    %c0_i32_0 = arith.constant 0 : i32
    %c0_i32_1 = arith.constant 0 : i32
    return %c0_i32, %c0_i32_0 : i32, i32
  }
  func.func @transform_5(%arg0: i32) -> (i32, i32) {
    %c0_i32 = arith.constant 0 : i32
    %c0_i32_0 = arith.constant 0 : i32
    %c0_i32_1 = arith.constant 0 : i32
    return %c0_i32, %c0_i32_0 : i32, i32
  }
  func.func @transform_6(%arg0: i32) -> (i32, i32) {
    %c0_i32 = arith.constant 0 : i32
    %c0_i32_0 = arith.constant 0 : i32
    %c0_i32_1 = arith.constant 0 : i32
    return %c0_i32, %c0_i32_0 : i32, i32
  }
  func.func @transform_7(%arg0: i32) -> (i32, i32) {
    %c0_i32 = arith.constant 0 : i32
    %c0_i32_0 = arith.constant 0 : i32
    %c0_i32_1 = arith.constant 0 : i32
    return %c0_i32, %c0_i32_0 : i32, i32
  }
  func.func @transform_8(%arg0: i32) -> (i32, i32, i32, i32, i32) {
    %c0_i32 = arith.constant 0 : i32
    %c0_i32_0 = arith.constant 0 : i32
    %c0_i32_1 = arith.constant 0 : i32
    %c0_i32_2 = arith.constant 0 : i32
    %c0_i32_3 = arith.constant 0 : i32
    return %arg0, %c0_i32, %c0_i32_0, %c0_i32_1, %c0_i32_2 : i32, i32, i32, i32, i32
  }
  func.func @transform_9(%arg0: i32) -> (i32, i32, i32) {
    %c0_i32 = arith.constant 0 : i32
    %c0_i32_0 = arith.constant 0 : i32
    %c0_i32_1 = arith.constant 0 : i32
    return %arg0, %c0_i32, %c0_i32_0 : i32, i32, i32
  }
}

module attributes {stable_mosaic.version = 11 : i64} {
  func.func @_attention_blend_kernel(%arg0: i32, %arg1: i32, %arg2: memref<1x256x128xbf16, #tpu.memory_space<vmem>>, %arg3: memref<1x256x128xbf16, #tpu.memory_space<vmem>>, %arg4: memref<1x1x128xf32, #tpu.memory_space<vmem>>, %arg5: memref<128x128xbf16, #tpu.memory_space<vmem>>, %arg6: memref<128x128xbf16, #tpu.memory_space<vmem>>, %arg7: memref<1x128xf32, #tpu.memory_space<vmem>>, %arg8: memref<128x128xbf16, #tpu.memory_space<vmem>>, %arg9: memref<1x128xf32, #tpu.memory_space<vmem>>, %arg10: memref<1x256x128xf32, #tpu.memory_space<vmem>>) attributes {dimension_semantics = [#tpu.dimension_semantics<parallel>, #tpu.dimension_semantics<parallel>], iteration_bounds = array<i64: 2, 1>, scalar_prefetch = 0 : i64, scratch_operands = 0 : i64, tpu.core_type = #tpu.core_type<tc>, window_params = [{transform_indices = @transform_0, window_bounds = array<i64: 1, 256, 128>}, {transform_indices = @transform_1, window_bounds = array<i64: 1, 256, 128>}, {transform_indices = @transform_2, window_bounds = array<i64: 1, 1, 128>}, {pipeline_mode = #tpu.pipeline_mode<synchronous>, transform_indices = @transform_3, window_bounds = array<i64: 128, 128>}, {pipeline_mode = #tpu.pipeline_mode<synchronous>, transform_indices = @transform_4, window_bounds = array<i64: 128, 128>}, {pipeline_mode = #tpu.pipeline_mode<synchronous>, transform_indices = @transform_5, window_bounds = array<i64: 1, 128>}, {pipeline_mode = #tpu.pipeline_mode<synchronous>, transform_indices = @transform_6, window_bounds = array<i64: 128, 128>}, {pipeline_mode = #tpu.pipeline_mode<synchronous>, transform_indices = @transform_7, window_bounds = array<i64: 1, 128>}, {transform_indices = @transform_8, window_bounds = array<i64: 1, 256, 128>}]} {
    %c0 = arith.constant 0 : index
    %c0_0 = arith.constant 0 : index
    %c0_1 = arith.constant 0 : index
    %0 = vector.load %arg2[%c0, %c0_0, %c0_1] : memref<1x256x128xbf16, #tpu.memory_space<vmem>>, vector<1x256x128xbf16>
    %1 = vector.shape_cast %0 : vector<1x256x128xbf16> to vector<256x128xbf16>
    %c0_2 = arith.constant 0 : index
    %c0_3 = arith.constant 0 : index
    %c0_4 = arith.constant 0 : index
    %2 = vector.load %arg3[%c0_2, %c0_3, %c0_4] : memref<1x256x128xbf16, #tpu.memory_space<vmem>>, vector<1x256x128xbf16>
    %3 = vector.shape_cast %2 : vector<1x256x128xbf16> to vector<256x128xbf16>
    %c0_5 = arith.constant 0 : index
    %c0_6 = arith.constant 0 : index
    %4 = vector.load %arg5[%c0_5, %c0_6] : memref<128x128xbf16, #tpu.memory_space<vmem>>, vector<128x128xbf16>
    %cst = arith.constant dense<0.000000e+00> : vector<256x128xf32>
    %5 = tpu.matmul %1, %4, %cst {dimension_numbers = #tpu.dot_dimension_numbers<[1], [0], [0], [1], [0, 0, 1, 1], [], []>} : vector<256x128xbf16>, vector<128x128xbf16>, vector<256x128xf32> -> vector<256x128xf32>
    %c0_7 = arith.constant 0 : index
    %c0_8 = arith.constant 0 : index
    %6 = vector.load %arg6[%c0_7, %c0_8] : memref<128x128xbf16, #tpu.memory_space<vmem>>, vector<128x128xbf16>
    %cst_9 = arith.constant dense<0.000000e+00> : vector<256x128xf32>
    %7 = tpu.matmul %3, %6, %cst_9 {dimension_numbers = #tpu.dot_dimension_numbers<[1], [0], [0], [1], [0, 0, 1, 1], [], []>} : vector<256x128xbf16>, vector<128x128xbf16>, vector<256x128xf32> -> vector<256x128xf32>
    %8 = arith.addf %5, %7 : vector<256x128xf32>
    %c0_10 = arith.constant 0 : index
    %c0_11 = arith.constant 0 : index
    %9 = vector.load %arg7[%c0_10, %c0_11] : memref<1x128xf32, #tpu.memory_space<vmem>>, vector<1x128xf32>
    %10 = vector.broadcast %9 : vector<1x128xf32> to vector<256x128xf32>
    %11 = arith.addf %8, %10 : vector<256x128xf32>
    %cst_12 = arith.constant 0.000000e+00 : f32
    %12 = vector.broadcast %cst_12 : f32 to vector<256x128xf32>
    %13 = arith.maximumf %11, %12 : vector<256x128xf32>
    %14 = arith.truncf %13 : vector<256x128xf32> to vector<256x128xbf16>
    %c0_13 = arith.constant 0 : index
    %c0_14 = arith.constant 0 : index
    %15 = vector.load %arg8[%c0_13, %c0_14] : memref<128x128xbf16, #tpu.memory_space<vmem>>, vector<128x128xbf16>
    %cst_15 = arith.constant dense<0.000000e+00> : vector<256x128xf32>
    %16 = tpu.matmul %14, %15, %cst_15 {dimension_numbers = #tpu.dot_dimension_numbers<[1], [0], [0], [1], [0, 0, 1, 1], [], []>} : vector<256x128xbf16>, vector<128x128xbf16>, vector<256x128xf32> -> vector<256x128xf32>
    %c0_16 = arith.constant 0 : index
    %c0_17 = arith.constant 0 : index
    %17 = vector.load %arg9[%c0_16, %c0_17] : memref<1x128xf32, #tpu.memory_space<vmem>>, vector<1x128xf32>
    %18 = vector.broadcast %17 : vector<1x128xf32> to vector<256x128xf32>
    %19 = arith.addf %16, %18 : vector<256x128xf32>
    %c0_18 = arith.constant 0 : index
    %c0_19 = arith.constant 0 : index
    %c0_20 = arith.constant 0 : index
    %20 = vector.load %arg4[%c0_18, %c0_19, %c0_20] : memref<1x1x128xf32, #tpu.memory_space<vmem>>, vector<1x1x128xf32>
    %21 = vector.shape_cast %20 : vector<1x1x128xf32> to vector<1x128xf32>
    %22 = vector.broadcast %21 : vector<1x128xf32> to vector<256x128xf32>
    %23 = arith.addf %19, %22 : vector<256x128xf32>
    %24 = arith.negf %23 : vector<256x128xf32>
    %25 = math.exp %24 : vector<256x128xf32>
    %cst_21 = arith.constant 1.000000e+00 : f32
    %26 = vector.broadcast %cst_21 : f32 to vector<256x128xf32>
    %27 = arith.addf %26, %25 : vector<256x128xf32>
    %28 = arith.divf %26, %27 : vector<256x128xf32>
    %29 = arith.extf %1 : vector<256x128xbf16> to vector<256x128xf32>
    %30 = arith.extf %3 : vector<256x128xbf16> to vector<256x128xf32>
    %31 = arith.mulf %29, %28 : vector<256x128xf32>
    %cst_22 = arith.constant 1.000000e+00 : f32
    %32 = vector.broadcast %cst_22 : f32 to vector<256x128xf32>
    %33 = arith.subf %32, %28 : vector<256x128xf32>
    %34 = arith.mulf %30, %33 : vector<256x128xf32>
    %35 = arith.addf %31, %34 : vector<256x128xf32>
    %c0_23 = arith.constant 0 : index
    %c0_24 = arith.constant 0 : index
    %c0_25 = arith.constant 0 : index
    %36 = vector.load %arg10[%c0_23, %c0_24, %c0_25] : memref<1x256x128xf32, #tpu.memory_space<vmem>>, vector<1x256x128xf32>
    %37 = vector.shape_cast %36 : vector<1x256x128xf32> to vector<256x128xf32>
    %38 = vector.shape_cast %35 : vector<256x128xf32> to vector<1x256x128xf32>
    tpu.vector_store %arg10[%c0_23, %c0_24, %c0_25], %38 {strides = array<i32>} : memref<1x256x128xf32, #tpu.memory_space<vmem>>, vector<1x256x128xf32>,
    return
  }
  func.func @transform_0(%arg0: i32, %arg1: i32) -> (i32, i32, i32) {
    %c0_i32 = arith.constant 0 : i32
    %c0_i32_0 = arith.constant 0 : i32
    return %arg0, %arg1, %c0_i32 : i32, i32, i32
  }
  func.func @transform_1(%arg0: i32, %arg1: i32) -> (i32, i32, i32) {
    %c0_i32 = arith.constant 0 : i32
    %c0_i32_0 = arith.constant 0 : i32
    return %arg0, %arg1, %c0_i32 : i32, i32, i32
  }
  func.func @transform_2(%arg0: i32, %arg1: i32) -> (i32, i32, i32) {
    %c0_i32 = arith.constant 0 : i32
    %c0_i32_0 = arith.constant 0 : i32
    %c0_i32_1 = arith.constant 0 : i32
    return %arg0, %c0_i32, %c0_i32_0 : i32, i32, i32
  }
  func.func @transform_3(%arg0: i32, %arg1: i32) -> (i32, i32) {
    %c0_i32 = arith.constant 0 : i32
    %c0_i32_0 = arith.constant 0 : i32
    %c0_i32_1 = arith.constant 0 : i32
    return %c0_i32, %c0_i32_0 : i32, i32
  }
  func.func @transform_4(%arg0: i32, %arg1: i32) -> (i32, i32) {
    %c0_i32 = arith.constant 0 : i32
    %c0_i32_0 = arith.constant 0 : i32
    %c0_i32_1 = arith.constant 0 : i32
    return %c0_i32, %c0_i32_0 : i32, i32
  }
  func.func @transform_5(%arg0: i32, %arg1: i32) -> (i32, i32) {
    %c0_i32 = arith.constant 0 : i32
    %c0_i32_0 = arith.constant 0 : i32
    %c0_i32_1 = arith.constant 0 : i32
    return %c0_i32, %c0_i32_0 : i32, i32
  }
  func.func @transform_6(%arg0: i32, %arg1: i32) -> (i32, i32) {
    %c0_i32 = arith.constant 0 : i32
    %c0_i32_0 = arith.constant 0 : i32
    %c0_i32_1 = arith.constant 0 : i32
    return %c0_i32, %c0_i32_0 : i32, i32
  }
  func.func @transform_7(%arg0: i32, %arg1: i32) -> (i32, i32) {
    %c0_i32 = arith.constant 0 : i32
    %c0_i32_0 = arith.constant 0 : i32
    %c0_i32_1 = arith.constant 0 : i32
    return %c0_i32, %c0_i32_0 : i32, i32
  }
  func.func @transform_8(%arg0: i32, %arg1: i32) -> (i32, i32, i32) {
    %c0_i32 = arith.constant 0 : i32
    %c0_i32_0 = arith.constant 0 : i32
    return %arg0, %arg1, %c0_i32 : i32, i32, i32
  }
}

</mosaic_0001>

<llo_original>
// kernel: decoder2_forward.2
$region0: #{decoder2_forward.2}
  #allocation0 [shape = 'u32[]', space=smem, size = 0x4, offset = 0x4, fixed_abs, tag = 'smem constant byte address 0x4 - core index']
  #allocation1 [shape = 'u32[144,128]{1,0:T(1,128)}', space=vmem, size = 0x12000, scoped, tag = 'internal scratch']
  %s0 = inlined_call_operand.vmem [shape: bf16[2,64,128], index: 0, kind: input, shape index: {}]
  %s1 = inlined_call_operand.hbm [shape: bf16[128,128], index: 1, kind: input, shape index: {}]
  %s2 = inlined_call_operand.vmem [shape: f32[1,128], index: 2, kind: input, shape index: {}]
  %s3 = inlined_call_operand.vmem [shape: bf16[128,512], index: 3, kind: input, shape index: {}]
  %s4 = inlined_call_operand.vmem [shape: bf16[128,256], index: 4, kind: input, shape index: {}]
  %s5 = inlined_call_operand.vmem [shape: bf16[128,256], index: 5, kind: input, shape index: {}]
  %s6 = inlined_call_operand.hbm [shape: bf16[128,128], index: 6, kind: input, shape index: {}]
  %s7 = inlined_call_operand.vmem [shape: f32[1,128], index: 7, kind: input, shape index: {}]
  %s8 = inlined_call_operand.vmem [shape: bf16[2,2,2,64,128], index: 8, kind: output, shape index: {0}]
  %s9 = inlined_call_operand.vmem [shape: f32[2,1,128], index: 9, kind: output, shape index: {1}]
  %10 = xla_tuple %s8, %s9
  %s11 = sld [smem:[#allocation0]]
  $region81: #{decoder2_forward.2} parent=0
    _
  %s13 = ssub.s32 1, %s11
  %s14 = scalar_select 0, %s13, %s11
  $region1: #{decoder2_forward.2} parent=0
    #allocation2 [shape = 'u8[32768]{0}', space=vmem, size = 0x8000, scoped, tag = 'input window, operand 1, single buffered']
    #allocation3 [shape = 's32[2]{0}', space=sflag, size = 0x8, scoped, tag = 'scoped memory for decoder2_forward.2']
    #allocation4 [shape = 'u8[32768]{0}', space=vmem, size = 0x8000, scoped, tag = 'input window, operand 6, single buffered']
    #allocation5 [shape = 's32[1]{0}', space=sflag, size = 0x4, scoped, tag = 'scoped memory for decoder2_forward.2']
    %15 = vsyncpa [#allocation3], 0
    %16 = vsyncpa [#allocation5], 0
    loop: start=0, step=1, limit=4
    $region2: #{decoder2_forward.2} parent=1 // loop_pre_header
      _
    $region3: #{decoder2_forward.2} parent=1 // loop_header
      %s18 = sphi 0, %s22
      %p19 = scmp.ge.s32.totalorder %s18, 4
      %s28 = sphi 0, %s30
      %s31 = sphi 0, %s28
      %s32 = sphi 0, %s31
      %s48 = sphi 0, %s32
      %s52 = sphi 0, %s52
      %s54 = sphi 0, %s52
      %s55 = sphi 0, %s54
      %s69 = sphi 0, %s55
      %s73 = sphi 0, %s73
      %s75 = sphi 0, %s73
      %s76 = sphi 0, %s75
      %s90 = sphi 0, %s76
      %s94 = sphi 0, %s94
      %s96 = sphi 0, %s94
      %s97 = sphi 0, %s96
      %s111 = sphi 0, %s97
      %s115 = sphi 0, %s115
      %s117 = sphi 0, %s115
      %s118 = sphi 0, %s117
      %s132 = sphi 0, %s118
      %s136 = sphi 0, %s136
      %s138 = sphi 0, %s136
      %s139 = sphi 0, %s138
      %s153 = sphi 0, %s139
      %s157 = sphi 0, %s157
      %s159 = sphi 0, %s157
      %s160 = sphi 0, %s159
      %s174 = sphi 0, %s160
      %s178 = sphi 0, %s178
      %s180 = sphi 0, %s178
      %s181 = sphi 0, %s180
      %s195 = sphi 0, %s181
      %s201 = sphi 0, %s203
      %s204 = sphi 0, %s201
      %s205 = sphi 0, %s204
      %s221 = sphi 0, %s205
      %s227 = sphi 0, %s229
      %s230 = sphi 0, %s227
      %s231 = sphi 0, %s230
      %s247 = sphi 0, %s231
    $region4: #{decoder2_forward.2} parent=1 // loop_header_branch
      %21 = sbr.rel (%p19) target = $region8
    $region5: #{decoder2_forward.2} parent=1 // loop_body
      %s23 = ssub.s32 %s18, 1
      %s24 = ssub.s32 %s18, 2
      %s25 = sadd.s32 %s18, 1
      %s26 = ssub.s32 %s18, %s25
      %p27 = scmp.eq.s32.totalorder %s26, 0
      %s29 = sadd.s32 %s28, 1
      %s30 = scalar_select %p27, %s28, %s29
      %p33 = pneg %p27
      %p34 = scmp.eq.s32.totalorder %s18, 1
      %p35 = por %p33, %p34
      %p36 = scmp.ne.s32.totalorder %s28, %s31
      %p37 = scmp.eq.s32.totalorder %s18, 0
      %p38 = por %p36, %p37
      %p39 = scmp.ne.s32.totalorder %s28, %s31
      %p40 = scmp.eq.s32.totalorder %s23, 1
      %p41 = por %p39, %p40
      %p42 = scmp.ne.s32.totalorder %s31, %s32
      %p43 = scmp.eq.s32.totalorder %s23, 0
      %p44 = por %p42, %p43
      %p45 = scmp.ne.s32.totalorder %s31, %s32
      %p46 = scmp.eq.s32.totalorder %s24, 1
      %p47 = por %p45, %p46
      %p49 = scmp.ne.s32.totalorder %s32, %s48
      %p50 = scmp.eq.s32.totalorder %s24, 0
      %p51 = por %p49, %p50
      %s53 = sadd.s32 %s52, 1
      %p56 = scmp.eq.s32.totalorder %s18, 1
      %p57 = scmp.ne.s32.totalorder %s52, %s54
      %p58 = scmp.eq.s32.totalorder %s18, 0
      %p59 = por %p57, %p58
      %p60 = scmp.ne.s32.totalorder %s52, %s54
      %p61 = scmp.eq.s32.totalorder %s23, 1
      %p62 = por %p60, %p61
      %p63 = scmp.ne.s32.totalorder %s54, %s55
      %p64 = scmp.eq.s32.totalorder %s23, 0
      %p65 = por %p63, %p64
      %p66 = scmp.ne.s32.totalorder %s54, %s55
      %p67 = scmp.eq.s32.totalorder %s24, 1
      %p68 = por %p66, %p67
      %p70 = scmp.ne.s32.totalorder %s55, %s69
      %p71 = scmp.eq.s32.totalorder %s24, 0
      %p72 = por %p70, %p71
      %s74 = sadd.s32 %s73, 1
      %p77 = scmp.eq.s32.totalorder %s18, 1
      %p78 = scmp.ne.s32.totalorder %s73, %s75
      %p79 = scmp.eq.s32.totalorder %s18, 0
      %p80 = por %p78, %p79
      %p81 = scmp.ne.s32.totalorder %s73, %s75
      %p82 = scmp.eq.s32.totalorder %s23, 1
      %p83 = por %p81, %p82
      %p84 = scmp.ne.s32.totalorder %s75, %s76
      %p85 = scmp.eq.s32.totalorder %s23, 0
      %p86 = por %p84, %p85
      %p87 = scmp.ne.s32.totalorder %s75, %s76
      %p88 = scmp.eq.s32.totalorder %s24, 1
      %p89 = por %p87, %p88
      %p91 = scmp.ne.s32.totalorder %s76, %s90
      %p92 = scmp.eq.s32.totalorder %s24, 0
      %p93 = por %p91, %p92
      %s95 = sadd.s32 %s94, 1
      %p98 = scmp.eq.s32.totalorder %s18, 1
      %p99 = scmp.ne.s32.totalorder %s94, %s96
      %p100 = scmp.eq.s32.totalorder %s18, 0
      %p101 = por %p99, %p100
      %p102 = scmp.ne.s32.totalorder %s94, %s96
      %p103 = scmp.eq.s32.totalorder %s23, 1
      %p104 = por %p102, %p103
      %p105 = scmp.ne.s32.totalorder %s96, %s97
      %p106 = scmp.eq.s32.totalorder %s23, 0
      %p107 = por %p105, %p106
      %p108 = scmp.ne.s32.totalorder %s96, %s97
      %p109 = scmp.eq.s32.totalorder %s24, 1
      %p110 = por %p108, %p109
      %p112 = scmp.ne.s32.totalorder %s97, %s111
      %p113 = scmp.eq.s32.totalorder %s24, 0
      %p114 = por %p112, %p113
      %s116 = sadd.s32 %s115, 1
      %p119 = scmp.eq.s32.totalorder %s18, 1
      %p120 = scmp.ne.s32.totalorder %s115, %s117
      %p121 = scmp.eq.s32.totalorder %s18, 0
      %p122 = por %p120, %p121
      %p123 = scmp.ne.s32.totalorder %s115, %s117
      %p124 = scmp.eq.s32.totalorder %s23, 1
      %p125 = por %p123, %p124
      %p126 = scmp.ne.s32.totalorder %s117, %s118
      %p127 = scmp.eq.s32.totalorder %s23, 0
      %p128 = por %p126, %p127
      %p129 = scmp.ne.s32.totalorder %s117, %s118
      %p130 = scmp.eq.s32.totalorder %s24, 1
      %p131 = por %p129, %p130
      %p133 = scmp.ne.s32.totalorder %s118, %s132
      %p134 = scmp.eq.s32.totalorder %s24, 0
      %p135 = por %p133, %p134
      %s137 = sadd.s32 %s136, 1
      %p140 = scmp.eq.s32.totalorder %s18, 1
      %p141 = scmp.ne.s32.totalorder %s136, %s138
      %p142 = scmp.eq.s32.totalorder %s18, 0
      %p143 = por %p141, %p142
      %p144 = scmp.ne.s32.totalorder %s136, %s138
      %p145 = scmp.eq.s32.totalorder %s23, 1
      %p146 = por %p144, %p145
      %p147 = scmp.ne.s32.totalorder %s138, %s139
      %p148 = scmp.eq.s32.totalorder %s23, 0
      %p149 = por %p147, %p148
      %p150 = scmp.ne.s32.totalorder %s138, %s139
      %p151 = scmp.eq.s32.totalorder %s24, 1
      %p152 = por %p150, %p151
      %p154 = scmp.ne.s32.totalorder %s139, %s153
      %p155 = scmp.eq.s32.totalorder %s24, 0
      %p156 = por %p154, %p155
      %s158 = sadd.s32 %s157, 1
      %p161 = scmp.eq.s32.totalorder %s18, 1
      %p162 = scmp.ne.s32.totalorder %s157, %s159
      %p163 = scmp.eq.s32.totalorder %s18, 0
      %p164 = por %p162, %p163
      %p165 = scmp.ne.s32.totalorder %s157, %s159
      %p166 = scmp.eq.s32.totalorder %s23, 1
      %p167 = por %p165, %p166
      %p168 = scmp.ne.s32.totalorder %s159, %s160
      %p169 = scmp.eq.s32.totalorder %s23, 0
      %p170 = por %p168, %p169
      %p171 = scmp.ne.s32.totalorder %s159, %s160
      %p172 = scmp.eq.s32.totalorder %s24, 1
      %p173 = por %p171, %p172
      %p175 = scmp.ne.s32.totalorder %s160, %s174
      %p176 = scmp.eq.s32.totalorder %s24, 0
      %p177 = por %p175, %p176
      %s179 = sadd.s32 %s178, 1
      %p182 = scmp.eq.s32.totalorder %s18, 1
      %p183 = scmp.ne.s32.totalorder %s178, %s180
      %p184 = scmp.eq.s32.totalorder %s18, 0
      %p185 = por %p183, %p184
      %p186 = scmp.ne.s32.totalorder %s178, %s180
      %p187 = scmp.eq.s32.totalorder %s23, 1
      %p188 = por %p186, %p187
      %p189 = scmp.ne.s32.totalorder %s180, %s181
      %p190 = scmp.eq.s32.totalorder %s23, 0
      %p191 = por %p189, %p190
      %p192 = scmp.ne.s32.totalorder %s180, %s181
      %p193 = scmp.eq.s32.totalorder %s24, 1
      %p194 = por %p192, %p193
      %p196 = scmp.ne.s32.totalorder %s181, %s195
      %p197 = scmp.eq.s32.totalorder %s24, 0
      %p198 = por %p196, %p197
      %s199 = ssub.s32 %s18, %s25
      %p200 = scmp.eq.s32.totalorder %s199, 0
      %s202 = sadd.s32 %s201, 1
      %s203 = scalar_select %p200, %s201, %s202
      %p206 = pneg %p200
      %p207 = scmp.eq.s32.totalorder %s18, 1
      %p208 = por %p206, %p207
      %p209 = scmp.ne.s32.totalorder %s201, %s204
      %p210 = scmp.eq.s32.totalorder %s18, 0
      %p211 = por %p209, %p210
      %p212 = scmp.ne.s32.totalorder %s201, %s204
      %p213 = scmp.eq.s32.totalorder %s23, 1
      %p214 = por %p212, %p213
      %p215 = scmp.ne.s32.totalorder %s204, %s205
      %p216 = scmp.eq.s32.totalorder %s23, 0
      %p217 = por %p215, %p216
      %p218 = scmp.ne.s32.totalorder %s204, %s205
      %p219 = scmp.eq.s32.totalorder %s24, 1
      %p220 = por %p218, %p219
      %p222 = scmp.ne.s32.totalorder %s205, %s221
      %p223 = scmp.eq.s32.totalorder %s24, 0
      %p224 = por %p222, %p223
      %s225 = ssub.s32 %s18, %s25
      %p226 = scmp.eq.s32.totalorder %s225, 0
      %s228 = sadd.s32 %s227, 1
      %s229 = scalar_select %p226, %s227, %s228
      %p232 = pneg %p226
      %p233 = scmp.eq.s32.totalorder %s18, 1
      %p234 = por %p232, %p233
      %p235 = scmp.ne.s32.totalorder %s227, %s230
      %p236 = scmp.eq.s32.totalorder %s18, 0
      %p237 = por %p235, %p236
      %p238 = scmp.ne.s32.totalorder %s227, %s230
      %p239 = scmp.eq.s32.totalorder %s23, 1
      %p240 = por %p238, %p239
      %p241 = scmp.ne.s32.totalorder %s230, %s231
      %p242 = scmp.eq.s32.totalorder %s23, 0
      %p243 = por %p241, %p242
      %p244 = scmp.ne.s32.totalorder %s230, %s231
      %p245 = scmp.eq.s32.totalorder %s24, 1
      %p246 = por %p244, %p245
      %p248 = scmp.ne.s32.totalorder %s231, %s247
      %p249 = scmp.eq.s32.totalorder %s24, 0
      %p250 = por %p248, %p249
      %p251 = scmp.le.s32.totalorder 1, %s18
      %p252 = scmp.lt.s32.totalorder %s18, 3
      %p253 = pnand %p251, %p252
      %p254 = pneg %p253
      // Predicated region
      $region9: #{decoder2_forward.2} parent=5 // pred_check
        _
      $region10: #{decoder2_forward.2} parent=5 // pred_check_branch
        %256 = sbr.rel (%p253) target = $region12
      $region11: #{decoder2_forward.2} parent=5 // pred_region
        %s257 = ssub.s32 %s18, 1
        // Predicated region
        $region13: #{decoder2_forward.2} parent=11 // pred_check
          %p258 = pneg %p65
        $region14: #{decoder2_forward.2} parent=11 // pred_check_branch
          %260 = sbr.rel (%p258) target = $region16
        $region15: #{decoder2_forward.2} parent=11 // pred_region
          %s262 = ssub.s32 1024, 1024
          %263 = vsyncadd [#allocation3], %s262
          %s264 = sshll.u32 [#allocation2], 4
          %s265 = int_to_ptr.vmem [resolvable:$true] %s264
          %270 = dma.hbm_to_vmem [thread:$0]  %s1, 1024, %s265, [#allocation3], 64, 64, 4
        $region16: #{decoder2_forward.2} parent=11 // pred_fallthru
          _
        // Predicated region
        $region17: #{decoder2_forward.2} parent=11 // pred_check
          %p271 = pneg %p86
        $region18: #{decoder2_forward.2} parent=11 // pred_check_branch
          %273 = sbr.rel (%p271) target = $region20
        $region19: #{decoder2_forward.2} parent=11 // pred_region
          _
        $region20: #{decoder2_forward.2} parent=11 // pred_fallthru
          _
        // Predicated region
        $region21: #{decoder2_forward.2} parent=11 // pred_check
          %p274 = pneg %p107
        $region22: #{decoder2_forward.2} parent=11 // pred_check_branch
          %276 = sbr.rel (%p274) target = $region24
        $region23: #{decoder2_forward.2} parent=11 // pred_region
          _
        $region24: #{decoder2_forward.2} parent=11 // pred_fallthru
          _
        // Predicated region
        $region25: #{decoder2_forward.2} parent=11 // pred_check
          %p277 = pneg %p128
        $region26: #{decoder2_forward.2} parent=11 // pred_check_branch
          %279 = sbr.rel (%p277) target = $region28
        $region27: #{decoder2_forward.2} parent=11 // pred_region
          _
        $region28: #{decoder2_forward.2} parent=11 // pred_fallthru
          _
        // Predicated region
        $region29: #{decoder2_forward.2} parent=11 // pred_check
          %p280 = pneg %p149
        $region30: #{decoder2_forward.2} parent=11 // pred_check_branch
          %282 = sbr.rel (%p280) target = $region32
        $region31: #{decoder2_forward.2} parent=11 // pred_region
          _
        $region32: #{decoder2_forward.2} parent=11 // pred_fallthru
          _
        // Predicated region
        $region33: #{decoder2_forward.2} parent=11 // pred_check
          %p283 = pneg %p170
        $region34: #{decoder2_forward.2} parent=11 // pred_check_branch
          %285 = sbr.rel (%p283) target = $region36
        $region35: #{decoder2_forward.2} parent=11 // pred_region
          %s287 = ssub.s32 1024, 1024
          %288 = vsyncadd [#allocation5], %s287
          %s289 = sshll.u32 [#allocation4], 4
          %s290 = int_to_ptr.vmem [resolvable:$true] %s289
          %295 = dma.hbm_to_vmem [thread:$0]  %s6, 1024, %s290, [#allocation5], 64, 64, 4
        $region36: #{decoder2_forward.2} parent=11 // pred_fallthru
          _
        // Predicated region
        $region37: #{decoder2_forward.2} parent=11 // pred_check
          %p296 = pneg %p191
        $region38: #{decoder2_forward.2} parent=11 // pred_check_branch
          %298 = sbr.rel (%p296) target = $region40
        $region39: #{decoder2_forward.2} parent=11 // pred_region
          _
        $region40: #{decoder2_forward.2} parent=11 // pred_fallthru
          _
      $region12: #{decoder2_forward.2} parent=5 // pred_fallthru
        _
      %p299 = scmp.lt.s32.totalorder %s18, 2
      // Predicated region
      $region41: #{decoder2_forward.2} parent=5 // pred_check
        %p300 = pneg %p299
      $region42: #{decoder2_forward.2} parent=5 // pred_check_branch
        %302 = sbr.rel (%p300) target = $region44
      $region43: #{decoder2_forward.2} parent=5 // pred_region
        // Predicated region
        $region45: #{decoder2_forward.2} parent=43 // pred_check
          %p303 = pneg %p38
        $region46: #{decoder2_forward.2} parent=43 // pred_check_branch
          %305 = sbr.rel (%p303) target = $region48
        $region47: #{decoder2_forward.2} parent=43 // pred_region
          %p306 = scmp.lt.s32.totalorder %s18, 1
          %s307 = scalar_select %p306, %s18, 1
          %s308 = smul.addr %s307, 8
          %s309 = smul.addr %s308, 4
          %s310 = scalar_lea.vmem %s0, %s309
        $region48: #{decoder2_forward.2} parent=43 // pred_fallthru
          _
      $region44: #{decoder2_forward.2} parent=5 // pred_fallthru
        _
      %p311 = scmp.le.s32.totalorder 1, %s18
      %p312 = scmp.lt.s32.totalorder %s18, 3
      %p313 = pnand %p311, %p312
      %p314 = pneg %p313
      // Predicated region
      $region49: #{decoder2_forward.2} parent=5 // pred_check
        _
      $region50: #{decoder2_forward.2} parent=5 // pred_check_branch
        %316 = sbr.rel (%p313) target = $region52
      $region51: #{decoder2_forward.2} parent=5 // pred_region
        %s317 = ssub.s32 %s18, 1
        // Predicated region
        $region53: #{decoder2_forward.2} parent=51 // pred_check
          %p318 = pneg %p65
        $region54: #{decoder2_forward.2} parent=51 // pred_check_branch
          %320 = sbr.rel (%p318) target = $region56
        $region55: #{decoder2_forward.2} parent=51 // pred_region
          %321 = dma.done [#allocation3], 1024
        $region56: #{decoder2_forward.2} parent=51 // pred_fallthru
          _
        // Predicated region
        $region57: #{decoder2_forward.2} parent=51 // pred_check
          %p322 = pneg %p170
        $region58: #{decoder2_forward.2} parent=51 // pred_check_branch
          %324 = sbr.rel (%p322) target = $region60
        $region59: #{decoder2_forward.2} parent=51 // pred_region
          %325 = dma.done [#allocation5], 1024
        $region60: #{decoder2_forward.2} parent=51 // pred_fallthru
          _
        %p326 = scmp.lt.s32.totalorder %s23, 1
        %s327 = scalar_select %p326, %s23, 1
        %s328 = smul.addr %s327, 8
        %s329 = smul.addr %s328, 4
        %s330 = scalar_lea.vmem %s0, %s329
        %p331 = pneg %p44
        %p332 = pneg %p41
        %p333 = pneg %p65
        %p334 = pneg %p62
        %p335 = pneg %p86
        %p336 = pneg %p83
        %p337 = pneg %p107
        %p338 = pneg %p104
        %p339 = pneg %p128
        %p340 = pneg %p125
        %p341 = pneg %p149
        %p342 = pneg %p146
        %p343 = pneg %p170
        %p344 = pneg %p167
        %p345 = pneg %p191
        %p346 = pneg %p188
        %p347 = pneg %p217
        %p348 = pneg %p214
        %p349 = scmp.lt.s32.totalorder %s23, 1
        %s350 = scalar_select %p349, %s23, 1
        %s351 = smul.addr %s350, 32
        %s352 = smul.addr %s351, 4
        %s353 = scalar_lea.vmem %s8, %s352
        %p354 = pneg %p243
        %p355 = pneg %p240
        %p356 = scmp.lt.s32.totalorder %s23, 1
        %s357 = scalar_select %p356, %s23, 1
        %s358 = scalar_lea.vmem %s9, %s357
        %p359 = scmp.lt.s32.totalorder %s23, 1
        %s360 = scalar_select %p359, %s23, 1
        %s361 = smul.addr %s360, 8
        %s362 = smul.addr %s361, 4
        %s363 = scalar_lea.vmem %s0, %s362
        %p364 = scmp.lt.s32.totalorder %s23, 1
        %s365 = scalar_select %p364, %s23, 1
        %s366 = smul.addr %s365, 32
        %s367 = smul.addr %s366, 4
        %s368 = scalar_lea.vmem %s8, %s367
        %p369 = scmp.lt.s32.totalorder %s23, 1
        %s370 = scalar_select %p369, %s23, 1
        %s371 = scalar_lea.vmem %s9, %s370
        %v373 = vld [vmem:[%s363] sm:$0xf]
        %v374 = vld [vmem:[%s363 + $0x4] sm:$0xf]
        %v375 = vld [vmem:[%s363 + $0x8] sm:$0xf]
        %v376 = vld [vmem:[%s363 + $0xc] sm:$0xf]
        %v377 = vld [vmem:[%s363 + $0x10] sm:$0xf]
        %v378 = vld [vmem:[%s363 + $0x14] sm:$0xf]
        %v379 = vld [vmem:[%s363 + $0x18] sm:$0xf]
        %v380 = vld [vmem:[%s363 + $0x1c] sm:$0xf]
        %v381 = vld [vmem:[#allocation2] sm:$0xf]
        %v382 = vld [vmem:[#allocation2 + $0x4] sm:$0xf]
        %v383 = vld [vmem:[#allocation2 + $0x8] sm:$0xf]
        %v384 = vld [vmem:[#allocation2 + $0xc] sm:$0xf]
        %v385 = vld [vmem:[#allocation2 + $0x10] sm:$0xf]
        %v386 = vld [vmem:[#allocation2 + $0x14] sm:$0xf]
        %v387 = vld [vmem:[#allocation2 + $0x18] sm:$0xf]
        %v388 = vld [vmem:[#allocation2 + $0x1c] sm:$0xf]
        %v389 = vld [vmem:[#allocation2 + $0x20] sm:$0xf]
        %v390 = vld [vmem:[#allocation2 + $0x24] sm:$0xf]
        %v391 = vld [vmem:[#allocation2 + $0x28] sm:$0xf]
        %v392 = vld [vmem:[#allocation2 + $0x2c] sm:$0xf]
        %v393 = vld [vmem:[#allocation2 + $0x30] sm:$0xf]
        %v394 = vld [vmem:[#allocation2 + $0x34] sm:$0xf]
        %v395 = vld [vmem:[#allocation2 + $0x38] sm:$0xf]
        %v396 = vld [vmem:[#allocation2 + $0x3c] sm:$0xf]
        %v397 = vld [vmem:[%s2] sm:$0x1]
        %v399 = vlaneseq
        %v400 = vshrl.u32 %v399, 7
        %v401 = vsub.s32 0, %v400
        %v402 = vrot.slane %v397, %v401
        %v412 = vunpack.c.l.b16 %v373
        %v413 = vunpack.c.l.b16 %v374
        %v414 = vunpack.c.l.b16 %v375
        %v415 = vunpack.c.l.b16 %v376
        %v416 = vunpack.c.l.b16 %v377
        %v417 = vunpack.c.l.b16 %v378
        %v418 = vunpack.c.l.b16 %v379
        %v419 = vunpack.c.l.b16 %v380
        %v420 = vpack.c.b16 %v413, %v412
        %v421 = vpack.c.b16 %v415, %v414
        %v422 = vpack.c.b16 %v417, %v416
        %v423 = vpack.c.b16 %v419, %v418
        %v444 = vunpack.c.l.b16 %v381
        %v445 = vunpack.c.l.b16 %v382
        %v446 = vunpack.c.l.b16 %v383
        %v447 = vunpack.c.l.b16 %v384
        %v448 = vunpack.c.l.b16 %v385
        %v449 = vunpack.c.l.b16 %v386
        %v450 = vunpack.c.l.b16 %v387
        %v451 = vunpack.c.l.b16 %v388
        %v452 = vunpack.c.l.b16 %v389
        %v453 = vunpack.c.l.b16 %v390
        %v454 = vunpack.c.l.b16 %v391
        %v455 = vunpack.c.l.b16 %v392
        %v456 = vunpack.c.l.b16 %v393
        %v457 = vunpack.c.l.b16 %v394
        %v458 = vunpack.c.l.b16 %v395
        %v459 = vunpack.c.l.b16 %v396
        %v460 = vpack.c.b16 %v445, %v444
        %v461 = vpack.c.b16 %v447, %v446
        %v462 = vpack.c.b16 %v449, %v448
        %v463 = vpack.c.b16 %v451, %v450
        %v464 = vpack.c.b16 %v453, %v452
        %v465 = vpack.c.b16 %v455, %v454
        %v466 = vpack.c.b16 %v457, %v456
        %v467 = vpack.c.b16 %v459, %v458
        %476 = vmatprep.subr.bf16.mxu0 0
        %477 = vmatpush1.bf16.msra.mxu0 %v460
        %478 = vmatprep.subr.bf16.mxu0 0
        %479 = vmatpush1.bf16.msra.mxu0 %v461
        %480 = vmatprep.subr.bf16.mxu0 0
        %481 = vmatpush1.bf16.msra.mxu0 %v462
        %482 = vmatprep.subr.bf16.mxu0 0
        %483 = vmatpush1.bf16.msra.mxu0 %v463
        %484 = vmatprep.subr.bf16.mxu0 0
        %485 = vmatpush1.bf16.msra.mxu0 %v464
        %486 = vmatprep.subr.bf16.mxu0 0
        %487 = vmatpush1.bf16.msra.mxu0 %v465
        %488 = vmatprep.subr.bf16.mxu0 0
        %489 = vmatpush1.bf16.msra.mxu0 %v466
        %490 = vmatprep.subr.bf16.mxu0 0
        %491 = vmatpush1.bf16.msra.mxu0 %v467
        %492 = vmatprep.subr.bf16.mxu0 0
        %493 = vmatpush1.bf16.msra.mxu0 0
        %494 = vmatprep.subr.bf16.mxu0 0
        %495 = vmatpush1.bf16.msra.mxu0 0
        %496 = vmatprep.subr.bf16.mxu0 0
        %497 = vmatpush1.bf16.msra.mxu0 0
        %498 = vmatprep.subr.bf16.mxu0 0
        %499 = vmatpush1.bf16.msra.mxu0 0
        %500 = vmatprep.subr.bf16.mxu0 0
        %501 = vmatpush1.bf16.msra.mxu0 0
        %502 = vmatprep.subr.bf16.mxu0 0
        %503 = vmatpush1.bf16.msra.mxu0 0
        %504 = vmatprep.subr.bf16.mxu0 0
        %505 = vmatpush1.bf16.msra.mxu0 0
        %506 = vmatprep.subr.bf16.mxu0 0
        %507 = vmatpush1.bf16.msra.mxu0 0
        %508 = vmatprep.mubr.bf16.mxu0 0
        %509 = vmatmul.mubr.bf16.gmra.mrb[0].mxu0 %v420
        %v510 = vpop.f32.mrb[0].mxu0
        %v511 = vadd.f32 %v402, %v510
        %v512 = vpop.f32.mrb[0].mxu0
        %v513 = vpop.f32.mrb[0].mxu0
        %v514 = vadd.f32 %v402, %v513
        %v515 = vpop.f32.mrb[0].mxu0
        %516 = vmatprep.mubr.bf16.mxu0 0
        %517 = vmatmul.mubr.bf16.gmra.mrb[0].mxu0 %v421
        %v518 = vpop.f32.mrb[0].mxu0
        %v519 = vadd.f32 %v402, %v518
        %v520 = vpop.f32.mrb[0].mxu0
        %v521 = vpop.f32.mrb[0].mxu0
        %v522 = vadd.f32 %v402, %v521
        %v523 = vpop.f32.mrb[0].mxu0
        %524 = vmatprep.mubr.bf16.mxu0 0
        %525 = vmatmul.mubr.bf16.gmra.mrb[0].mxu0 %v422
        %v526 = vpop.f32.mrb[0].mxu0
        %v527 = vadd.f32 %v402, %v526
        %v528 = vpop.f32.mrb[0].mxu0
        %v529 = vpop.f32.mrb[0].mxu0
        %v530 = vadd.f32 %v402, %v529
        %v531 = vpop.f32.mrb[0].mxu0
        %532 = vmatprep.mubr.bf16.mxu0 0
        %533 = vmatmul.mubr.bf16.gmra.mrb[0].mxu0 %v423
        %v534 = vpop.f32.mrb[0].mxu0
        %v535 = vadd.f32 %v402, %v534
        %v536 = vpop.f32.mrb[0].mxu0
        %v537 = vpop.f32.mrb[0].mxu0
        %v538 = vadd.f32 %v402, %v537
        %v539 = vpop.f32.mrb[0].mxu0
        %540 = vdwg.mxu0
        %v541 = vmax.f32 %v511, 0.0
        %v542 = vmax.f32 %v514, 0.0
        %v543 = vmax.f32 %v519, 0.0
        %v544 = vmax.f32 %v522, 0.0
        %v545 = vmax.f32 %v527, 0.0
        %v546 = vmax.f32 %v530, 0.0
        %v547 = vmax.f32 %v535, 0.0
        %v548 = vmax.f32 %v538, 0.0
        %v549 = vlaneseq
        %v550 = vshrl.u32 %v549, 7
        %v551 = vadd.s32 %v550, 8
        %v552 = vadd.s32 %v550, 16
        %v553 = vadd.s32 %v550, 24
        %v554 = vadd.s32 %v550, 32
        %v555 = vadd.s32 %v550, 40
        %v556 = vadd.s32 %v550, 48
        %v557 = vadd.s32 %v550, 56
        %vm558 = vcmp.lt.s32.totalorder %v550, 0
        %v559 = vsub.s32 0, %v550
        %v560 = vsel %vm558, %v559, %v550
        %v561 = vshrl.u32 %v560, 3
        %v562 = vand.u32 %v560, 7
        %v563 = vsub.s32 0, %v562
        %v564 = vsel %vm558, %v563, %v562
        %vm565 = vcmp.lt.s32.totalorder %v551, 0
        %v566 = vsub.s32 0, %v551
        %v567 = vsel %vm565, %v566, %v551
        %v568 = vshrl.u32 %v567, 3
        %v569 = vand.u32 %v567, 7
        %v570 = vsub.s32 0, %v569
        %v571 = vsel %vm565, %v570, %v569
        %vm572 = vcmp.lt.s32.totalorder %v552, 0
        %v573 = vsub.s32 0, %v552
        %v574 = vsel %vm572, %v573, %v552
        %v575 = vshrl.u32 %v574, 3
        %v576 = vand.u32 %v574, 7
        %v577 = vsub.s32 0, %v576
        %v578 = vsel %vm572, %v577, %v576
        %vm579 = vcmp.lt.s32.totalorder %v553, 0
        %v580 = vsub.s32 0, %v553
        %v581 = vsel %vm579, %v580, %v553
        %v582 = vshrl.u32 %v581, 3
        %v583 = vand.u32 %v581, 7
        %v584 = vsub.s32 0, %v583
        %v585 = vsel %vm579, %v584, %v583
        %vm586 = vcmp.lt.s32.totalorder %v554, 0
        %v587 = vsub.s32 0, %v554
        %v588 = vsel %vm586, %v587, %v554
        %v589 = vshrl.u32 %v588, 3
        %v590 = vand.u32 %v588, 7
        %v591 = vsub.s32 0, %v590
        %v592 = vsel %vm586, %v591, %v590
        %vm593 = vcmp.lt.s32.totalorder %v555, 0
        %v594 = vsub.s32 0, %v555
        %v595 = vsel %vm593, %v594, %v555
        %v596 = vshrl.u32 %v595, 3
        %v597 = vand.u32 %v595, 7
        %v598 = vsub.s32 0, %v597
        %v599 = vsel %vm593, %v598, %v597
        %vm600 = vcmp.lt.s32.totalorder %v556, 0
        %v601 = vsub.s32 0, %v556
        %v602 = vsel %vm600, %v601, %v556
        %v603 = vshrl.u32 %v602, 3
        %v604 = vand.u32 %v602, 7
        %v605 = vsub.s32 0, %v604
        %v606 = vsel %vm600, %v605, %v604
        %vm607 = vcmp.lt.s32.totalorder %v557, 0
        %v608 = vsub.s32 0, %v557
        %v609 = vsel %vm607, %v608, %v557
        %v610 = vshrl.u32 %v609, 3
        %v611 = vand.u32 %v609, 7
        %v612 = vsub.s32 0, %v611
        %v613 = vsel %vm607, %v612, %v611
        %vm614 = vcmp.ne.s32.totalorder %v564, 0
        %vm615 = vcmp.ne.s32.totalorder %v571, 0
        %vm616 = vcmp.ne.s32.totalorder %v578, 0
        %vm617 = vcmp.ne.s32.totalorder %v585, 0
        %vm618 = vcmp.ne.s32.totalorder %v592, 0
        %vm619 = vcmp.ne.s32.totalorder %v599, 0
        %vm620 = vcmp.ne.s32.totalorder %v606, 0
        %vm621 = vcmp.ne.s32.totalorder %v613, 0
        %vm622 = vcmp.lt.s32.totalorder %v564, 0
        %vm623 = vcmp.lt.s32.totalorder %v571, 0
        %vm624 = vcmp.lt.s32.totalorder %v578, 0
        %vm625 = vcmp.lt.s32.totalorder %v585, 0
        %vm626 = vcmp.lt.s32.totalorder %v592, 0
        %vm627 = vcmp.lt.s32.totalorder %v599, 0
        %vm628 = vcmp.lt.s32.totalorder %v606, 0
        %vm629 = vcmp.lt.s32.totalorder %v613, 0
        %vm630 = vmand %vm622, %vm614
        %vm631 = vmand %vm623, %vm615
        %vm632 = vmand %vm624, %vm616
        %vm633 = vmand %vm625, %vm617
        %vm634 = vmand %vm626, %vm618
        %vm635 = vmand %vm627, %vm619
        %vm636 = vmand %vm628, %vm620
        %vm637 = vmand %vm629, %vm621
        %v638 = vadd.s32 %v564, 8
        %v639 = vadd.s32 %v571, 8
        %v640 = vadd.s32 %v578, 8
        %v641 = vadd.s32 %v585, 8
        %v642 = vadd.s32 %v592, 8
        %v643 = vadd.s32 %v599, 8
        %v644 = vadd.s32 %v606, 8
        %v645 = vadd.s32 %v613, 8
        %v646 = vsel %vm630, %v638, %v564
        %v647 = vsel %vm631, %v639, %v571
        %v648 = vsel %vm632, %v640, %v578
        %v649 = vsel %vm633, %v641, %v585
        %v650 = vsel %vm634, %v642, %v592
        %v651 = vsel %vm635, %v643, %v599
        %v652 = vsel %vm636, %v644, %v606
        %v653 = vsel %vm637, %v645, %v613
        %vm654 = vcmp.ne.s32.totalorder %v646, 7
        %vm655 = vcmp.ne.s32.totalorder %v647, 7
        %vm656 = vcmp.ne.s32.totalorder %v648, 7
        %vm657 = vcmp.ne.s32.totalorder %v649, 7
        %vm658 = vcmp.ne.s32.totalorder %v650, 7
        %vm659 = vcmp.ne.s32.totalorder %v651, 7
        %vm660 = vcmp.ne.s32.totalorder %v652, 7
        %vm661 = vcmp.ne.s32.totalorder %v653, 7
        %vm670 = vcmask 1046528
        %v671 = vrot.slane %v541, 1
        %v672 = vrot.slane %v542, 1
        %v673 = vsel %vm670, %v671, %v672
        %v674 = vrot.slane %v543, 1
        %v675 = vsel %vm670, %v672, %v674
        %v676 = vrot.slane %v544, 1
        %v677 = vsel %vm670, %v674, %v676
        %v678 = vrot.slane %v545, 1
        %v679 = vsel %vm670, %v676, %v678
        %v680 = vrot.slane %v546, 1
        %v681 = vsel %vm670, %v678, %v680
        %v682 = vrot.slane %v547, 1
        %v683 = vsel %vm670, %v680, %v682
        %v684 = vrot.slane %v548, 1
        %v685 = vsel %vm670, %v682, %v684
        %v694 = vsel %vm670, %v684, 0.0
        %v695 = vsel %vm654, 1, 0
        %v696 = vsel %vm655, 1, 0
        %v697 = vsel %vm656, 1, 0
        %v698 = vsel %vm657, 1, 0
        %v699 = vsel %vm658, 1, 0
        %v700 = vsel %vm659, 1, 0
        %v701 = vsel %vm660, 1, 0
        %v702 = vsel %vm661, 1, 0
        %vm703 = vcmp.eq.s32.totalorder %v695, 1
        %vm704 = vcmp.eq.s32.totalorder %v696, 1
        %vm705 = vcmp.eq.s32.totalorder %v697, 1
        %vm706 = vcmp.eq.s32.totalorder %v698, 1
        %vm707 = vcmp.eq.s32.totalorder %v699, 1
        %vm708 = vcmp.eq.s32.totalorder %v700, 1
        %vm709 = vcmp.eq.s32.totalorder %v701, 1
        %vm710 = vcmp.eq.s32.totalorder %v702, 1
        %v711 = vsel %vm703, %v673, 0.0
        %v712 = vsel %vm704, %v675, 0.0
        %v713 = vsel %vm705, %v677, 0.0
        %v714 = vsel %vm706, %v679, 0.0
        %v715 = vsel %vm707, %v681, 0.0
        %v716 = vsel %vm708, %v683, 0.0
        %v717 = vsel %vm709, %v685, 0.0
        %v718 = vsel %vm710, %v694, 0.0
        %v720 = vrot.slane 0.0, 1
        %v721 = vsel %vm670, %v684, %v720
        %v724 = vsel %vm670, %v720, 0.0
        %v725 = vsel %vm703, %v675, 0.0
        %v726 = vsel %vm704, %v677, 0.0
        %v727 = vsel %vm705, %v679, 0.0
        %v728 = vsel %vm706, %v681, 0.0
        %v729 = vsel %vm707, %v683, 0.0
        %v730 = vsel %vm708, %v685, 0.0
        %v731 = vsel %vm709, %v721, 0.0
        %v732 = vsel %vm710, %v724, 0.0
        %v733 = vpack.c.bf16 %v542, %v541
        %v734 = vpack.c.bf16 %v544, %v543
        %v735 = vpack.c.bf16 %v546, %v545
        %v736 = vpack.c.bf16 %v548, %v547
        %v737 = vpack.c.bf16 %v712, %v711
        %v738 = vpack.c.bf16 %v714, %v713
        %v739 = vpack.c.bf16 %v716, %v715
        %v740 = vpack.c.bf16 %v718, %v717
        %v741 = vpack.c.bf16 %v543, %v542
        %v742 = vpack.c.bf16 %v545, %v544
        %v743 = vpack.c.bf16 %v547, %v546
        %v744 = vpack.c.bf16 0.0, %v548
        %v745 = vpack.c.bf16 %v726, %v725
        %v746 = vpack.c.bf16 %v728, %v727
        %v747 = vpack.c.bf16 %v730, %v729
        %v748 = vpack.c.bf16 %v732, %v731
        %v749 = vld [vmem:[%s3] sm:$0xff]
        %v750 = vld [vmem:[%s3 + $0x8] sm:$0xff]
        %v751 = vld [vmem:[%s3 + $0x10] sm:$0xff]
        %v752 = vld [vmem:[%s3 + $0x18] sm:$0xff]
        %v753 = vld [vmem:[%s3 + $0x20] sm:$0xff]
        %v754 = vld [vmem:[%s3 + $0x28] sm:$0xff]
        %v755 = vld [vmem:[%s3 + $0x30] sm:$0xff]
        %v756 = vld [vmem:[%s3 + $0x38] sm:$0xff]
        %v757 = vld [vmem:[%s3 + $0x40] sm:$0xff]
        %v758 = vld [vmem:[%s3 + $0x48] sm:$0xff]
        %v759 = vld [vmem:[%s3 + $0x50] sm:$0xff]
        %v760 = vld [vmem:[%s3 + $0x58] sm:$0xff]
        %v761 = vld [vmem:[%s3 + $0x60] sm:$0xff]
        %v762 = vld [vmem:[%s3 + $0x68] sm:$0xff]
        %v763 = vld [vmem:[%s3 + $0x70] sm:$0xff]
        %v764 = vld [vmem:[%s3 + $0x78] sm:$0xff]
        %v765 = vld [vmem:[%s3 + $0x80] sm:$0xff]
        %v766 = vld [vmem:[%s3 + $0x88] sm:$0xff]
        %v767 = vld [vmem:[%s3 + $0x90] sm:$0xff]
        %v768 = vld [vmem:[%s3 + $0x98] sm:$0xff]
        %v769 = vld [vmem:[%s3 + $0xa0] sm:$0xff]
        %v770 = vld [vmem:[%s3 + $0xa8] sm:$0xff]
        %v771 = vld [vmem:[%s3 + $0xb0] sm:$0xff]
        %v772 = vld [vmem:[%s3 + $0xb8] sm:$0xff]
        %v773 = vld [vmem:[%s3 + $0xc0] sm:$0xff]
        %v774 = vld [vmem:[%s3 + $0xc8] sm:$0xff]
        %v775 = vld [vmem:[%s3 + $0xd0] sm:$0xff]
        %v776 = vld [vmem:[%s3 + $0xd8] sm:$0xff]
        %v777 = vld [vmem:[%s3 + $0xe0] sm:$0xff]
        %v778 = vld [vmem:[%s3 + $0xe8] sm:$0xff]
        %v779 = vld [vmem:[%s3 + $0xf0] sm:$0xff]
        %v780 = vld [vmem:[%s3 + $0xf8] sm:$0xff]
        %v813 = vunpack.c.l.b16 %v749
        %v814 = vunpack.c.h.b16 %v749
        %v815 = vunpack.c.l.b16 %v750
        %v816 = vunpack.c.h.b16 %v750
        %v817 = vunpack.c.l.b16 %v751
        %v818 = vunpack.c.h.b16 %v751
        %v819 = vunpack.c.l.b16 %v752
        %v820 = vunpack.c.h.b16 %v752
        %v821 = vunpack.c.l.b16 %v753
        %v822 = vunpack.c.h.b16 %v753
        %v823 = vunpack.c.l.b16 %v754
        %v824 = vunpack.c.h.b16 %v754
        %v825 = vunpack.c.l.b16 %v755
        %v826 = vunpack.c.h.b16 %v755
        %v827 = vunpack.c.l.b16 %v756
        %v828 = vunpack.c.h.b16 %v756
        %v829 = vunpack.c.l.b16 %v757
        %v830 = vunpack.c.h.b16 %v757
        %v831 = vunpack.c.l.b16 %v758
        %v832 = vunpack.c.h.b16 %v758
        %v833 = vunpack.c.l.b16 %v759
        %v834 = vunpack.c.h.b16 %v759
        %v835 = vunpack.c.l.b16 %v760
        %v836 = vunpack.c.h.b16 %v760
        %v837 = vunpack.c.l.b16 %v761
        %v838 = vunpack.c.h.b16 %v761
        %v839 = vunpack.c.l.b16 %v762
        %v840 = vunpack.c.h.b16 %v762
        %v841 = vunpack.c.l.b16 %v763
        %v842 = vunpack.c.h.b16 %v763
        %v843 = vunpack.c.l.b16 %v764
        %v844 = vunpack.c.h.b16 %v764
        %v845 = vunpack.c.l.b16 %v765
        %v846 = vunpack.c.h.b16 %v765
        %v847 = vunpack.c.l.b16 %v766
        %v848 = vunpack.c.h.b16 %v766
        %v849 = vunpack.c.l.b16 %v767
        %v850 = vunpack.c.h.b16 %v767
        %v851 = vunpack.c.l.b16 %v768
        %v852 = vunpack.c.h.b16 %v768
        %v853 = vunpack.c.l.b16 %v769
        %v854 = vunpack.c.h.b16 %v769
        %v855 = vunpack.c.l.b16 %v770
        %v856 = vunpack.c.h.b16 %v770
        %v857 = vunpack.c.l.b16 %v771
        %v858 = vunpack.c.h.b16 %v771
        %v859 = vunpack.c.l.b16 %v772
        %v860 = vunpack.c.h.b16 %v772
        %v861 = vunpack.c.l.b16 %v773
        %v862 = vunpack.c.h.b16 %v773
        %v863 = vunpack.c.l.b16 %v774
        %v864 = vunpack.c.h.b16 %v774
        %v865 = vunpack.c.l.b16 %v775
        %v866 = vunpack.c.h.b16 %v775
        %v867 = vunpack.c.l.b16 %v776
        %v868 = vunpack.c.h.b16 %v776
        %v869 = vunpack.c.l.b16 %v777
        %v870 = vunpack.c.h.b16 %v777
        %v871 = vunpack.c.l.b16 %v778
        %v872 = vunpack.c.h.b16 %v778
        %v873 = vunpack.c.l.b16 %v779
        %v874 = vunpack.c.h.b16 %v779
        %v875 = vunpack.c.l.b16 %v780
        %v876 = vunpack.c.h.b16 %v780
        %v877 = vpack.c.b16 %v817, %v813
        %v878 = vpack.c.b16 %v818, %v814
        %v879 = vpack.c.b16 %v819, %v815
        %v880 = vpack.c.b16 %v820, %v816
        %v881 = vpack.c.b16 %v825, %v821
        %v882 = vpack.c.b16 %v826, %v822
        %v883 = vpack.c.b16 %v827, %v823
        %v884 = vpack.c.b16 %v828, %v824
        %v885 = vpack.c.b16 %v833, %v829
        %v886 = vpack.c.b16 %v834, %v830
        %v887 = vpack.c.b16 %v835, %v831
        %v888 = vpack.c.b16 %v836, %v832
        %v889 = vpack.c.b16 %v841, %v837
        %v890 = vpack.c.b16 %v842, %v838
        %v891 = vpack.c.b16 %v843, %v839
        %v892 = vpack.c.b16 %v844, %v840
        %v893 = vpack.c.b16 %v849, %v845
        %v894 = vpack.c.b16 %v850, %v846
        %v895 = vpack.c.b16 %v851, %v847
        %v896 = vpack.c.b16 %v852, %v848
        %v897 = vpack.c.b16 %v857, %v853
        %v898 = vpack.c.b16 %v858, %v854
        %v899 = vpack.c.b16 %v859, %v855
        %v900 = vpack.c.b16 %v860, %v856
        %v901 = vpack.c.b16 %v865, %v861
        %v902 = vpack.c.b16 %v866, %v862
        %v903 = vpack.c.b16 %v867, %v863
        %v904 = vpack.c.b16 %v868, %v864
        %v905 = vpack.c.b16 %v873, %v869
        %v906 = vpack.c.b16 %v874, %v870
        %v907 = vpack.c.b16 %v875, %v871
        %v908 = vpack.c.b16 %v876, %v872
        %941 = vmatprep.subr.bf16.mxu0 %v878
        %942 = vmatpush1.bf16.msra.mxu0 %v877
        %943 = vmatprep.subr.bf16.mxu0 %v882
        %944 = vmatpush1.bf16.msra.mxu0 %v881
        %945 = vmatprep.subr.bf16.mxu0 %v886
        %946 = vmatpush1.bf16.msra.mxu0 %v885
        %947 = vmatprep.subr.bf16.mxu0 %v890
        %948 = vmatpush1.bf16.msra.mxu0 %v889
        %949 = vmatprep.subr.bf16.mxu0 %v894
        %950 = vmatpush1.bf16.msra.mxu0 %v893
        %951 = vmatprep.subr.bf16.mxu0 %v898
        %952 = vmatpush1.bf16.msra.mxu0 %v897
        %953 = vmatprep.subr.bf16.mxu0 %v902
        %954 = vmatpush1.bf16.msra.mxu0 %v901
        %955 = vmatprep.subr.bf16.mxu0 %v906
        %956 = vmatpush1.bf16.msra.mxu0 %v905
        %957 = vmatprep.subr.bf16.mxu0 0
        %958 = vmatpush1.bf16.msra.mxu0 0
        %959 = vmatprep.subr.bf16.mxu0 0
        %960 = vmatpush1.bf16.msra.mxu0 0
        %961 = vmatprep.subr.bf16.mxu0 0
        %962 = vmatpush1.bf16.msra.mxu0 0
        %963 = vmatprep.subr.bf16.mxu0 0
        %964 = vmatpush1.bf16.msra.mxu0 0
        %965 = vmatprep.subr.bf16.mxu0 0
        %966 = vmatpush1.bf16.msra.mxu0 0
        %967 = vmatprep.subr.bf16.mxu0 0
        %968 = vmatpush1.bf16.msra.mxu0 0
        %969 = vmatprep.subr.bf16.mxu0 0
        %970 = vmatpush1.bf16.msra.mxu0 0
        %971 = vmatprep.subr.bf16.mxu0 0
        %972 = vmatpush1.bf16.msra.mxu0 0
        %973 = vmatprep.mubr.bf16.mxu0 0
        %974 = vmatmul.mubr.bf16.gmra.mrb[0].mxu0 %v733
        %v975 = vpop.f32.mrb[0].mxu0
        %v976 = vadd.f32 0.0, %v975
        %v977 = vpop.f32.mrb[0].mxu0
        %v978 = vadd.f32 0.0, %v977
        %v979 = vpop.f32.mrb[0].mxu0
        %v980 = vadd.f32 0.0, %v979
        %v981 = vpop.f32.mrb[0].mxu0
        %v982 = vadd.f32 0.0, %v981
        %983 = vmatprep.mubr.bf16.mxu0 0
        %984 = vmatmul.mubr.bf16.gmra.mrb[0].mxu0 %v734
        %v985 = vpop.f32.mrb[0].mxu0
        %v986 = vadd.f32 0.0, %v985
        %v987 = vpop.f32.mrb[0].mxu0
        %v988 = vadd.f32 0.0, %v987
        %v989 = vpop.f32.mrb[0].mxu0
        %v990 = vadd.f32 0.0, %v989
        %v991 = vpop.f32.mrb[0].mxu0
        %v992 = vadd.f32 0.0, %v991
        %993 = vmatprep.mubr.bf16.mxu0 0
        %994 = vmatmul.mubr.bf16.gmra.mrb[0].mxu0 %v735
        %v995 = vpop.f32.mrb[0].mxu0
        %v996 = vadd.f32 0.0, %v995
        %v997 = vpop.f32.mrb[0].mxu0
        %v998 = vadd.f32 0.0, %v997
        %v999 = vpop.f32.mrb[0].mxu0
        %v1000 = vadd.f32 0.0, %v999
        %v1001 = vpop.f32.mrb[0].mxu0
        %v1002 = vadd.f32 0.0, %v1001
        %1003 = vmatprep.mubr.bf16.mxu0 0
        %1004 = vmatmul.mubr.bf16.gmra.mrb[0].mxu0 %v736
        %v1005 = vpop.f32.mrb[0].mxu0
        %v1006 = vadd.f32 0.0, %v1005
        %v1007 = vpop.f32.mrb[0].mxu0
        %v1008 = vadd.f32 0.0, %v1007
        %v1009 = vpop.f32.mrb[0].mxu0
        %v1010 = vadd.f32 0.0, %v1009
        %v1011 = vpop.f32.mrb[0].mxu0
        %v1012 = vadd.f32 0.0, %v1011
        %1013 = vdwg.mxu0
        %1014 = vmatprep.subr.bf16.mxu0 %v880
        %1015 = vmatpush1.bf16.msra.mxu0 %v879
        %1016 = vmatprep.subr.bf16.mxu0 %v884
        %1017 = vmatpush1.bf16.msra.mxu0 %v883
        %1018 = vmatprep.subr.bf16.mxu0 %v888
        %1019 = vmatpush1.bf16.msra.mxu0 %v887
        %1020 = vmatprep.subr.bf16.mxu0 %v892
        %1021 = vmatpush1.bf16.msra.mxu0 %v891
        %1022 = vmatprep.subr.bf16.mxu0 %v896
        %1023 = vmatpush1.bf16.msra.mxu0 %v895
        %1024 = vmatprep.subr.bf16.mxu0 %v900
        %1025 = vmatpush1.bf16.msra.mxu0 %v899
        %1026 = vmatprep.subr.bf16.mxu0 %v904
        %1027 = vmatpush1.bf16.msra.mxu0 %v903
        %1028 = vmatprep.subr.bf16.mxu0 %v908
        %1029 = vmatpush1.bf16.msra.mxu0 %v907
        %1030 = vmatprep.subr.bf16.mxu0 0
        %1031 = vmatpush1.bf16.msra.mxu0 0
        %1032 = vmatprep.subr.bf16.mxu0 0
        %1033 = vmatpush1.bf16.msra.mxu0 0
        %1034 = vmatprep.subr.bf16.mxu0 0
        %1035 = vmatpush1.bf16.msra.mxu0 0
        %1036 = vmatprep.subr.bf16.mxu0 0
        %1037 = vmatpush1.bf16.msra.mxu0 0
        %1038 = vmatprep.subr.bf16.mxu0 0
        %1039 = vmatpush1.bf16.msra.mxu0 0
        %1040 = vmatprep.subr.bf16.mxu0 0
        %1041 = vmatpush1.bf16.msra.mxu0 0
        %1042 = vmatprep.subr.bf16.mxu0 0
        %1043 = vmatpush1.bf16.msra.mxu0 0
        %1044 = vmatprep.subr.bf16.mxu0 0
        %1045 = vmatpush1.bf16.msra.mxu0 0
        %1046 = vmatprep.mubr.bf16.mxu0 0
        %1047 = vmatmul.mubr.bf16.gmra.mrb[0].mxu0 %v733
        %v1048 = vpop.f32.mrb[0].mxu0
        %v1049 = vadd.f32 0.0, %v1048
        %v1050 = vpop.f32.mrb[0].mxu0
        %v1051 = vadd.f32 0.0, %v1050
        %v1052 = vpop.f32.mrb[0].mxu0
        %v1053 = vadd.f32 0.0, %v1052
        %v1054 = vpop.f32.mrb[0].mxu0
        %v1055 = vadd.f32 0.0, %v1054
        %1056 = vmatprep.mubr.bf16.mxu0 0
        %1057 = vmatmul.mubr.bf16.gmra.mrb[0].mxu0 %v734
        %v1058 = vpop.f32.mrb[0].mxu0
        %v1059 = vadd.f32 0.0, %v1058
        %v1060 = vpop.f32.mrb[0].mxu0
        %v1061 = vadd.f32 0.0, %v1060
        %v1062 = vpop.f32.mrb[0].mxu0
        %v1063 = vadd.f32 0.0, %v1062
        %v1064 = vpop.f32.mrb[0].mxu0
        %v1065 = vadd.f32 0.0, %v1064
        %1066 = vmatprep.mubr.bf16.mxu0 0
        %1067 = vmatmul.mubr.bf16.gmra.mrb[0].mxu0 %v735
        %v1068 = vpop.f32.mrb[0].mxu0
        %v1069 = vadd.f32 0.0, %v1068
        %v1070 = vpop.f32.mrb[0].mxu0
        %v1071 = vadd.f32 0.0, %v1070
        %v1072 = vpop.f32.mrb[0].mxu0
        %v1073 = vadd.f32 0.0, %v1072
        %v1074 = vpop.f32.mrb[0].mxu0
        %v1075 = vadd.f32 0.0, %v1074
        %1076 = vmatprep.mubr.bf16.mxu0 0
        %1077 = vmatmul.mubr.bf16.gmra.mrb[0].mxu0 %v736
        %v1078 = vpop.f32.mrb[0].mxu0
        %v1079 = vadd.f32 0.0, %v1078
        %v1080 = vpop.f32.mrb[0].mxu0
        %v1081 = vadd.f32 0.0, %v1080
        %v1082 = vpop.f32.mrb[0].mxu0
        %v1083 = vadd.f32 0.0, %v1082
        %v1084 = vpop.f32.mrb[0].mxu0
        %v1085 = vadd.f32 0.0, %v1084
        %1086 = vdwg.mxu0
        %v1087 = vld [vmem:[%s4] sm:$0xff]
        %v1088 = vld [vmem:[%s4 + $0x8] sm:$0xff]
        %v1089 = vld [vmem:[%s4 + $0x10] sm:$0xff]
        %v1090 = vld [vmem:[%s4 + $0x18] sm:$0xff]
        %v1091 = vld [vmem:[%s4 + $0x20] sm:$0xff]
        %v1092 = vld [vmem:[%s4 + $0x28] sm:$0xff]
        %v1093 = vld [vmem:[%s4 + $0x30] sm:$0xff]
        %v1094 = vld [vmem:[%s4 + $0x38] sm:$0xff]
        %v1095 = vld [vmem:[%s4 + $0x40] sm:$0xff]
        %v1096 = vld [vmem:[%s4 + $0x48] sm:$0xff]
        %v1097 = vld [vmem:[%s4 + $0x50] sm:$0xff]
        %v1098 = vld [vmem:[%s4 + $0x58] sm:$0xff]
        %v1099 = vld [vmem:[%s4 + $0x60] sm:$0xff]
        %v1100 = vld [vmem:[%s4 + $0x68] sm:$0xff]
        %v1101 = vld [vmem:[%s4 + $0x70] sm:$0xff]
        %v1102 = vld [vmem:[%s4 + $0x78] sm:$0xff]
        %v1119 = vunpack.c.l.b16 %v1087
        %v1120 = vunpack.c.h.b16 %v1087
        %v1121 = vunpack.c.l.b16 %v1088
        %v1122 = vunpack.c.h.b16 %v1088
        %v1123 = vunpack.c.l.b16 %v1089
        %v1124 = vunpack.c.h.b16 %v1089
        %v1125 = vunpack.c.l.b16 %v1090
        %v1126 = vunpack.c.h.b16 %v1090
        %v1127 = vunpack.c.l.b16 %v1091
        %v1128 = vunpack.c.h.b16 %v1091
        %v1129 = vunpack.c.l.b16 %v1092
        %v1130 = vunpack.c.h.b16 %v1092
        %v1131 = vunpack.c.l.b16 %v1093
        %v1132 = vunpack.c.h.b16 %v1093
        %v1133 = vunpack.c.l.b16 %v1094
        %v1134 = vunpack.c.h.b16 %v1094
        %v1135 = vunpack.c.l.b16 %v1095
        %v1136 = vunpack.c.h.b16 %v1095
        %v1137 = vunpack.c.l.b16 %v1096
        %v1138 = vunpack.c.h.b16 %v1096
        %v1139 = vunpack.c.l.b16 %v1097
        %v1140 = vunpack.c.h.b16 %v1097
        %v1141 = vunpack.c.l.b16 %v1098
        %v1142 = vunpack.c.h.b16 %v1098
        %v1143 = vunpack.c.l.b16 %v1099
        %v1144 = vunpack.c.h.b16 %v1099
        %v1145 = vunpack.c.l.b16 %v1100
        %v1146 = vunpack.c.h.b16 %v1100
        %v1147 = vunpack.c.l.b16 %v1101
        %v1148 = vunpack.c.h.b16 %v1101
        %v1149 = vunpack.c.l.b16 %v1102
        %v1150 = vunpack.c.h.b16 %v1102
        %v1151 = vpack.c.b16 %v1121, %v1119
        %v1152 = vpack.c.b16 %v1122, %v1120
        %v1153 = vpack.c.b16 %v1125, %v1123
        %v1154 = vpack.c.b16 %v1126, %v1124
        %v1155 = vpack.c.b16 %v1129, %v1127
        %v1156 = vpack.c.b16 %v1130, %v1128
        %v1157 = vpack.c.b16 %v1133, %v1131
        %v1158 = vpack.c.b16 %v1134, %v1132
        %v1159 = vpack.c.b16 %v1137, %v1135
        %v1160 = vpack.c.b16 %v1138, %v1136
        %v1161 = vpack.c.b16 %v1141, %v1139
        %v1162 = vpack.c.b16 %v1142, %v1140
        %v1163 = vpack.c.b16 %v1145, %v1143
        %v1164 = vpack.c.b16 %v1146, %v1144
        %v1165 = vpack.c.b16 %v1149, %v1147
        %v1166 = vpack.c.b16 %v1150, %v1148
        %1183 = vmatprep.subr.bf16.mxu0 %v1152
        %1184 = vmatpush1.bf16.msra.mxu0 %v1151
        %1185 = vmatprep.subr.bf16.mxu0 %v1154
        %1186 = vmatpush1.bf16.msra.mxu0 %v1153
        %1187 = vmatprep.subr.bf16.mxu0 %v1156
        %1188 = vmatpush1.bf16.msra.mxu0 %v1155
        %1189 = vmatprep.subr.bf16.mxu0 %v1158
        %1190 = vmatpush1.bf16.msra.mxu0 %v1157
        %1191 = vmatprep.subr.bf16.mxu0 %v1160
        %1192 = vmatpush1.bf16.msra.mxu0 %v1159
        %1193 = vmatprep.subr.bf16.mxu0 %v1162
        %1194 = vmatpush1.bf16.msra.mxu0 %v1161
        %1195 = vmatprep.subr.bf16.mxu0 %v1164
        %1196 = vmatpush1.bf16.msra.mxu0 %v1163
        %1197 = vmatprep.subr.bf16.mxu0 %v1166
        %1198 = vmatpush1.bf16.msra.mxu0 %v1165
        %1199 = vmatprep.subr.bf16.mxu0 0
        %1200 = vmatpush1.bf16.msra.mxu0 0
        %1201 = vmatprep.subr.bf16.mxu0 0
        %1202 = vmatpush1.bf16.msra.mxu0 0
        %1203 = vmatprep.subr.bf16.mxu0 0
        %1204 = vmatpush1.bf16.msra.mxu0 0
        %1205 = vmatprep.subr.bf16.mxu0 0
        %1206 = vmatpush1.bf16.msra.mxu0 0
        %1207 = vmatprep.subr.bf16.mxu0 0
        %1208 = vmatpush1.bf16.msra.mxu0 0
        %1209 = vmatprep.subr.bf16.mxu0 0
        %1210 = vmatpush1.bf16.msra.mxu0 0
        %1211 = vmatprep.subr.bf16.mxu0 0
        %1212 = vmatpush1.bf16.msra.mxu0 0
        %1213 = vmatprep.subr.bf16.mxu0 0
        %1214 = vmatpush1.bf16.msra.mxu0 0
        %1215 = vmatprep.mubr.bf16.mxu0 0
        %1216 = vmatmul.mubr.bf16.gmra.mrb[0].mxu0 %v737
        %v1217 = vpop.f32.mrb[0].mxu0
        %v1218 = vadd.f32 0.0, %v1217
        %v1219 = vpop.f32.mrb[0].mxu0
        %v1220 = vadd.f32 0.0, %v1219
        %v1221 = vpop.f32.mrb[0].mxu0
        %v1222 = vadd.f32 0.0, %v1221
        %v1223 = vpop.f32.mrb[0].mxu0
        %v1224 = vadd.f32 0.0, %v1223
        %1225 = vmatprep.mubr.bf16.mxu0 0
        %1226 = vmatmul.mubr.bf16.gmra.mrb[0].mxu0 %v738
        %v1227 = vpop.f32.mrb[0].mxu0
        %v1228 = vadd.f32 0.0, %v1227
        %v1229 = vpop.f32.mrb[0].mxu0
        %v1230 = vadd.f32 0.0, %v1229
        %v1231 = vpop.f32.mrb[0].mxu0
        %v1232 = vadd.f32 0.0, %v1231
        %v1233 = vpop.f32.mrb[0].mxu0
        %v1234 = vadd.f32 0.0, %v1233
        %1235 = vmatprep.mubr.bf16.mxu0 0
        %1236 = vmatmul.mubr.bf16.gmra.mrb[0].mxu0 %v739
        %v1237 = vpop.f32.mrb[0].mxu0
        %v1238 = vadd.f32 0.0, %v1237
        %v1239 = vpop.f32.mrb[0].mxu0
        %v1240 = vadd.f32 0.0, %v1239
        %v1241 = vpop.f32.mrb[0].mxu0
        %v1242 = vadd.f32 0.0, %v1241
        %v1243 = vpop.f32.mrb[0].mxu0
        %v1244 = vadd.f32 0.0, %v1243
        %1245 = vmatprep.mubr.bf16.mxu0 0
        %1246 = vmatmul.mubr.bf16.gmra.mrb[0].mxu0 %v740
        %v1247 = vpop.f32.mrb[0].mxu0
        %v1248 = vadd.f32 0.0, %v1247
        %v1249 = vpop.f32.mrb[0].mxu0
        %v1250 = vadd.f32 0.0, %v1249
        %v1251 = vpop.f32.mrb[0].mxu0
        %v1252 = vadd.f32 0.0, %v1251
        %v1253 = vpop.f32.mrb[0].mxu0
        %v1254 = vadd.f32 0.0, %v1253
        %1255 = vdwg.mxu0
        %v1256 = vld [vmem:[%s5] sm:$0xff]
        %v1257 = vld [vmem:[%s5 + $0x8] sm:$0xff]
        %v1258 = vld [vmem:[%s5 + $0x10] sm:$0xff]
        %v1259 = vld [vmem:[%s5 + $0x18] sm:$0xff]
        %v1260 = vld [vmem:[%s5 + $0x20] sm:$0xff]
        %v1261 = vld [vmem:[%s5 + $0x28] sm:$0xff]
        %v1262 = vld [vmem:[%s5 + $0x30] sm:$0xff]
        %v1263 = vld [vmem:[%s5 + $0x38] sm:$0xff]
        %v1264 = vld [vmem:[%s5 + $0x40] sm:$0xff]
        %v1265 = vld [vmem:[%s5 + $0x48] sm:$0xff]
        %v1266 = vld [vmem:[%s5 + $0x50] sm:$0xff]
        %v1267 = vld [vmem:[%s5 + $0x58] sm:$0xff]
        %v1268 = vld [vmem:[%s5 + $0x60] sm:$0xff]
        %v1269 = vld [vmem:[%s5 + $0x68] sm:$0xff]
        %v1270 = vld [vmem:[%s5 + $0x70] sm:$0xff]
        %v1271 = vld [vmem:[%s5 + $0x78] sm:$0xff]
        %v1288 = vunpack.c.l.b16 %v1256
        %v1289 = vunpack.c.h.b16 %v1256
        %v1290 = vunpack.c.l.b16 %v1257
        %v1291 = vunpack.c.h.b16 %v1257
        %v1292 = vunpack.c.l.b16 %v1258
        %v1293 = vunpack.c.h.b16 %v1258
        %v1294 = vunpack.c.l.b16 %v1259
        %v1295 = vunpack.c.h.b16 %v1259
        %v1296 = vunpack.c.l.b16 %v1260
        %v1297 = vunpack.c.h.b16 %v1260
        %v1298 = vunpack.c.l.b16 %v1261
        %v1299 = vunpack.c.h.b16 %v1261
        %v1300 = vunpack.c.l.b16 %v1262
        %v1301 = vunpack.c.h.b16 %v1262
        %v1302 = vunpack.c.l.b16 %v1263
        %v1303 = vunpack.c.h.b16 %v1263
        %v1304 = vunpack.c.l.b16 %v1264
        %v1305 = vunpack.c.h.b16 %v1264
        %v1306 = vunpack.c.l.b16 %v1265
        %v1307 = vunpack.c.h.b16 %v1265
        %v1308 = vunpack.c.l.b16 %v1266
        %v1309 = vunpack.c.h.b16 %v1266
        %v1310 = vunpack.c.l.b16 %v1267
        %v1311 = vunpack.c.h.b16 %v1267
        %v1312 = vunpack.c.l.b16 %v1268
        %v1313 = vunpack.c.h.b16 %v1268
        %v1314 = vunpack.c.l.b16 %v1269
        %v1315 = vunpack.c.h.b16 %v1269
        %v1316 = vunpack.c.l.b16 %v1270
        %v1317 = vunpack.c.h.b16 %v1270
        %v1318 = vunpack.c.l.b16 %v1271
        %v1319 = vunpack.c.h.b16 %v1271
        %v1320 = vpack.c.b16 %v1290, %v1288
        %v1321 = vpack.c.b16 %v1291, %v1289
        %v1322 = vpack.c.b16 %v1294, %v1292
        %v1323 = vpack.c.b16 %v1295, %v1293
        %v1324 = vpack.c.b16 %v1298, %v1296
        %v1325 = vpack.c.b16 %v1299, %v1297
        %v1326 = vpack.c.b16 %v1302, %v1300
        %v1327 = vpack.c.b16 %v1303, %v1301
        %v1328 = vpack.c.b16 %v1306, %v1304
        %v1329 = vpack.c.b16 %v1307, %v1305
        %v1330 = vpack.c.b16 %v1310, %v1308
        %v1331 = vpack.c.b16 %v1311, %v1309
        %v1332 = vpack.c.b16 %v1314, %v1312
        %v1333 = vpack.c.b16 %v1315, %v1313
        %v1334 = vpack.c.b16 %v1318, %v1316
        %v1335 = vpack.c.b16 %v1319, %v1317
        %1352 = vmatprep.subr.bf16.mxu0 %v1321
        %1353 = vmatpush1.bf16.msra.mxu0 %v1320
        %1354 = vmatprep.subr.bf16.mxu0 %v1323
        %1355 = vmatpush1.bf16.msra.mxu0 %v1322
        %1356 = vmatprep.subr.bf16.mxu0 %v1325
        %1357 = vmatpush1.bf16.msra.mxu0 %v1324
        %1358 = vmatprep.subr.bf16.mxu0 %v1327
        %1359 = vmatpush1.bf16.msra.mxu0 %v1326
        %1360 = vmatprep.subr.bf16.mxu0 %v1329
        %1361 = vmatpush1.bf16.msra.mxu0 %v1328
        %1362 = vmatprep.subr.bf16.mxu0 %v1331
        %1363 = vmatpush1.bf16.msra.mxu0 %v1330
        %1364 = vmatprep.subr.bf16.mxu0 %v1333
        %1365 = vmatpush1.bf16.msra.mxu0 %v1332
        %1366 = vmatprep.subr.bf16.mxu0 %v1335
        %1367 = vmatpush1.bf16.msra.mxu0 %v1334
        %1368 = vmatprep.subr.bf16.mxu0 0
        %1369 = vmatpush1.bf16.msra.mxu0 0
        %1370 = vmatprep.subr.bf16.mxu0 0
        %1371 = vmatpush1.bf16.msra.mxu0 0
        %1372 = vmatprep.subr.bf16.mxu0 0
        %1373 = vmatpush1.bf16.msra.mxu0 0
        %1374 = vmatprep.subr.bf16.mxu0 0
        %1375 = vmatpush1.bf16.msra.mxu0 0
        %1376 = vmatprep.subr.bf16.mxu0 0
        %1377 = vmatpush1.bf16.msra.mxu0 0
        %1378 = vmatprep.subr.bf16.mxu0 0
        %1379 = vmatpush1.bf16.msra.mxu0 0
        %1380 = vmatprep.subr.bf16.mxu0 0
        %1381 = vmatpush1.bf16.msra.mxu0 0
        %1382 = vmatprep.subr.bf16.mxu0 0
        %1383 = vmatpush1.bf16.msra.mxu0 0
        %1384 = vmatprep.mubr.bf16.mxu0 0
        %1385 = vmatmul.mubr.bf16.gmra.mrb[0].mxu0 %v741
        %v1386 = vpop.f32.mrb[0].mxu0
        %v1387 = vadd.f32 0.0, %v1386
        %v1388 = vpop.f32.mrb[0].mxu0
        %v1389 = vadd.f32 0.0, %v1388
        %v1390 = vpop.f32.mrb[0].mxu0
        %v1391 = vadd.f32 0.0, %v1390
        %v1392 = vpop.f32.mrb[0].mxu0
        %v1393 = vadd.f32 0.0, %v1392
        %1394 = vmatprep.mubr.bf16.mxu0 0
        %1395 = vmatmul.mubr.bf16.gmra.mrb[0].mxu0 %v742
        %v1396 = vpop.f32.mrb[0].mxu0
        %v1397 = vadd.f32 0.0, %v1396
        %v1398 = vpop.f32.mrb[0].mxu0
        %v1399 = vadd.f32 0.0, %v1398
        %v1400 = vpop.f32.mrb[0].mxu0
        %v1401 = vadd.f32 0.0, %v1400
        %v1402 = vpop.f32.mrb[0].mxu0
        %v1403 = vadd.f32 0.0, %v1402
        %1404 = vmatprep.mubr.bf16.mxu0 0
        %1405 = vmatmul.mubr.bf16.gmra.mrb[0].mxu0 %v743
        %v1406 = vpop.f32.mrb[0].mxu0
        %v1407 = vadd.f32 0.0, %v1406
        %v1408 = vpop.f32.mrb[0].mxu0
        %v1409 = vadd.f32 0.0, %v1408
        %v1410 = vpop.f32.mrb[0].mxu0
        %v1411 = vadd.f32 0.0, %v1410
        %v1412 = vpop.f32.mrb[0].mxu0
        %v1413 = vadd.f32 0.0, %v1412
        %1414 = vmatprep.mubr.bf16.mxu0 0
        %1415 = vmatmul.mubr.bf16.gmra.mrb[0].mxu0 %v744
        %v1416 = vpop.f32.mrb[0].mxu0
        %v1417 = vadd.f32 0.0, %v1416
        %v1418 = vpop.f32.mrb[0].mxu0
        %v1419 = vadd.f32 0.0, %v1418
        %v1420 = vpop.f32.mrb[0].mxu0
        %v1421 = vadd.f32 0.0, %v1420
        %v1422 = vpop.f32.mrb[0].mxu0
        %v1423 = vadd.f32 0.0, %v1422
        %1424 = vdwg.mxu0
        %v1425 = vld [vmem:[#allocation4] sm:$0xf]
        %v1426 = vld [vmem:[#allocation4 + $0x4] sm:$0xf]
        %v1427 = vld [vmem:[#allocation4 + $0x8] sm:$0xf]
        %v1428 = vld [vmem:[#allocation4 + $0xc] sm:$0xf]
        %v1429 = vld [vmem:[#allocation4 + $0x10] sm:$0xf]
        %v1430 = vld [vmem:[#allocation4 + $0x14] sm:$0xf]
        %v1431 = vld [vmem:[#allocation4 + $0x18] sm:$0xf]
        %v1432 = vld [vmem:[#allocation4 + $0x1c] sm:$0xf]
        %v1433 = vld [vmem:[#allocation4 + $0x20] sm:$0xf]
        %v1434 = vld [vmem:[#allocation4 + $0x24] sm:$0xf]
        %v1435 = vld [vmem:[#allocation4 + $0x28] sm:$0xf]
        %v1436 = vld [vmem:[#allocation4 + $0x2c] sm:$0xf]
        %v1437 = vld [vmem:[#allocation4 + $0x30] sm:$0xf]
        %v1438 = vld [vmem:[#allocation4 + $0x34] sm:$0xf]
        %v1439 = vld [vmem:[#allocation4 + $0x38] sm:$0xf]
        %v1440 = vld [vmem:[#allocation4 + $0x3c] sm:$0xf]
        %v1457 = vunpack.c.l.b16 %v1425
        %v1458 = vunpack.c.l.b16 %v1426
        %v1459 = vunpack.c.l.b16 %v1427
        %v1460 = vunpack.c.l.b16 %v1428
        %v1461 = vunpack.c.l.b16 %v1429
        %v1462 = vunpack.c.l.b16 %v1430
        %v1463 = vunpack.c.l.b16 %v1431
        %v1464 = vunpack.c.l.b16 %v1432
        %v1465 = vunpack.c.l.b16 %v1433
        %v1466 = vunpack.c.l.b16 %v1434
        %v1467 = vunpack.c.l.b16 %v1435
        %v1468 = vunpack.c.l.b16 %v1436
        %v1469 = vunpack.c.l.b16 %v1437
        %v1470 = vunpack.c.l.b16 %v1438
        %v1471 = vunpack.c.l.b16 %v1439
        %v1472 = vunpack.c.l.b16 %v1440
        %v1473 = vpack.c.b16 %v1458, %v1457
        %v1474 = vpack.c.b16 %v1460, %v1459
        %v1475 = vpack.c.b16 %v1462, %v1461
        %v1476 = vpack.c.b16 %v1464, %v1463
        %v1477 = vpack.c.b16 %v1466, %v1465
        %v1478 = vpack.c.b16 %v1468, %v1467
        %v1479 = vpack.c.b16 %v1470, %v1469
        %v1480 = vpack.c.b16 %v1472, %v1471
        %1489 = vmatprep.subr.bf16.mxu0 0
        %1490 = vmatpush1.bf16.msra.mxu0 %v1473
        %1491 = vmatprep.subr.bf16.mxu0 0
        %1492 = vmatpush1.bf16.msra.mxu0 %v1474
        %1493 = vmatprep.subr.bf16.mxu0 0
        %1494 = vmatpush1.bf16.msra.mxu0 %v1475
        %1495 = vmatprep.subr.bf16.mxu0 0
        %1496 = vmatpush1.bf16.msra.mxu0 %v1476
        %1497 = vmatprep.subr.bf16.mxu0 0
        %1498 = vmatpush1.bf16.msra.mxu0 %v1477
        %1499 = vmatprep.subr.bf16.mxu0 0
        %1500 = vmatpush1.bf16.msra.mxu0 %v1478
        %1501 = vmatprep.subr.bf16.mxu0 0
        %1502 = vmatpush1.bf16.msra.mxu0 %v1479
        %1503 = vmatprep.subr.bf16.mxu0 0
        %1504 = vmatpush1.bf16.msra.mxu0 %v1480
        %1505 = vmatprep.subr.bf16.mxu0 0
        %1506 = vmatpush1.bf16.msra.mxu0 0
        %1507 = vmatprep.subr.bf16.mxu0 0
        %1508 = vmatpush1.bf16.msra.mxu0 0
        %1509 = vmatprep.subr.bf16.mxu0 0
        %1510 = vmatpush1.bf16.msra.mxu0 0
        %1511 = vmatprep.subr.bf16.mxu0 0
        %1512 = vmatpush1.bf16.msra.mxu0 0
        %1513 = vmatprep.subr.bf16.mxu0 0
        %1514 = vmatpush1.bf16.msra.mxu0 0
        %1515 = vmatprep.subr.bf16.mxu0 0
        %1516 = vmatpush1.bf16.msra.mxu0 0
        %1517 = vmatprep.subr.bf16.mxu0 0
        %1518 = vmatpush1.bf16.msra.mxu0 0
        %1519 = vmatprep.subr.bf16.mxu0 0
        %1520 = vmatpush1.bf16.msra.mxu0 0
        %1521 = vmatprep.mubr.bf16.mxu0 0
        %1522 = vmatmul.mubr.bf16.gmra.mrb[0].mxu0 %v745
        %v1523 = vpop.f32.mrb[0].mxu0
        %v1524 = vadd.f32 0.0, %v1523
        %v1525 = vpop.f32.mrb[0].mxu0
        %v1526 = vpop.f32.mrb[0].mxu0
        %v1527 = vadd.f32 0.0, %v1526
        %v1528 = vpop.f32.mrb[0].mxu0
        %1529 = vmatprep.mubr.bf16.mxu0 0
        %1530 = vmatmul.mubr.bf16.gmra.mrb[0].mxu0 %v746
        %v1531 = vpop.f32.mrb[0].mxu0
        %v1532 = vadd.f32 0.0, %v1531
        %v1533 = vpop.f32.mrb[0].mxu0
        %v1534 = vpop.f32.mrb[0].mxu0
        %v1535 = vadd.f32 0.0, %v1534
        %v1536 = vpop.f32.mrb[0].mxu0
        %1537 = vmatprep.mubr.bf16.mxu0 0
        %1538 = vmatmul.mubr.bf16.gmra.mrb[0].mxu0 %v747
        %v1539 = vpop.f32.mrb[0].mxu0
        %v1540 = vadd.f32 0.0, %v1539
        %v1541 = vpop.f32.mrb[0].mxu0
        %v1542 = vpop.f32.mrb[0].mxu0
        %v1543 = vadd.f32 0.0, %v1542
        %v1544 = vpop.f32.mrb[0].mxu0
        %1545 = vmatprep.mubr.bf16.mxu0 0
        %1546 = vmatmul.mubr.bf16.gmra.mrb[0].mxu0 %v748
        %v1547 = vpop.f32.mrb[0].mxu0
        %v1548 = vadd.f32 0.0, %v1547
        %v1549 = vpop.f32.mrb[0].mxu0
        %v1550 = vpop.f32.mrb[0].mxu0
        %v1551 = vadd.f32 0.0, %v1550
        %v1552 = vpop.f32.mrb[0].mxu0
        %1553 = vdwg.mxu0
        %v1554 = vld [vmem:[%s7] sm:$0x1]
        %v1556 = vlaneseq
        %v1557 = vshrl.u32 %v1556, 7
        %v1558 = vsub.s32 0, %v1557
        %v1559 = vrot.slane %v1554, %v1558
        %v1561 = vadd.f32 %v976, %v1559
        %v1562 = vadd.f32 %v980, %v1559
        %v1563 = vadd.f32 %v986, %v1559
        %v1564 = vadd.f32 %v990, %v1559
        %v1565 = vadd.f32 %v996, %v1559
        %v1566 = vadd.f32 %v1000, %v1559
        %v1567 = vadd.f32 %v1006, %v1559
        %v1568 = vadd.f32 %v1010, %v1559
        %v1569 = vmax.f32 %v1561, 0.0
        %v1570 = vmax.f32 %v1562, 0.0
        %v1571 = vmax.f32 %v1563, 0.0
        %v1572 = vmax.f32 %v1564, 0.0
        %v1573 = vmax.f32 %v1565, 0.0
        %v1574 = vmax.f32 %v1566, 0.0
        %v1575 = vmax.f32 %v1567, 0.0
        %v1576 = vmax.f32 %v1568, 0.0
        %v1577 = vadd.f32 %v978, %v1218
        %v1578 = vadd.f32 %v982, %v1222
        %v1579 = vadd.f32 %v988, %v1228
        %v1580 = vadd.f32 %v992, %v1232
        %v1581 = vadd.f32 %v998, %v1238
        %v1582 = vadd.f32 %v1002, %v1242
        %v1583 = vadd.f32 %v1008, %v1248
        %v1584 = vadd.f32 %v1012, %v1252
        %v1585 = vadd.f32 %v1577, %v1559
        %v1586 = vadd.f32 %v1578, %v1559
        %v1587 = vadd.f32 %v1579, %v1559
        %v1588 = vadd.f32 %v1580, %v1559
        %v1589 = vadd.f32 %v1581, %v1559
        %v1590 = vadd.f32 %v1582, %v1559
        %v1591 = vadd.f32 %v1583, %v1559
        %v1592 = vadd.f32 %v1584, %v1559
        %v1593 = vmax.f32 %v1585, 0.0
        %v1594 = vmax.f32 %v1586, 0.0
        %v1595 = vmax.f32 %v1587, 0.0
        %v1596 = vmax.f32 %v1588, 0.0
        %v1597 = vmax.f32 %v1589, 0.0
        %v1598 = vmax.f32 %v1590, 0.0
        %v1599 = vmax.f32 %v1591, 0.0
        %v1600 = vmax.f32 %v1592, 0.0
        %v1601 = vadd.f32 %v1049, %v1387
        %v1602 = vadd.f32 %v1053, %v1391
        %v1603 = vadd.f32 %v1059, %v1397
        %v1604 = vadd.f32 %v1063, %v1401
        %v1605 = vadd.f32 %v1069, %v1407
        %v1606 = vadd.f32 %v1073, %v1411
        %v1607 = vadd.f32 %v1079, %v1417
        %v1608 = vadd.f32 %v1083, %v1421
        %v1609 = vadd.f32 %v1601, %v1559
        %v1610 = vadd.f32 %v1602, %v1559
        %v1611 = vadd.f32 %v1603, %v1559
        %v1612 = vadd.f32 %v1604, %v1559
        %v1613 = vadd.f32 %v1605, %v1559
        %v1614 = vadd.f32 %v1606, %v1559
        %v1615 = vadd.f32 %v1607, %v1559
        %v1616 = vadd.f32 %v1608, %v1559
        %v1617 = vmax.f32 %v1609, 0.0
        %v1618 = vmax.f32 %v1610, 0.0
        %v1619 = vmax.f32 %v1611, 0.0
        %v1620 = vmax.f32 %v1612, 0.0
        %v1621 = vmax.f32 %v1613, 0.0
        %v1622 = vmax.f32 %v1614, 0.0
        %v1623 = vmax.f32 %v1615, 0.0
        %v1624 = vmax.f32 %v1616, 0.0
        %v1625 = vadd.f32 %v1051, %v1220
        %v1626 = vadd.f32 %v1055, %v1224
        %v1627 = vadd.f32 %v1061, %v1230
        %v1628 = vadd.f32 %v1065, %v1234
        %v1629 = vadd.f32 %v1071, %v1240
        %v1630 = vadd.f32 %v1075, %v1244
        %v1631 = vadd.f32 %v1081, %v1250
        %v1632 = vadd.f32 %v1085, %v1254
        %v1633 = vadd.f32 %v1625, %v1389
        %v1634 = vadd.f32 %v1626, %v1393
        %v1635 = vadd.f32 %v1627, %v1399
        %v1636 = vadd.f32 %v1628, %v1403
        %v1637 = vadd.f32 %v1629, %v1409
        %v1638 = vadd.f32 %v1630, %v1413
        %v1639 = vadd.f32 %v1631, %v1419
        %v1640 = vadd.f32 %v1632, %v1423
        %v1641 = vadd.f32 %v1633, %v1524
        %v1642 = vadd.f32 %v1634, %v1527
        %v1643 = vadd.f32 %v1635, %v1532
        %v1644 = vadd.f32 %v1636, %v1535
        %v1645 = vadd.f32 %v1637, %v1540
        %v1646 = vadd.f32 %v1638, %v1543
        %v1647 = vadd.f32 %v1639, %v1548
        %v1648 = vadd.f32 %v1640, %v1551
        %v1649 = vadd.f32 %v1641, %v1559
        %v1650 = vadd.f32 %v1642, %v1559
        %v1651 = vadd.f32 %v1643, %v1559
        %v1652 = vadd.f32 %v1644, %v1559
        %v1653 = vadd.f32 %v1645, %v1559
        %v1654 = vadd.f32 %v1646, %v1559
        %v1655 = vadd.f32 %v1647, %v1559
        %v1656 = vadd.f32 %v1648, %v1559
        %v1657 = vmax.f32 %v1649, 0.0
        %v1658 = vmax.f32 %v1650, 0.0
        %v1659 = vmax.f32 %v1651, 0.0
        %v1660 = vmax.f32 %v1652, 0.0
        %v1661 = vmax.f32 %v1653, 0.0
        %v1662 = vmax.f32 %v1654, 0.0
        %v1663 = vmax.f32 %v1655, 0.0
        %v1664 = vmax.f32 %v1656, 0.0
        %v1665 = vpack.c.bf16 %v1570, %v1569
        %v1666 = vpack.c.bf16 %v1572, %v1571
        %v1667 = vpack.c.bf16 %v1574, %v1573
        %v1668 = vpack.c.bf16 %v1576, %v1575
        %v1673 = vunpack.c.l.b16 %v1665
        %v1674 = vunpack.c.h.b16 %v1665
        %v1675 = vunpack.c.l.b16 %v1666
        %v1676 = vunpack.c.h.b16 %v1666
        %v1677 = vunpack.c.l.b16 %v1667
        %v1678 = vunpack.c.h.b16 %v1667
        %v1679 = vunpack.c.l.b16 %v1668
        %v1680 = vunpack.c.h.b16 %v1668
        %v1681 = vpack.c.b16 %v1673, %v1673
        %v1682 = vpack.c.b16 %v1674, %v1674
        %v1683 = vpack.c.b16 %v1675, %v1675
        %v1684 = vpack.c.b16 %v1676, %v1676
        %v1685 = vpack.c.b16 %v1677, %v1677
        %v1686 = vpack.c.b16 %v1678, %v1678
        %v1687 = vpack.c.b16 %v1679, %v1679
        %v1688 = vpack.c.b16 %v1680, %v1680
        %1697 = vst [vmem:[%s368] sm:$0xf] %v1681
        %1698 = vst [vmem:[%s368 + $0x4] sm:$0xf] %v1682
        %1699 = vst [vmem:[%s368 + $0x8] sm:$0xf] %v1683
        %1700 = vst [vmem:[%s368 + $0xc] sm:$0xf] %v1684
        %1701 = vst [vmem:[%s368 + $0x10] sm:$0xf] %v1685
        %1702 = vst [vmem:[%s368 + $0x14] sm:$0xf] %v1686
        %1703 = vst [vmem:[%s368 + $0x18] sm:$0xf] %v1687
        %1704 = vst [vmem:[%s368 + $0x1c] sm:$0xf] %v1688
        %v1705 = vpack.c.bf16 %v1594, %v1593
        %v1706 = vpack.c.bf16 %v1596, %v1595
        %v1707 = vpack.c.bf16 %v1598, %v1597
        %v1708 = vpack.c.bf16 %v1600, %v1599
        %v1713 = vunpack.c.l.b16 %v1705
        %v1714 = vunpack.c.h.b16 %v1705
        %v1715 = vunpack.c.l.b16 %v1706
        %v1716 = vunpack.c.h.b16 %v1706
        %v1717 = vunpack.c.l.b16 %v1707
        %v1718 = vunpack.c.h.b16 %v1707
        %v1719 = vunpack.c.l.b16 %v1708
        %v1720 = vunpack.c.h.b16 %v1708
        %v1721 = vpack.c.b16 %v1713, %v1713
        %v1722 = vpack.c.b16 %v1714, %v1714
        %v1723 = vpack.c.b16 %v1715, %v1715
        %v1724 = vpack.c.b16 %v1716, %v1716
        %v1725 = vpack.c.b16 %v1717, %v1717
        %v1726 = vpack.c.b16 %v1718, %v1718
        %v1727 = vpack.c.b16 %v1719, %v1719
        %v1728 = vpack.c.b16 %v1720, %v1720
        %s1737 = scalar_lea.vmem %s368, 32
        %1738 = vst [vmem:[%s1737] sm:$0xf] %v1721
        %1739 = vst [vmem:[%s1737 + $0x4] sm:$0xf] %v1722
        %1740 = vst [vmem:[%s1737 + $0x8] sm:$0xf] %v1723
        %1741 = vst [vmem:[%s1737 + $0xc] sm:$0xf] %v1724
        %1742 = vst [vmem:[%s1737 + $0x10] sm:$0xf] %v1725
        %1743 = vst [vmem:[%s1737 + $0x14] sm:$0xf] %v1726
        %1744 = vst [vmem:[%s1737 + $0x18] sm:$0xf] %v1727
        %1745 = vst [vmem:[%s1737 + $0x1c] sm:$0xf] %v1728
        %v1746 = vpack.c.bf16 %v1618, %v1617
        %v1747 = vpack.c.bf16 %v1620, %v1619
        %v1748 = vpack.c.bf16 %v1622, %v1621
        %v1749 = vpack.c.bf16 %v1624, %v1623
        %v1754 = vunpack.c.l.b16 %v1746
        %v1755 = vunpack.c.h.b16 %v1746
        %v1756 = vunpack.c.l.b16 %v1747
        %v1757 = vunpack.c.h.b16 %v1747
        %v1758 = vunpack.c.l.b16 %v1748
        %v1759 = vunpack.c.h.b16 %v1748
        %v1760 = vunpack.c.l.b16 %v1749
        %v1761 = vunpack.c.h.b16 %v1749
        %v1762 = vpack.c.b16 %v1754, %v1754
        %v1763 = vpack.c.b16 %v1755, %v1755
        %v1764 = vpack.c.b16 %v1756, %v1756
        %v1765 = vpack.c.b16 %v1757, %v1757
        %v1766 = vpack.c.b16 %v1758, %v1758
        %v1767 = vpack.c.b16 %v1759, %v1759
        %v1768 = vpack.c.b16 %v1760, %v1760
        %v1769 = vpack.c.b16 %v1761, %v1761
        %s1778 = scalar_lea.vmem %s368, 64
        %1779 = vst [vmem:[%s1778] sm:$0xf] %v1762
        %1780 = vst [vmem:[%s1778 + $0x4] sm:$0xf] %v1763
        %1781 = vst [vmem:[%s1778 + $0x8] sm:$0xf] %v1764
        %1782 = vst [vmem:[%s1778 + $0xc] sm:$0xf] %v1765
        %1783 = vst [vmem:[%s1778 + $0x10] sm:$0xf] %v1766
        %1784 = vst [vmem:[%s1778 + $0x14] sm:$0xf] %v1767
        %1785 = vst [vmem:[%s1778 + $0x18] sm:$0xf] %v1768
        %1786 = vst [vmem:[%s1778 + $0x1c] sm:$0xf] %v1769
        %v1787 = vpack.c.bf16 %v1658, %v1657
        %v1788 = vpack.c.bf16 %v1660, %v1659
        %v1789 = vpack.c.bf16 %v1662, %v1661
        %v1790 = vpack.c.bf16 %v1664, %v1663
        %v1795 = vunpack.c.l.b16 %v1787
        %v1796 = vunpack.c.h.b16 %v1787
        %v1797 = vunpack.c.l.b16 %v1788
        %v1798 = vunpack.c.h.b16 %v1788
        %v1799 = vunpack.c.l.b16 %v1789
        %v1800 = vunpack.c.h.b16 %v1789
        %v1801 = vunpack.c.l.b16 %v1790
        %v1802 = vunpack.c.h.b16 %v1790
        %v1803 = vpack.c.b16 %v1795, %v1795
        %v1804 = vpack.c.b16 %v1796, %v1796
        %v1805 = vpack.c.b16 %v1797, %v1797
        %v1806 = vpack.c.b16 %v1798, %v1798
        %v1807 = vpack.c.b16 %v1799, %v1799
        %v1808 = vpack.c.b16 %v1800, %v1800
        %v1809 = vpack.c.b16 %v1801, %v1801
        %v1810 = vpack.c.b16 %v1802, %v1802
        %s1819 = scalar_lea.vmem %s368, 96
        %1820 = vst [vmem:[%s1819] sm:$0xf] %v1803
        %1821 = vst [vmem:[%s1819 + $0x4] sm:$0xf] %v1804
        %1822 = vst [vmem:[%s1819 + $0x8] sm:$0xf] %v1805
        %1823 = vst [vmem:[%s1819 + $0xc] sm:$0xf] %v1806
        %1824 = vst [vmem:[%s1819 + $0x10] sm:$0xf] %v1807
        %1825 = vst [vmem:[%s1819 + $0x14] sm:$0xf] %v1808
        %1826 = vst [vmem:[%s1819 + $0x18] sm:$0xf] %v1809
        %1827 = vst [vmem:[%s1819 + $0x1c] sm:$0xf] %v1810
        %v1828 = vadd.f32 %v1569, %v1593
        %v1829 = vadd.f32 %v1570, %v1594
        %v1830 = vadd.f32 %v1571, %v1595
        %v1831 = vadd.f32 %v1572, %v1596
        %v1832 = vadd.f32 %v1573, %v1597
        %v1833 = vadd.f32 %v1574, %v1598
        %v1834 = vadd.f32 %v1575, %v1599
        %v1835 = vadd.f32 %v1576, %v1600
        %v1836 = vadd.f32 %v1828, %v1617
        %v1837 = vadd.f32 %v1829, %v1618
        %v1838 = vadd.f32 %v1830, %v1619
        %v1839 = vadd.f32 %v1831, %v1620
        %v1840 = vadd.f32 %v1832, %v1621
        %v1841 = vadd.f32 %v1833, %v1622
        %v1842 = vadd.f32 %v1834, %v1623
        %v1843 = vadd.f32 %v1835, %v1624
        %v1844 = vadd.f32 %v1836, %v1657
        %v1845 = vadd.f32 %v1837, %v1658
        %v1846 = vadd.f32 %v1838, %v1659
        %v1847 = vadd.f32 %v1839, %v1660
        %v1848 = vadd.f32 %v1840, %v1661
        %v1849 = vadd.f32 %v1841, %v1662
        %v1850 = vadd.f32 %v1842, %v1663
        %v1851 = vadd.f32 %v1843, %v1664
        %v1852 = vadd.f32 %v1844, %v1845
        %v1853 = vadd.f32 %v1852, %v1846
        %v1854 = vadd.f32 %v1853, %v1847
        %v1855 = vadd.f32 %v1854, %v1848
        %v1856 = vadd.f32 %v1855, %v1849
        %v1857 = vadd.f32 %v1856, %v1850
        %v1858 = vadd.f32 %v1857, %v1851
        %v1859 = vrot.slane %v1858, 4
        %v1860 = vadd.f32 %v1858, %v1859
        %v1861 = vrot.slane %v1860, 2
        %v1862 = vadd.f32 %v1860, %v1861
        %v1863 = vrot.slane %v1862, 1
        %v1864 = vadd.f32 %v1862, %v1863
        %1865 = vst [vmem:[%s371] sm:$0x1] %v1864
        %p1866 = scmp.lt.s32.totalorder %s23, 1
        %s1867 = scalar_select %p1866, %s23, 1
        %s1868 = smul.addr %s1867, 32
        %s1869 = smul.addr %s1868, 4
        %s1870 = scalar_lea.vmem %s8, %s1869
        %p1871 = scmp.lt.s32.totalorder %s23, 1
        %s1872 = scalar_select %p1871, %s23, 1
        %s1873 = scalar_lea.vmem %s9, %s1872
        // Predicated region
        $region61: #{decoder2_forward.2} parent=51 // pred_check
          %p1874 = pneg %p214
        $region62: #{decoder2_forward.2} parent=51 // pred_check_branch
          %1876 = sbr.rel (%p1874) target = $region64
        $region63: #{decoder2_forward.2} parent=51 // pred_region
          _
        $region64: #{decoder2_forward.2} parent=51 // pred_fallthru
          _
        // Predicated region
        $region65: #{decoder2_forward.2} parent=51 // pred_check
          %p1877 = pneg %p240
        $region66: #{decoder2_forward.2} parent=51 // pred_check_branch
          %1879 = sbr.rel (%p1877) target = $region68
        $region67: #{decoder2_forward.2} parent=51 // pred_region
          _
        $region68: #{decoder2_forward.2} parent=51 // pred_fallthru
          _
      $region52: #{decoder2_forward.2} parent=5 // pred_fallthru
        _
      %p1880 = scmp.le.s32.totalorder 2, %s18
      // Predicated region
      $region69: #{decoder2_forward.2} parent=5 // pred_check
        %p1881 = pneg %p1880
      $region70: #{decoder2_forward.2} parent=5 // pred_check_branch
        %1883 = sbr.rel (%p1881) target = $region72
      $region71: #{decoder2_forward.2} parent=5 // pred_region
        %s1884 = ssub.s32 %s18, 2
        // Predicated region
        $region73: #{decoder2_forward.2} parent=71 // pred_check
          %p1885 = pneg %p220
        $region74: #{decoder2_forward.2} parent=71 // pred_check_branch
          %1887 = sbr.rel (%p1885) target = $region76
        $region75: #{decoder2_forward.2} parent=71 // pred_region
          %p1888 = scmp.lt.s32.totalorder %s24, 1
          %s1889 = scalar_select %p1888, %s24, 1
          %s1890 = smul.addr %s1889, 32
          %s1891 = smul.addr %s1890, 4
          %s1892 = scalar_lea.vmem %s8, %s1891
        $region76: #{decoder2_forward.2} parent=71 // pred_fallthru
          _
        // Predicated region
        $region77: #{decoder2_forward.2} parent=71 // pred_check
          %p1893 = pneg %p246
        $region78: #{decoder2_forward.2} parent=71 // pred_check_branch
          %1895 = sbr.rel (%p1893) target = $region80
        $region79: #{decoder2_forward.2} parent=71 // pred_region
          %p1896 = scmp.lt.s32.totalorder %s24, 1
          %s1897 = scalar_select %p1896, %s24, 1
          %s1898 = scalar_lea.vmem %s9, %s1897
        $region80: #{decoder2_forward.2} parent=71 // pred_fallthru
          _
      $region72: #{decoder2_forward.2} parent=5 // pred_fallthru
        _
    $region6: #{decoder2_forward.2} parent=1 // loop_footer
      %s22 = sadd.s32 1, %s18
    $region7: #{decoder2_forward.2} parent=1 // loop_footer_branch
      %17 = sbr.rel target = $region3
    $region8: #{decoder2_forward.2} parent=1 // loop_exit
      _
    %1899 = vsyncpa [#allocation3], 1
    %s1900 = scalar_lea.sflag [#allocation3], 1
    %1901 = vsyncpa %s1900, 1
    %1902 = vsyncpa [#allocation5], 1

// kernel: decoder2_forward.3
$region0: #{decoder2_forward.3}
  #allocation0 [shape = 'u32[]', space=smem, size = 0x4, offset = 0x4, fixed_abs, tag = 'smem constant byte address 0x4 - core index']
  #allocation1 [shape = 'u32[144,128]{1,0:T(1,128)}', space=vmem, size = 0x12000, scoped, tag = 'internal scratch']
  %s0 = inlined_call_operand.vmem [shape: bf16[2,256,128], index: 0, kind: input, shape index: {}]
  %s1 = inlined_call_operand.vmem [shape: bf16[2,256,128], index: 1, kind: input, shape index: {}]
  %s2 = inlined_call_operand.vmem [shape: f32[2,1,128], index: 2, kind: input, shape index: {}]
  %s3 = inlined_call_operand.vmem [shape: bf16[128,128], index: 3, kind: input, shape index: {}]
  %s4 = inlined_call_operand.vmem [shape: bf16[128,128], index: 4, kind: input, shape index: {}]
  %s5 = inlined_call_operand.vmem [shape: f32[1,128], index: 5, kind: input, shape index: {}]
  %s6 = inlined_call_operand.vmem [shape: bf16[128,128], index: 6, kind: input, shape index: {}]
  %s7 = inlined_call_operand.vmem [shape: f32[1,128], index: 7, kind: input, shape index: {}]
  %s8 = inlined_call_operand.vmem [shape: f32[2,256,128], index: 8, kind: output, shape index: {}]
  %s9 = sld [smem:[#allocation0]]
  $region65: #{decoder2_forward.3} parent=0
    _
  %s11 = ssub.s32 1, %s9
  %s12 = scalar_select 0, %s11, %s9
  loop: start=0, step=1, limit=4
  $region2: #{decoder2_forward.3} parent=0 // loop_pre_header
    _
  $region3: #{decoder2_forward.3} parent=0 // loop_header
    %s14 = sphi 0, %s18
    %p15 = scmp.ge.s32.totalorder %s14, 4
    %s21 = sphi 0, %s33
    %s22 = sphi 0, %s29
    %s23 = sphi 0, %s21
    %s24 = sphi 0, %s22
    %s25 = sphi 0, %s23
    %s26 = sphi 0, %s24
    %s38 = sphi 0, %s40
    %s41 = sphi 0, %s38
    %s42 = sphi 0, %s41
    %s58 = sphi 0, %s42
    %s66 = sphi 0, %s68
    %s69 = sphi 0, %s66
    %s70 = sphi 0, %s69
    %s86 = sphi 0, %s70
    %s92 = sphi 0, %s94
    %s95 = sphi 0, %s92
    %s96 = sphi 0, %s95
    %s112 = sphi 0, %s96
    %s116 = sphi 0, %s116
    %s118 = sphi 0, %s116
    %s119 = sphi 0, %s118
    %s133 = sphi 0, %s119
    %s137 = sphi 0, %s137
    %s139 = sphi 0, %s137
    %s140 = sphi 0, %s139
    %s154 = sphi 0, %s140
    %s158 = sphi 0, %s158
    %s160 = sphi 0, %s158
    %s161 = sphi 0, %s160
    %s175 = sphi 0, %s161
    %s179 = sphi 0, %s179
    %s181 = sphi 0, %s179
    %s182 = sphi 0, %s181
    %s196 = sphi 0, %s182
    %s200 = sphi 0, %s200
    %s202 = sphi 0, %s200
    %s203 = sphi 0, %s202
    %s217 = sphi 0, %s203
    %s225 = sphi 0, %s227
    %s228 = sphi 0, %s225
    %s229 = sphi 0, %s228
    %s245 = sphi 0, %s229
  $region4: #{decoder2_forward.3} parent=0 // loop_header_branch
    %17 = sbr.rel (%p15) target = $region8
  $region5: #{decoder2_forward.3} parent=0 // loop_body
    %s19 = ssub.s32 %s14, 1
    %s20 = ssub.s32 %s14, 2
    %s27 = sadd.s32 1, %s22
    %p28 = scmp.ge.s32.totalorder %s27, 1
    %s29 = scalar_select %p28, 0, %s27
    %s30 = sadd.s32 1, %s21
    %s31 = scalar_select %p28, %s30, %s21
    %p32 = scmp.ge.s32.totalorder %s31, 2
    %s33 = scalar_select %p32, 0, %s31
    %s34 = ssub.s32 %s21, %s33
    %s35 = ssub.s32 %s22, %s29
    %s36 = sor.u32 %s34, %s35
    %p37 = scmp.eq.s32.totalorder %s36, 0
    %s39 = sadd.s32 %s38, 1
    %s40 = scalar_select %p37, %s38, %s39
    %p43 = pneg %p37
    %p44 = scmp.eq.s32.totalorder %s14, 1
    %p45 = por %p43, %p44
    %p46 = scmp.ne.s32.totalorder %s38, %s41
    %p47 = scmp.eq.s32.totalorder %s14, 0
    %p48 = por %p46, %p47
    %p49 = scmp.ne.s32.totalorder %s38, %s41
    %p50 = scmp.eq.s32.totalorder %s19, 1
    %p51 = por %p49, %p50
    %p52 = scmp.ne.s32.totalorder %s41, %s42
    %p53 = scmp.eq.s32.totalorder %s19, 0
    %p54 = por %p52, %p53
    %p55 = scmp.ne.s32.totalorder %s41, %s42
    %p56 = scmp.eq.s32.totalorder %s20, 1
    %p57 = por %p55, %p56
    %p59 = scmp.ne.s32.totalorder %s42, %s58
    %p60 = scmp.eq.s32.totalorder %s20, 0
    %p61 = por %p59, %p60
    %s62 = ssub.s32 %s21, %s33
    %s63 = ssub.s32 %s22, %s29
    %s64 = sor.u32 %s62, %s63
    %p65 = scmp.eq.s32.totalorder %s64, 0
    %s67 = sadd.s32 %s66, 1
    %s68 = scalar_select %p65, %s66, %s67
    %p71 = pneg %p65
    %p72 = scmp.eq.s32.totalorder %s14, 1
    %p73 = por %p71, %p72
    %p74 = scmp.ne.s32.totalorder %s66, %s69
    %p75 = scmp.eq.s32.totalorder %s14, 0
    %p76 = por %p74, %p75
    %p77 = scmp.ne.s32.totalorder %s66, %s69
    %p78 = scmp.eq.s32.totalorder %s19, 1
    %p79 = por %p77, %p78
    %p80 = scmp.ne.s32.totalorder %s69, %s70
    %p81 = scmp.eq.s32.totalorder %s19, 0
    %p82 = por %p80, %p81
    %p83 = scmp.ne.s32.totalorder %s69, %s70
    %p84 = scmp.eq.s32.totalorder %s20, 1
    %p85 = por %p83, %p84
    %p87 = scmp.ne.s32.totalorder %s70, %s86
    %p88 = scmp.eq.s32.totalorder %s20, 0
    %p89 = por %p87, %p88
    %s90 = ssub.s32 %s21, %s33
    %p91 = scmp.eq.s32.totalorder %s90, 0
    %s93 = sadd.s32 %s92, 1
    %s94 = scalar_select %p91, %s92, %s93
    %p97 = pneg %p91
    %p98 = scmp.eq.s32.totalorder %s14, 1
    %p99 = por %p97, %p98
    %p100 = scmp.ne.s32.totalorder %s92, %s95
    %p101 = scmp.eq.s32.totalorder %s14, 0
    %p102 = por %p100, %p101
    %p103 = scmp.ne.s32.totalorder %s92, %s95
    %p104 = scmp.eq.s32.totalorder %s19, 1
    %p105 = por %p103, %p104
    %p106 = scmp.ne.s32.totalorder %s95, %s96
    %p107 = scmp.eq.s32.totalorder %s19, 0
    %p108 = por %p106, %p107
    %p109 = scmp.ne.s32.totalorder %s95, %s96
    %p110 = scmp.eq.s32.totalorder %s20, 1
    %p111 = por %p109, %p110
    %p113 = scmp.ne.s32.totalorder %s96, %s112
    %p114 = scmp.eq.s32.totalorder %s20, 0
    %p115 = por %p113, %p114
    %s117 = sadd.s32 %s116, 1
    %p120 = scmp.eq.s32.totalorder %s14, 1
    %p121 = scmp.ne.s32.totalorder %s116, %s118
    %p122 = scmp.eq.s32.totalorder %s14, 0
    %p123 = por %p121, %p122
    %p124 = scmp.ne.s32.totalorder %s116, %s118
    %p125 = scmp.eq.s32.totalorder %s19, 1
    %p126 = por %p124, %p125
    %p127 = scmp.ne.s32.totalorder %s118, %s119
    %p128 = scmp.eq.s32.totalorder %s19, 0
    %p129 = por %p127, %p128
    %p130 = scmp.ne.s32.totalorder %s118, %s119
    %p131 = scmp.eq.s32.totalorder %s20, 1
    %p132 = por %p130, %p131
    %p134 = scmp.ne.s32.totalorder %s119, %s133
    %p135 = scmp.eq.s32.totalorder %s20, 0
    %p136 = por %p134, %p135
    %s138 = sadd.s32 %s137, 1
    %p141 = scmp.eq.s32.totalorder %s14, 1
    %p142 = scmp.ne.s32.totalorder %s137, %s139
    %p143 = scmp.eq.s32.totalorder %s14, 0
    %p144 = por %p142, %p143
    %p145 = scmp.ne.s32.totalorder %s137, %s139
    %p146 = scmp.eq.s32.totalorder %s19, 1
    %p147 = por %p145, %p146
    %p148 = scmp.ne.s32.totalorder %s139, %s140
    %p149 = scmp.eq.s32.totalorder %s19, 0
    %p150 = por %p148, %p149
    %p151 = scmp.ne.s32.totalorder %s139, %s140
    %p152 = scmp.eq.s32.totalorder %s20, 1
    %p153 = por %p151, %p152
    %p155 = scmp.ne.s32.totalorder %s140, %s154
    %p156 = scmp.eq.s32.totalorder %s20, 0
    %p157 = por %p155, %p156
    %s159 = sadd.s32 %s158, 1
    %p162 = scmp.eq.s32.totalorder %s14, 1
    %p163 = scmp.ne.s32.totalorder %s158, %s160
    %p164 = scmp.eq.s32.totalorder %s14, 0
    %p165 = por %p163, %p164
    %p166 = scmp.ne.s32.totalorder %s158, %s160
    %p167 = scmp.eq.s32.totalorder %s19, 1
    %p168 = por %p166, %p167
    %p169 = scmp.ne.s32.totalorder %s160, %s161
    %p170 = scmp.eq.s32.totalorder %s19, 0
    %p171 = por %p169, %p170
    %p172 = scmp.ne.s32.totalorder %s160, %s161
    %p173 = scmp.eq.s32.totalorder %s20, 1
    %p174 = por %p172, %p173
    %p176 = scmp.ne.s32.totalorder %s161, %s175
    %p177 = scmp.eq.s32.totalorder %s20, 0
    %p178 = por %p176, %p177
    %s180 = sadd.s32 %s179, 1
    %p183 = scmp.eq.s32.totalorder %s14, 1
    %p184 = scmp.ne.s32.totalorder %s179, %s181
    %p185 = scmp.eq.s32.totalorder %s14, 0
    %p186 = por %p184, %p185
    %p187 = scmp.ne.s32.totalorder %s179, %s181
    %p188 = scmp.eq.s32.totalorder %s19, 1
    %p189 = por %p187, %p188
    %p190 = scmp.ne.s32.totalorder %s181, %s182
    %p191 = scmp.eq.s32.totalorder %s19, 0
    %p192 = por %p190, %p191
    %p193 = scmp.ne.s32.totalorder %s181, %s182
    %p194 = scmp.eq.s32.totalorder %s20, 1
    %p195 = por %p193, %p194
    %p197 = scmp.ne.s32.totalorder %s182, %s196
    %p198 = scmp.eq.s32.totalorder %s20, 0
    %p199 = por %p197, %p198
    %s201 = sadd.s32 %s200, 1
    %p204 = scmp.eq.s32.totalorder %s14, 1
    %p205 = scmp.ne.s32.totalorder %s200, %s202
    %p206 = scmp.eq.s32.totalorder %s14, 0
    %p207 = por %p205, %p206
    %p208 = scmp.ne.s32.totalorder %s200, %s202
    %p209 = scmp.eq.s32.totalorder %s19, 1
    %p210 = por %p208, %p209
    %p211 = scmp.ne.s32.totalorder %s202, %s203
    %p212 = scmp.eq.s32.totalorder %s19, 0
    %p213 = por %p211, %p212
    %p214 = scmp.ne.s32.totalorder %s202, %s203
    %p215 = scmp.eq.s32.totalorder %s20, 1
    %p216 = por %p214, %p215
    %p218 = scmp.ne.s32.totalorder %s203, %s217
    %p219 = scmp.eq.s32.totalorder %s20, 0
    %p220 = por %p218, %p219
    %s221 = ssub.s32 %s21, %s33
    %s222 = ssub.s32 %s22, %s29
    %s223 = sor.u32 %s221, %s222
    %p224 = scmp.eq.s32.totalorder %s223, 0
    %s226 = sadd.s32 %s225, 1
    %s227 = scalar_select %p224, %s225, %s226
    %p230 = pneg %p224
    %p231 = scmp.eq.s32.totalorder %s14, 1
    %p232 = por %p230, %p231
    %p233 = scmp.ne.s32.totalorder %s225, %s228
    %p234 = scmp.eq.s32.totalorder %s14, 0
    %p235 = por %p233, %p234
    %p236 = scmp.ne.s32.totalorder %s225, %s228
    %p237 = scmp.eq.s32.totalorder %s19, 1
    %p238 = por %p236, %p237
    %p239 = scmp.ne.s32.totalorder %s228, %s229
    %p240 = scmp.eq.s32.totalorder %s19, 0
    %p241 = por %p239, %p240
    %p242 = scmp.ne.s32.totalorder %s228, %s229
    %p243 = scmp.eq.s32.totalorder %s20, 1
    %p244 = por %p242, %p243
    %p246 = scmp.ne.s32.totalorder %s229, %s245
    %p247 = scmp.eq.s32.totalorder %s20, 0
    %p248 = por %p246, %p247
    %p249 = scmp.le.s32.totalorder 1, %s14
    %p250 = scmp.lt.s32.totalorder %s14, 3
    %p251 = pnand %p249, %p250
    %p252 = pneg %p251
    // Predicated region
    $region9: #{decoder2_forward.3} parent=5 // pred_check
      _
    $region10: #{decoder2_forward.3} parent=5 // pred_check_branch
      %254 = sbr.rel (%p251) target = $region12
    $region11: #{decoder2_forward.3} parent=5 // pred_region
      %s255 = ssub.s32 %s14, 1
      // Predicated region
      $region13: #{decoder2_forward.3} parent=11 // pred_check
        %p256 = pneg %p129
      $region14: #{decoder2_forward.3} parent=11 // pred_check_branch
        %258 = sbr.rel (%p256) target = $region16
      $region15: #{decoder2_forward.3} parent=11 // pred_region
        _
      $region16: #{decoder2_forward.3} parent=11 // pred_fallthru
        _
      // Predicated region
      $region17: #{decoder2_forward.3} parent=11 // pred_check
        %p259 = pneg %p150
      $region18: #{decoder2_forward.3} parent=11 // pred_check_branch
        %261 = sbr.rel (%p259) target = $region20
      $region19: #{decoder2_forward.3} parent=11 // pred_region
        _
      $region20: #{decoder2_forward.3} parent=11 // pred_fallthru
        _
      // Predicated region
      $region21: #{decoder2_forward.3} parent=11 // pred_check
        %p262 = pneg %p171
      $region22: #{decoder2_forward.3} parent=11 // pred_check_branch
        %264 = sbr.rel (%p262) target = $region24
      $region23: #{decoder2_forward.3} parent=11 // pred_region
        _
      $region24: #{decoder2_forward.3} parent=11 // pred_fallthru
        _
      // Predicated region
      $region25: #{decoder2_forward.3} parent=11 // pred_check
        %p265 = pneg %p192
      $region26: #{decoder2_forward.3} parent=11 // pred_check_branch
        %267 = sbr.rel (%p265) target = $region28
      $region27: #{decoder2_forward.3} parent=11 // pred_region
        _
      $region28: #{decoder2_forward.3} parent=11 // pred_fallthru
        _
      // Predicated region
      $region29: #{decoder2_forward.3} parent=11 // pred_check
        %p268 = pneg %p213
      $region30: #{decoder2_forward.3} parent=11 // pred_check_branch
        %270 = sbr.rel (%p268) target = $region32
      $region31: #{decoder2_forward.3} parent=11 // pred_region
        _
      $region32: #{decoder2_forward.3} parent=11 // pred_fallthru
        _
    $region12: #{decoder2_forward.3} parent=5 // pred_fallthru
      _
    %p271 = scmp.lt.s32.totalorder %s14, 2
    // Predicated region
    $region33: #{decoder2_forward.3} parent=5 // pred_check
      %p272 = pneg %p271
    $region34: #{decoder2_forward.3} parent=5 // pred_check_branch
      %274 = sbr.rel (%p272) target = $region36
    $region35: #{decoder2_forward.3} parent=5 // pred_region
      // Predicated region
      $region37: #{decoder2_forward.3} parent=35 // pred_check
        %p275 = pneg %p48
      $region38: #{decoder2_forward.3} parent=35 // pred_check_branch
        %277 = sbr.rel (%p275) target = $region40
      $region39: #{decoder2_forward.3} parent=35 // pred_region
        %s278 = smul.u32 32, %s22
        %p279 = scmp.lt.s32.totalorder %s21, 1
        %s280 = scalar_select %p279, %s21, 1
        %p281 = scmp.lt.s32.totalorder %s278, 31
        %s282 = scalar_select %p281, %s278, 31
        %s283 = smul.addr %s280, 32
        %s284 = sadd.s32 %s282, %s283
        %s285 = smul.addr %s284, 4
        %s286 = scalar_lea.vmem %s0, %s285
        %s287 = smul.u32 32, %s22
      $region40: #{decoder2_forward.3} parent=35 // pred_fallthru
        _
      // Predicated region
      $region41: #{decoder2_forward.3} parent=35 // pred_check
        %p288 = pneg %p76
      $region42: #{decoder2_forward.3} parent=35 // pred_check_branch
        %290 = sbr.rel (%p288) target = $region44
      $region43: #{decoder2_forward.3} parent=35 // pred_region
        %s291 = smul.u32 32, %s22
        %p292 = scmp.lt.s32.totalorder %s21, 1
        %s293 = scalar_select %p292, %s21, 1
        %p294 = scmp.lt.s32.totalorder %s291, 31
        %s295 = scalar_select %p294, %s291, 31
        %s296 = smul.addr %s293, 32
        %s297 = sadd.s32 %s295, %s296
        %s298 = smul.addr %s297, 4
        %s299 = scalar_lea.vmem %s1, %s298
        %s300 = smul.u32 32, %s22
      $region44: #{decoder2_forward.3} parent=35 // pred_fallthru
        _
      // Predicated region
      $region45: #{decoder2_forward.3} parent=35 // pred_check
        %p301 = pneg %p102
      $region46: #{decoder2_forward.3} parent=35 // pred_check_branch
        %303 = sbr.rel (%p301) target = $region48
      $region47: #{decoder2_forward.3} parent=35 // pred_region
        %p304 = scmp.lt.s32.totalorder %s21, 1
        %s305 = scalar_select %p304, %s21, 1
        %s306 = scalar_lea.vmem %s2, %s305
      $region48: #{decoder2_forward.3} parent=35 // pred_fallthru
        _
    $region36: #{decoder2_forward.3} parent=5 // pred_fallthru
      _
    %p307 = scmp.le.s32.totalorder 1, %s14
    %p308 = scmp.lt.s32.totalorder %s14, 3
    %p309 = pnand %p307, %p308
    %p310 = pneg %p309
    // Predicated region
    $region49: #{decoder2_forward.3} parent=5 // pred_check
      _
    $region50: #{decoder2_forward.3} parent=5 // pred_check_branch
      %312 = sbr.rel (%p309) target = $region52
    $region51: #{decoder2_forward.3} parent=5 // pred_region
      %s313 = ssub.s32 %s14, 1
      %s314 = smul.u32 32, %s24
      %p315 = scmp.lt.s32.totalorder %s23, 1
      %s316 = scalar_select %p315, %s23, 1
      %p317 = scmp.lt.s32.totalorder %s314, 31
      %s318 = scalar_select %p317, %s314, 31
      %s319 = smul.addr %s316, 32
      %s320 = sadd.s32 %s318, %s319
      %s321 = smul.addr %s320, 4
      %s322 = scalar_lea.vmem %s0, %s321
      %p323 = pneg %p54
      %p324 = pneg %p51
      %s325 = smul.u32 32, %s24
      %p326 = scmp.lt.s32.totalorder %s23, 1
      %s327 = scalar_select %p326, %s23, 1
      %p328 = scmp.lt.s32.totalorder %s325, 31
      %s329 = scalar_select %p328, %s325, 31
      %s330 = smul.addr %s327, 32
      %s331 = sadd.s32 %s329, %s330
      %s332 = smul.addr %s331, 4
      %s333 = scalar_lea.vmem %s1, %s332
      %p334 = pneg %p82
      %p335 = pneg %p79
      %p336 = scmp.lt.s32.totalorder %s23, 1
      %s337 = scalar_select %p336, %s23, 1
      %s338 = scalar_lea.vmem %s2, %s337
      %p339 = pneg %p108
      %p340 = pneg %p105
      %p341 = pneg %p129
      %p342 = pneg %p126
      %p343 = pneg %p150
      %p344 = pneg %p147
      %p345 = pneg %p171
      %p346 = pneg %p168
      %p347 = pneg %p192
      %p348 = pneg %p189
      %p349 = pneg %p213
      %p350 = pneg %p210
      %p351 = pneg %p241
      %p352 = pneg %p238
      %s353 = smul.u32 32, %s24
      %p354 = scmp.lt.s32.totalorder %s23, 1
      %s355 = scalar_select %p354, %s23, 1
      %p356 = scmp.lt.s32.totalorder %s353, 31
      %s357 = scalar_select %p356, %s353, 31
      %s358 = smul.addr %s355, 32
      %s359 = sadd.s32 %s357, %s358
      %s360 = smul.addr %s359, 8
      %s361 = scalar_lea.vmem %s8, %s360
      %s362 = smul.u32 32, %s24
      %p363 = scmp.lt.s32.totalorder %s23, 1
      %s364 = scalar_select %p363, %s23, 1
      %p365 = scmp.lt.s32.totalorder %s362, 31
      %s366 = scalar_select %p365, %s362, 31
      %s367 = smul.addr %s364, 32
      %s368 = sadd.s32 %s366, %s367
      %s369 = smul.addr %s368, 4
      %s370 = scalar_lea.vmem %s0, %s369
      %s371 = smul.u32 32, %s24
      %s372 = smul.u32 32, %s24
      %p373 = scmp.lt.s32.totalorder %s23, 1
      %s374 = scalar_select %p373, %s23, 1
      %p375 = scmp.lt.s32.totalorder %s372, 31
      %s376 = scalar_select %p375, %s372, 31
      %s377 = smul.addr %s374, 32
      %s378 = sadd.s32 %s376, %s377
      %s379 = smul.addr %s378, 4
      %s380 = scalar_lea.vmem %s1, %s379
      %s381 = smul.u32 32, %s24
      %p382 = scmp.lt.s32.totalorder %s23, 1
      %s383 = scalar_select %p382, %s23, 1
      %s384 = scalar_lea.vmem %s2, %s383
      %s385 = smul.u32 32, %s24
      %p386 = scmp.lt.s32.totalorder %s23, 1
      %s387 = scalar_select %p386, %s23, 1
      %p388 = scmp.lt.s32.totalorder %s385, 31
      %s389 = scalar_select %p388, %s385, 31
      %s390 = smul.addr %s387, 32
      %s391 = sadd.s32 %s389, %s390
      %s392 = smul.addr %s391, 8
      %s393 = scalar_lea.vmem %s8, %s392
      %s394 = smul.u32 32, %s24
      %v396 = vld [vmem:[%s370] sm:$0xf]
      %v397 = vld [vmem:[%s370 + $0x4] sm:$0xf]
      %v398 = vld [vmem:[%s370 + $0x8] sm:$0xf]
      %v399 = vld [vmem:[%s370 + $0xc] sm:$0xf]
      %v400 = vld [vmem:[%s370 + $0x10] sm:$0xf]
      %v401 = vld [vmem:[%s370 + $0x14] sm:$0xf]
      %v402 = vld [vmem:[%s370 + $0x18] sm:$0xf]
      %v403 = vld [vmem:[%s370 + $0x1c] sm:$0xf]
      %v404 = vld [vmem:[%s370 + $0x20] sm:$0xf]
      %v405 = vld [vmem:[%s370 + $0x24] sm:$0xf]
      %v406 = vld [vmem:[%s370 + $0x28] sm:$0xf]
      %v407 = vld [vmem:[%s370 + $0x2c] sm:$0xf]
      %v408 = vld [vmem:[%s370 + $0x30] sm:$0xf]
      %v409 = vld [vmem:[%s370 + $0x34] sm:$0xf]
      %v410 = vld [vmem:[%s370 + $0x38] sm:$0xf]
      %v411 = vld [vmem:[%s370 + $0x3c] sm:$0xf]
      %v412 = vld [vmem:[%s370 + $0x40] sm:$0xf]
      %v413 = vld [vmem:[%s370 + $0x44] sm:$0xf]
      %v414 = vld [vmem:[%s370 + $0x48] sm:$0xf]
      %v415 = vld [vmem:[%s370 + $0x4c] sm:$0xf]
      %v416 = vld [vmem:[%s370 + $0x50] sm:$0xf]
      %v417 = vld [vmem:[%s370 + $0x54] sm:$0xf]
      %v418 = vld [vmem:[%s370 + $0x58] sm:$0xf]
      %v419 = vld [vmem:[%s370 + $0x5c] sm:$0xf]
      %v420 = vld [vmem:[%s370 + $0x60] sm:$0xf]
      %v421 = vld [vmem:[%s370 + $0x64] sm:$0xf]
      %v422 = vld [vmem:[%s370 + $0x68] sm:$0xf]
      %v423 = vld [vmem:[%s370 + $0x6c] sm:$0xf]
      %v424 = vld [vmem:[%s370 + $0x70] sm:$0xf]
      %v425 = vld [vmem:[%s370 + $0x74] sm:$0xf]
      %v426 = vld [vmem:[%s370 + $0x78] sm:$0xf]
      %v427 = vld [vmem:[%s370 + $0x7c] sm:$0xf]
      %v428 = vld [vmem:[%s380] sm:$0xf]
      %v429 = vld [vmem:[%s380 + $0x4] sm:$0xf]
      %v430 = vld [vmem:[%s380 + $0x8] sm:$0xf]
      %v431 = vld [vmem:[%s380 + $0xc] sm:$0xf]
      %v432 = vld [vmem:[%s380 + $0x10] sm:$0xf]
      %v433 = vld [vmem:[%s380 + $0x14] sm:$0xf]
      %v434 = vld [vmem:[%s380 + $0x18] sm:$0xf]
      %v435 = vld [vmem:[%s380 + $0x1c] sm:$0xf]
      %v436 = vld [vmem:[%s380 + $0x20] sm:$0xf]
      %v437 = vld [vmem:[%s380 + $0x24] sm:$0xf]
      %v438 = vld [vmem:[%s380 + $0x28] sm:$0xf]
      %v439 = vld [vmem:[%s380 + $0x2c] sm:$0xf]
      %v440 = vld [vmem:[%s380 + $0x30] sm:$0xf]
      %v441 = vld [vmem:[%s380 + $0x34] sm:$0xf]
      %v442 = vld [vmem:[%s380 + $0x38] sm:$0xf]
      %v443 = vld [vmem:[%s380 + $0x3c] sm:$0xf]
      %v444 = vld [vmem:[%s380 + $0x40] sm:$0xf]
      %v445 = vld [vmem:[%s380 + $0x44] sm:$0xf]
      %v446 = vld [vmem:[%s380 + $0x48] sm:$0xf]
      %v447 = vld [vmem:[%s380 + $0x4c] sm:$0xf]
      %v448 = vld [vmem:[%s380 + $0x50] sm:$0xf]
      %v449 = vld [vmem:[%s380 + $0x54] sm:$0xf]
      %v450 = vld [vmem:[%s380 + $0x58] sm:$0xf]
      %v451 = vld [vmem:[%s380 + $0x5c] sm:$0xf]
      %v452 = vld [vmem:[%s380 + $0x60] sm:$0xf]
      %v453 = vld [vmem:[%s380 + $0x64] sm:$0xf]
      %v454 = vld [vmem:[%s380 + $0x68] sm:$0xf]
      %v455 = vld [vmem:[%s380 + $0x6c] sm:$0xf]
      %v456 = vld [vmem:[%s380 + $0x70] sm:$0xf]
      %v457 = vld [vmem:[%s380 + $0x74] sm:$0xf]
      %v458 = vld [vmem:[%s380 + $0x78] sm:$0xf]
      %v459 = vld [vmem:[%s380 + $0x7c] sm:$0xf]
      %v460 = vld [vmem:[%s3] sm:$0xf]
      %v461 = vld [vmem:[%s3 + $0x4] sm:$0xf]
      %v462 = vld [vmem:[%s3 + $0x8] sm:$0xf]
      %v463 = vld [vmem:[%s3 + $0xc] sm:$0xf]
      %v464 = vld [vmem:[%s3 + $0x10] sm:$0xf]
      %v465 = vld [vmem:[%s3 + $0x14] sm:$0xf]
      %v466 = vld [vmem:[%s3 + $0x18] sm:$0xf]
      %v467 = vld [vmem:[%s3 + $0x1c] sm:$0xf]
      %v468 = vld [vmem:[%s3 + $0x20] sm:$0xf]
      %v469 = vld [vmem:[%s3 + $0x24] sm:$0xf]
      %v470 = vld [vmem:[%s3 + $0x28] sm:$0xf]
      %v471 = vld [vmem:[%s3 + $0x2c] sm:$0xf]
      %v472 = vld [vmem:[%s3 + $0x30] sm:$0xf]
      %v473 = vld [vmem:[%s3 + $0x34] sm:$0xf]
      %v474 = vld [vmem:[%s3 + $0x38] sm:$0xf]
      %v475 = vld [vmem:[%s3 + $0x3c] sm:$0xf]
      %v476 = vld [vmem:[%s4] sm:$0xf]
      %v477 = vld [vmem:[%s4 + $0x4] sm:$0xf]
      %v478 = vld [vmem:[%s4 + $0x8] sm:$0xf]
      %v479 = vld [vmem:[%s4 + $0xc] sm:$0xf]
      %v480 = vld [vmem:[%s4 + $0x10] sm:$0xf]
      %v481 = vld [vmem:[%s4 + $0x14] sm:$0xf]
      %v482 = vld [vmem:[%s4 + $0x18] sm:$0xf]
      %v483 = vld [vmem:[%s4 + $0x1c] sm:$0xf]
      %v484 = vld [vmem:[%s4 + $0x20] sm:$0xf]
      %v485 = vld [vmem:[%s4 + $0x24] sm:$0xf]
      %v486 = vld [vmem:[%s4 + $0x28] sm:$0xf]
      %v487 = vld [vmem:[%s4 + $0x2c] sm:$0xf]
      %v488 = vld [vmem:[%s4 + $0x30] sm:$0xf]
      %v489 = vld [vmem:[%s4 + $0x34] sm:$0xf]
      %v490 = vld [vmem:[%s4 + $0x38] sm:$0xf]
      %v491 = vld [vmem:[%s4 + $0x3c] sm:$0xf]
      %v524 = vunpack.c.l.b16 %v428
      %v525 = vunpack.c.l.b16 %v429
      %v526 = vunpack.c.l.b16 %v430
      %v527 = vunpack.c.l.b16 %v431
      %v528 = vunpack.c.l.b16 %v432
      %v529 = vunpack.c.l.b16 %v433
      %v530 = vunpack.c.l.b16 %v434
      %v531 = vunpack.c.l.b16 %v435
      %v532 = vunpack.c.l.b16 %v436
      %v533 = vunpack.c.l.b16 %v437
      %v534 = vunpack.c.l.b16 %v438
      %v535 = vunpack.c.l.b16 %v439
      %v536 = vunpack.c.l.b16 %v440
      %v537 = vunpack.c.l.b16 %v441
      %v538 = vunpack.c.l.b16 %v442
      %v539 = vunpack.c.l.b16 %v443
      %v540 = vunpack.c.l.b16 %v444
      %v541 = vunpack.c.l.b16 %v445
      %v542 = vunpack.c.l.b16 %v446
      %v543 = vunpack.c.l.b16 %v447
      %v544 = vunpack.c.l.b16 %v448
      %v545 = vunpack.c.l.b16 %v449
      %v546 = vunpack.c.l.b16 %v450
      %v547 = vunpack.c.l.b16 %v451
      %v548 = vunpack.c.l.b16 %v452
      %v549 = vunpack.c.l.b16 %v453
      %v550 = vunpack.c.l.b16 %v454
      %v551 = vunpack.c.l.b16 %v455
      %v552 = vunpack.c.l.b16 %v456
      %v553 = vunpack.c.l.b16 %v457
      %v554 = vunpack.c.l.b16 %v458
      %v555 = vunpack.c.l.b16 %v459
      %v556 = vpack.c.b16 %v525, %v524
      %v557 = vpack.c.b16 %v527, %v526
      %v558 = vpack.c.b16 %v529, %v528
      %v559 = vpack.c.b16 %v531, %v530
      %v560 = vpack.c.b16 %v533, %v532
      %v561 = vpack.c.b16 %v535, %v534
      %v562 = vpack.c.b16 %v537, %v536
      %v563 = vpack.c.b16 %v539, %v538
      %v564 = vpack.c.b16 %v541, %v540
      %v565 = vpack.c.b16 %v543, %v542
      %v566 = vpack.c.b16 %v545, %v544
      %v567 = vpack.c.b16 %v547, %v546
      %v568 = vpack.c.b16 %v549, %v548
      %v569 = vpack.c.b16 %v551, %v550
      %v570 = vpack.c.b16 %v553, %v552
      %v571 = vpack.c.b16 %v555, %v554
      %v604 = vunpack.c.l.b16 %v476
      %v605 = vunpack.c.l.b16 %v477
      %v606 = vunpack.c.l.b16 %v478
      %v607 = vunpack.c.l.b16 %v479
      %v608 = vunpack.c.l.b16 %v480
      %v609 = vunpack.c.l.b16 %v481
      %v610 = vunpack.c.l.b16 %v482
      %v611 = vunpack.c.l.b16 %v483
      %v612 = vunpack.c.l.b16 %v484
      %v613 = vunpack.c.l.b16 %v485
      %v614 = vunpack.c.l.b16 %v486
      %v615 = vunpack.c.l.b16 %v487
      %v616 = vunpack.c.l.b16 %v488
      %v617 = vunpack.c.l.b16 %v489
      %v618 = vunpack.c.l.b16 %v490
      %v619 = vunpack.c.l.b16 %v491
      %v620 = vpack.c.b16 %v605, %v604
      %v621 = vpack.c.b16 %v607, %v606
      %v622 = vpack.c.b16 %v609, %v608
      %v623 = vpack.c.b16 %v611, %v610
      %v624 = vpack.c.b16 %v613, %v612
      %v625 = vpack.c.b16 %v615, %v614
      %v626 = vpack.c.b16 %v617, %v616
      %v627 = vpack.c.b16 %v619, %v618
      %636 = vmatprep.subr.bf16.mxu0 0
      %637 = vmatpush1.bf16.msra.mxu0 %v620
      %638 = vmatprep.subr.bf16.mxu0 0
      %639 = vmatpush1.bf16.msra.mxu0 %v621
      %640 = vmatprep.subr.bf16.mxu0 0
      %641 = vmatpush1.bf16.msra.mxu0 %v622
      %642 = vmatprep.subr.bf16.mxu0 0
      %643 = vmatpush1.bf16.msra.mxu0 %v623
      %644 = vmatprep.subr.bf16.mxu0 0
      %645 = vmatpush1.bf16.msra.mxu0 %v624
      %646 = vmatprep.subr.bf16.mxu0 0
      %647 = vmatpush1.bf16.msra.mxu0 %v625
      %648 = vmatprep.subr.bf16.mxu0 0
      %649 = vmatpush1.bf16.msra.mxu0 %v626
      %650 = vmatprep.subr.bf16.mxu0 0
      %651 = vmatpush1.bf16.msra.mxu0 %v627
      %652 = vmatprep.subr.bf16.mxu0 0
      %653 = vmatpush1.bf16.msra.mxu0 0
      %654 = vmatprep.subr.bf16.mxu0 0
      %655 = vmatpush1.bf16.msra.mxu0 0
      %656 = vmatprep.subr.bf16.mxu0 0
      %657 = vmatpush1.bf16.msra.mxu0 0
      %658 = vmatprep.subr.bf16.mxu0 0
      %659 = vmatpush1.bf16.msra.mxu0 0
      %660 = vmatprep.subr.bf16.mxu0 0
      %661 = vmatpush1.bf16.msra.mxu0 0
      %662 = vmatprep.subr.bf16.mxu0 0
      %663 = vmatpush1.bf16.msra.mxu0 0
      %664 = vmatprep.subr.bf16.mxu0 0
      %665 = vmatpush1.bf16.msra.mxu0 0
      %666 = vmatprep.subr.bf16.mxu0 0
      %667 = vmatpush1.bf16.msra.mxu0 0
      %668 = vmatprep.mubr.bf16.mxu0 0
      %669 = vmatmul.mubr.bf16.gmra.mrb[0].mxu0 %v556
      %v670 = vpop.f32.mrb[0].mxu0
      %v671 = vadd.f32 0.0, %v670
      %v672 = vpop.f32.mrb[0].mxu0
      %v673 = vpop.f32.mrb[0].mxu0
      %v674 = vadd.f32 0.0, %v673
      %v675 = vpop.f32.mrb[0].mxu0
      %676 = vmatprep.mubr.bf16.mxu0 0
      %677 = vmatmul.mubr.bf16.gmra.mrb[0].mxu0 %v557
      %v678 = vpop.f32.mrb[0].mxu0
      %v679 = vadd.f32 0.0, %v678
      %v680 = vpop.f32.mrb[0].mxu0
      %v681 = vpop.f32.mrb[0].mxu0
      %v682 = vadd.f32 0.0, %v681
      %v683 = vpop.f32.mrb[0].mxu0
      %684 = vmatprep.mubr.bf16.mxu0 0
      %685 = vmatmul.mubr.bf16.gmra.mrb[0].mxu0 %v558
      %v686 = vpop.f32.mrb[0].mxu0
      %v687 = vadd.f32 0.0, %v686
      %v688 = vpop.f32.mrb[0].mxu0
      %v689 = vpop.f32.mrb[0].mxu0
      %v690 = vadd.f32 0.0, %v689
      %v691 = vpop.f32.mrb[0].mxu0
      %692 = vmatprep.mubr.bf16.mxu0 0
      %693 = vmatmul.mubr.bf16.gmra.mrb[0].mxu0 %v559
      %v694 = vpop.f32.mrb[0].mxu0
      %v695 = vadd.f32 0.0, %v694
      %v696 = vpop.f32.mrb[0].mxu0
      %v697 = vpop.f32.mrb[0].mxu0
      %v698 = vadd.f32 0.0, %v697
      %v699 = vpop.f32.mrb[0].mxu0
      %700 = vmatprep.mubr.bf16.mxu0 0
      %701 = vmatmul.mubr.bf16.gmra.mrb[0].mxu0 %v560
      %v702 = vpop.f32.mrb[0].mxu0
      %v703 = vadd.f32 0.0, %v702
      %v704 = vpop.f32.mrb[0].mxu0
      %v705 = vpop.f32.mrb[0].mxu0
      %v706 = vadd.f32 0.0, %v705
      %v707 = vpop.f32.mrb[0].mxu0
      %708 = vmatprep.mubr.bf16.mxu0 0
      %709 = vmatmul.mubr.bf16.gmra.mrb[0].mxu0 %v561
      %v710 = vpop.f32.mrb[0].mxu0
      %v711 = vadd.f32 0.0, %v710
      %v712 = vpop.f32.mrb[0].mxu0
      %v713 = vpop.f32.mrb[0].mxu0
      %v714 = vadd.f32 0.0, %v713
      %v715 = vpop.f32.mrb[0].mxu0
      %716 = vmatprep.mubr.bf16.mxu0 0
      %717 = vmatmul.mubr.bf16.gmra.mrb[0].mxu0 %v562
      %v718 = vpop.f32.mrb[0].mxu0
      %v719 = vadd.f32 0.0, %v718
      %v720 = vpop.f32.mrb[0].mxu0
      %v721 = vpop.f32.mrb[0].mxu0
      %v722 = vadd.f32 0.0, %v721
      %v723 = vpop.f32.mrb[0].mxu0
      %724 = vmatprep.mubr.bf16.mxu0 0
      %725 = vmatmul.mubr.bf16.gmra.mrb[0].mxu0 %v563
      %v726 = vpop.f32.mrb[0].mxu0
      %v727 = vadd.f32 0.0, %v726
      %v728 = vpop.f32.mrb[0].mxu0
      %v729 = vpop.f32.mrb[0].mxu0
      %v730 = vadd.f32 0.0, %v729
      %v731 = vpop.f32.mrb[0].mxu0
      %732 = vmatprep.mubr.bf16.mxu0 0
      %733 = vmatmul.mubr.bf16.gmra.mrb[0].mxu0 %v564
      %v734 = vpop.f32.mrb[0].mxu0
      %v735 = vadd.f32 0.0, %v734
      %v736 = vpop.f32.mrb[0].mxu0
      %v737 = vpop.f32.mrb[0].mxu0
      %v738 = vadd.f32 0.0, %v737
      %v739 = vpop.f32.mrb[0].mxu0
      %740 = vmatprep.mubr.bf16.mxu0 0
      %741 = vmatmul.mubr.bf16.gmra.mrb[0].mxu0 %v565
      %v742 = vpop.f32.mrb[0].mxu0
      %v743 = vadd.f32 0.0, %v742
      %v744 = vpop.f32.mrb[0].mxu0
      %v745 = vpop.f32.mrb[0].mxu0
      %v746 = vadd.f32 0.0, %v745
      %v747 = vpop.f32.mrb[0].mxu0
      %748 = vmatprep.mubr.bf16.mxu0 0
      %749 = vmatmul.mubr.bf16.gmra.mrb[0].mxu0 %v566
      %v750 = vpop.f32.mrb[0].mxu0
      %v751 = vadd.f32 0.0, %v750
      %v752 = vpop.f32.mrb[0].mxu0
      %v753 = vpop.f32.mrb[0].mxu0
      %v754 = vadd.f32 0.0, %v753
      %v755 = vpop.f32.mrb[0].mxu0
      %756 = vmatprep.mubr.bf16.mxu0 0
      %757 = vmatmul.mubr.bf16.gmra.mrb[0].mxu0 %v567
      %v758 = vpop.f32.mrb[0].mxu0
      %v759 = vadd.f32 0.0, %v758
      %v760 = vpop.f32.mrb[0].mxu0
      %v761 = vpop.f32.mrb[0].mxu0
      %v762 = vadd.f32 0.0, %v761
      %v763 = vpop.f32.mrb[0].mxu0
      %764 = vmatprep.mubr.bf16.mxu0 0
      %765 = vmatmul.mubr.bf16.gmra.mrb[0].mxu0 %v568
      %v766 = vpop.f32.mrb[0].mxu0
      %v767 = vadd.f32 0.0, %v766
      %v768 = vpop.f32.mrb[0].mxu0
      %v769 = vpop.f32.mrb[0].mxu0
      %v770 = vadd.f32 0.0, %v769
      %v771 = vpop.f32.mrb[0].mxu0
      %772 = vmatprep.mubr.bf16.mxu0 0
      %773 = vmatmul.mubr.bf16.gmra.mrb[0].mxu0 %v569
      %v774 = vpop.f32.mrb[0].mxu0
      %v775 = vadd.f32 0.0, %v774
      %v776 = vpop.f32.mrb[0].mxu0
      %v777 = vpop.f32.mrb[0].mxu0
      %v778 = vadd.f32 0.0, %v777
      %v779 = vpop.f32.mrb[0].mxu0
      %780 = vmatprep.mubr.bf16.mxu0 0
      %781 = vmatmul.mubr.bf16.gmra.mrb[0].mxu0 %v570
      %v782 = vpop.f32.mrb[0].mxu0
      %v783 = vadd.f32 0.0, %v782
      %v784 = vpop.f32.mrb[0].mxu0
      %v785 = vpop.f32.mrb[0].mxu0
      %v786 = vadd.f32 0.0, %v785
      %v787 = vpop.f32.mrb[0].mxu0
      %788 = vmatprep.mubr.bf16.mxu0 0
      %789 = vmatmul.mubr.bf16.gmra.mrb[0].mxu0 %v571
      %v790 = vpop.f32.mrb[0].mxu0
      %v791 = vadd.f32 0.0, %v790
      %v792 = vpop.f32.mrb[0].mxu0
      %v793 = vpop.f32.mrb[0].mxu0
      %v794 = vadd.f32 0.0, %v793
      %v795 = vpop.f32.mrb[0].mxu0
      %796 = vdwg.mxu0
      %v829 = vunpack.c.l.b16 %v396
      %v830 = vunpack.c.l.b16 %v397
      %v831 = vunpack.c.l.b16 %v398
      %v832 = vunpack.c.l.b16 %v399
      %v833 = vunpack.c.l.b16 %v400
      %v834 = vunpack.c.l.b16 %v401
      %v835 = vunpack.c.l.b16 %v402
      %v836 = vunpack.c.l.b16 %v403
      %v837 = vunpack.c.l.b16 %v404
      %v838 = vunpack.c.l.b16 %v405
      %v839 = vunpack.c.l.b16 %v406
      %v840 = vunpack.c.l.b16 %v407
      %v841 = vunpack.c.l.b16 %v408
      %v842 = vunpack.c.l.b16 %v409
      %v843 = vunpack.c.l.b16 %v410
      %v844 = vunpack.c.l.b16 %v411
      %v845 = vunpack.c.l.b16 %v412
      %v846 = vunpack.c.l.b16 %v413
      %v847 = vunpack.c.l.b16 %v414
      %v848 = vunpack.c.l.b16 %v415
      %v849 = vunpack.c.l.b16 %v416
      %v850 = vunpack.c.l.b16 %v417
      %v851 = vunpack.c.l.b16 %v418
      %v852 = vunpack.c.l.b16 %v419
      %v853 = vunpack.c.l.b16 %v420
      %v854 = vunpack.c.l.b16 %v421
      %v855 = vunpack.c.l.b16 %v422
      %v856 = vunpack.c.l.b16 %v423
      %v857 = vunpack.c.l.b16 %v424
      %v858 = vunpack.c.l.b16 %v425
      %v859 = vunpack.c.l.b16 %v426
      %v860 = vunpack.c.l.b16 %v427
      %v861 = vpack.c.b16 %v830, %v829
      %v862 = vpack.c.b16 %v832, %v831
      %v863 = vpack.c.b16 %v834, %v833
      %v864 = vpack.c.b16 %v836, %v835
      %v865 = vpack.c.b16 %v838, %v837
      %v866 = vpack.c.b16 %v840, %v839
      %v867 = vpack.c.b16 %v842, %v841
      %v868 = vpack.c.b16 %v844, %v843
      %v869 = vpack.c.b16 %v846, %v845
      %v870 = vpack.c.b16 %v848, %v847
      %v871 = vpack.c.b16 %v850, %v849
      %v872 = vpack.c.b16 %v852, %v851
      %v873 = vpack.c.b16 %v854, %v853
      %v874 = vpack.c.b16 %v856, %v855
      %v875 = vpack.c.b16 %v858, %v857
      %v876 = vpack.c.b16 %v860, %v859
      %v909 = vunpack.c.l.b16 %v460
      %v910 = vunpack.c.l.b16 %v461
      %v911 = vunpack.c.l.b16 %v462
      %v912 = vunpack.c.l.b16 %v463
      %v913 = vunpack.c.l.b16 %v464
      %v914 = vunpack.c.l.b16 %v465
      %v915 = vunpack.c.l.b16 %v466
      %v916 = vunpack.c.l.b16 %v467
      %v917 = vunpack.c.l.b16 %v468
      %v918 = vunpack.c.l.b16 %v469
      %v919 = vunpack.c.l.b16 %v470
      %v920 = vunpack.c.l.b16 %v471
      %v921 = vunpack.c.l.b16 %v472
      %v922 = vunpack.c.l.b16 %v473
      %v923 = vunpack.c.l.b16 %v474
      %v924 = vunpack.c.l.b16 %v475
      %v925 = vpack.c.b16 %v910, %v909
      %v926 = vpack.c.b16 %v912, %v911
      %v927 = vpack.c.b16 %v914, %v913
      %v928 = vpack.c.b16 %v916, %v915
      %v929 = vpack.c.b16 %v918, %v917
      %v930 = vpack.c.b16 %v920, %v919
      %v931 = vpack.c.b16 %v922, %v921
      %v932 = vpack.c.b16 %v924, %v923
      %941 = vmatprep.subr.bf16.mxu0 0
      %942 = vmatpush1.bf16.msra.mxu0 %v925
      %943 = vmatprep.subr.bf16.mxu0 0
      %944 = vmatpush1.bf16.msra.mxu0 %v926
      %945 = vmatprep.subr.bf16.mxu0 0
      %946 = vmatpush1.bf16.msra.mxu0 %v927
      %947 = vmatprep.subr.bf16.mxu0 0
      %948 = vmatpush1.bf16.msra.mxu0 %v928
      %949 = vmatprep.subr.bf16.mxu0 0
      %950 = vmatpush1.bf16.msra.mxu0 %v929
      %951 = vmatprep.subr.bf16.mxu0 0
      %952 = vmatpush1.bf16.msra.mxu0 %v930
      %953 = vmatprep.subr.bf16.mxu0 0
      %954 = vmatpush1.bf16.msra.mxu0 %v931
      %955 = vmatprep.subr.bf16.mxu0 0
      %956 = vmatpush1.bf16.msra.mxu0 %v932
      %957 = vmatprep.subr.bf16.mxu0 0
      %958 = vmatpush1.bf16.msra.mxu0 0
      %959 = vmatprep.subr.bf16.mxu0 0
      %960 = vmatpush1.bf16.msra.mxu0 0
      %961 = vmatprep.subr.bf16.mxu0 0
      %962 = vmatpush1.bf16.msra.mxu0 0
      %963 = vmatprep.subr.bf16.mxu0 0
      %964 = vmatpush1.bf16.msra.mxu0 0
      %965 = vmatprep.subr.bf16.mxu0 0
      %966 = vmatpush1.bf16.msra.mxu0 0
      %967 = vmatprep.subr.bf16.mxu0 0
      %968 = vmatpush1.bf16.msra.mxu0 0
      %969 = vmatprep.subr.bf16.mxu0 0
      %970 = vmatpush1.bf16.msra.mxu0 0
      %971 = vmatprep.subr.bf16.mxu0 0
      %972 = vmatpush1.bf16.msra.mxu0 0
      %973 = vmatprep.mubr.bf16.mxu0 0
      %974 = vmatmul.mubr.bf16.gmra.mrb[0].mxu0 %v861
      %v975 = vpop.f32.mrb[0].mxu0
      %v976 = vadd.f32 %v671, %v975
      %v977 = vpop.f32.mrb[0].mxu0
      %v978 = vpop.f32.mrb[0].mxu0
      %v979 = vadd.f32 %v674, %v978
      %v980 = vpop.f32.mrb[0].mxu0
      %981 = vmatprep.mubr.bf16.mxu0 0
      %982 = vmatmul.mubr.bf16.gmra.mrb[0].mxu0 %v862
      %v983 = vpop.f32.mrb[0].mxu0
      %v984 = vadd.f32 %v679, %v983
      %v985 = vpop.f32.mrb[0].mxu0
      %v986 = vpop.f32.mrb[0].mxu0
      %v987 = vadd.f32 %v682, %v986
      %v988 = vpop.f32.mrb[0].mxu0
      %989 = vmatprep.mubr.bf16.mxu0 0
      %990 = vmatmul.mubr.bf16.gmra.mrb[0].mxu0 %v863
      %v991 = vpop.f32.mrb[0].mxu0
      %v992 = vadd.f32 %v687, %v991
      %v993 = vpop.f32.mrb[0].mxu0
      %v994 = vpop.f32.mrb[0].mxu0
      %v995 = vadd.f32 %v690, %v994
      %v996 = vpop.f32.mrb[0].mxu0
      %997 = vmatprep.mubr.bf16.mxu0 0
      %998 = vmatmul.mubr.bf16.gmra.mrb[0].mxu0 %v864
      %v999 = vpop.f32.mrb[0].mxu0
      %v1000 = vadd.f32 %v695, %v999
      %v1001 = vpop.f32.mrb[0].mxu0
      %v1002 = vpop.f32.mrb[0].mxu0
      %v1003 = vadd.f32 %v698, %v1002
      %v1004 = vpop.f32.mrb[0].mxu0
      %1005 = vmatprep.mubr.bf16.mxu0 0
      %1006 = vmatmul.mubr.bf16.gmra.mrb[0].mxu0 %v865
      %v1007 = vpop.f32.mrb[0].mxu0
      %v1008 = vadd.f32 %v703, %v1007
      %v1009 = vpop.f32.mrb[0].mxu0
      %v1010 = vpop.f32.mrb[0].mxu0
      %v1011 = vadd.f32 %v706, %v1010
      %v1012 = vpop.f32.mrb[0].mxu0
      %1013 = vmatprep.mubr.bf16.mxu0 0
      %1014 = vmatmul.mubr.bf16.gmra.mrb[0].mxu0 %v866
      %v1015 = vpop.f32.mrb[0].mxu0
      %v1016 = vadd.f32 %v711, %v1015
      %v1017 = vpop.f32.mrb[0].mxu0
      %v1018 = vpop.f32.mrb[0].mxu0
      %v1019 = vadd.f32 %v714, %v1018
      %v1020 = vpop.f32.mrb[0].mxu0
      %1021 = vmatprep.mubr.bf16.mxu0 0
      %1022 = vmatmul.mubr.bf16.gmra.mrb[0].mxu0 %v867
      %v1023 = vpop.f32.mrb[0].mxu0
      %v1024 = vadd.f32 %v719, %v1023
      %v1025 = vpop.f32.mrb[0].mxu0
      %v1026 = vpop.f32.mrb[0].mxu0
      %v1027 = vadd.f32 %v722, %v1026
      %v1028 = vpop.f32.mrb[0].mxu0
      %1029 = vmatprep.mubr.bf16.mxu0 0
      %1030 = vmatmul.mubr.bf16.gmra.mrb[0].mxu0 %v868
      %v1031 = vpop.f32.mrb[0].mxu0
      %v1032 = vadd.f32 %v727, %v1031
      %v1033 = vpop.f32.mrb[0].mxu0
      %v1034 = vpop.f32.mrb[0].mxu0
      %v1035 = vadd.f32 %v730, %v1034
      %v1036 = vpop.f32.mrb[0].mxu0
      %1037 = vmatprep.mubr.bf16.mxu0 0
      %1038 = vmatmul.mubr.bf16.gmra.mrb[0].mxu0 %v869
      %v1039 = vpop.f32.mrb[0].mxu0
      %v1040 = vadd.f32 %v735, %v1039
      %v1041 = vpop.f32.mrb[0].mxu0
      %v1042 = vpop.f32.mrb[0].mxu0
      %v1043 = vadd.f32 %v738, %v1042
      %v1044 = vpop.f32.mrb[0].mxu0
      %1045 = vmatprep.mubr.bf16.mxu0 0
      %1046 = vmatmul.mubr.bf16.gmra.mrb[0].mxu0 %v870
      %v1047 = vpop.f32.mrb[0].mxu0
      %v1048 = vadd.f32 %v743, %v1047
      %v1049 = vpop.f32.mrb[0].mxu0
      %v1050 = vpop.f32.mrb[0].mxu0
      %v1051 = vadd.f32 %v746, %v1050
      %v1052 = vpop.f32.mrb[0].mxu0
      %1053 = vmatprep.mubr.bf16.mxu0 0
      %1054 = vmatmul.mubr.bf16.gmra.mrb[0].mxu0 %v871
      %v1055 = vpop.f32.mrb[0].mxu0
      %v1056 = vadd.f32 %v751, %v1055
      %v1057 = vpop.f32.mrb[0].mxu0
      %v1058 = vpop.f32.mrb[0].mxu0
      %v1059 = vadd.f32 %v754, %v1058
      %v1060 = vpop.f32.mrb[0].mxu0
      %1061 = vmatprep.mubr.bf16.mxu0 0
      %1062 = vmatmul.mubr.bf16.gmra.mrb[0].mxu0 %v872
      %v1063 = vpop.f32.mrb[0].mxu0
      %v1064 = vadd.f32 %v759, %v1063
      %v1065 = vpop.f32.mrb[0].mxu0
      %v1066 = vpop.f32.mrb[0].mxu0
      %v1067 = vadd.f32 %v762, %v1066
      %v1068 = vpop.f32.mrb[0].mxu0
      %1069 = vmatprep.mubr.bf16.mxu0 0
      %1070 = vmatmul.mubr.bf16.gmra.mrb[0].mxu0 %v873
      %v1071 = vpop.f32.mrb[0].mxu0
      %v1072 = vadd.f32 %v767, %v1071
      %v1073 = vpop.f32.mrb[0].mxu0
      %v1074 = vpop.f32.mrb[0].mxu0
      %v1075 = vadd.f32 %v770, %v1074
      %v1076 = vpop.f32.mrb[0].mxu0
      %1077 = vmatprep.mubr.bf16.mxu0 0
      %1078 = vmatmul.mubr.bf16.gmra.mrb[0].mxu0 %v874
      %v1079 = vpop.f32.mrb[0].mxu0
      %v1080 = vadd.f32 %v775, %v1079
      %v1081 = vpop.f32.mrb[0].mxu0
      %v1082 = vpop.f32.mrb[0].mxu0
      %v1083 = vadd.f32 %v778, %v1082
      %v1084 = vpop.f32.mrb[0].mxu0
      %1085 = vmatprep.mubr.bf16.mxu0 0
      %1086 = vmatmul.mubr.bf16.gmra.mrb[0].mxu0 %v875
      %v1087 = vpop.f32.mrb[0].mxu0
      %v1088 = vadd.f32 %v783, %v1087
      %v1089 = vpop.f32.mrb[0].mxu0
      %v1090 = vpop.f32.mrb[0].mxu0
      %v1091 = vadd.f32 %v786, %v1090
      %v1092 = vpop.f32.mrb[0].mxu0
      %1093 = vmatprep.mubr.bf16.mxu0 0
      %1094 = vmatmul.mubr.bf16.gmra.mrb[0].mxu0 %v876
      %v1095 = vpop.f32.mrb[0].mxu0
      %v1096 = vadd.f32 %v791, %v1095
      %v1097 = vpop.f32.mrb[0].mxu0
      %v1098 = vpop.f32.mrb[0].mxu0
      %v1099 = vadd.f32 %v794, %v1098
      %v1100 = vpop.f32.mrb[0].mxu0
      %1101 = vdwg.mxu0
      %v1102 = vld [vmem:[%s5] sm:$0x1]
      %v1104 = vlaneseq
      %v1105 = vshrl.u32 %v1104, 7
      %v1106 = vsub.s32 0, %v1105
      %v1107 = vrot.slane %v1102, %v1106
      %v1109 = vadd.f32 %v976, %v1107
      %v1110 = vadd.f32 %v979, %v1107
      %v1111 = vadd.f32 %v984, %v1107
      %v1112 = vadd.f32 %v987, %v1107
      %v1113 = vadd.f32 %v992, %v1107
      %v1114 = vadd.f32 %v995, %v1107
      %v1115 = vadd.f32 %v1000, %v1107
      %v1116 = vadd.f32 %v1003, %v1107
      %v1117 = vadd.f32 %v1008, %v1107
      %v1118 = vadd.f32 %v1011, %v1107
      %v1119 = vadd.f32 %v1016, %v1107
      %v1120 = vadd.f32 %v1019, %v1107
      %v1121 = vadd.f32 %v1024, %v1107
      %v1122 = vadd.f32 %v1027, %v1107
      %v1123 = vadd.f32 %v1032, %v1107
      %v1124 = vadd.f32 %v1035, %v1107
      %v1125 = vadd.f32 %v1040, %v1107
      %v1126 = vadd.f32 %v1043, %v1107
      %v1127 = vadd.f32 %v1048, %v1107
      %v1128 = vadd.f32 %v1051, %v1107
      %v1129 = vadd.f32 %v1056, %v1107
      %v1130 = vadd.f32 %v1059, %v1107
      %v1131 = vadd.f32 %v1064, %v1107
      %v1132 = vadd.f32 %v1067, %v1107
      %v1133 = vadd.f32 %v1072, %v1107
      %v1134 = vadd.f32 %v1075, %v1107
      %v1135 = vadd.f32 %v1080, %v1107
      %v1136 = vadd.f32 %v1083, %v1107
      %v1137 = vadd.f32 %v1088, %v1107
      %v1138 = vadd.f32 %v1091, %v1107
      %v1139 = vadd.f32 %v1096, %v1107
      %v1140 = vadd.f32 %v1099, %v1107
      %v1141 = vmax.f32 %v1109, 0.0
      %v1142 = vmax.f32 %v1110, 0.0
      %v1143 = vmax.f32 %v1111, 0.0
      %v1144 = vmax.f32 %v1112, 0.0
      %v1145 = vmax.f32 %v1113, 0.0
      %v1146 = vmax.f32 %v1114, 0.0
      %v1147 = vmax.f32 %v1115, 0.0
      %v1148 = vmax.f32 %v1116, 0.0
      %v1149 = vmax.f32 %v1117, 0.0
      %v1150 = vmax.f32 %v1118, 0.0
      %v1151 = vmax.f32 %v1119, 0.0
      %v1152 = vmax.f32 %v1120, 0.0
      %v1153 = vmax.f32 %v1121, 0.0
      %v1154 = vmax.f32 %v1122, 0.0
      %v1155 = vmax.f32 %v1123, 0.0
      %v1156 = vmax.f32 %v1124, 0.0
      %v1157 = vmax.f32 %v1125, 0.0
      %v1158 = vmax.f32 %v1126, 0.0
      %v1159 = vmax.f32 %v1127, 0.0
      %v1160 = vmax.f32 %v1128, 0.0
      %v1161 = vmax.f32 %v1129, 0.0
      %v1162 = vmax.f32 %v1130, 0.0
      %v1163 = vmax.f32 %v1131, 0.0
      %v1164 = vmax.f32 %v1132, 0.0
      %v1165 = vmax.f32 %v1133, 0.0
      %v1166 = vmax.f32 %v1134, 0.0
      %v1167 = vmax.f32 %v1135, 0.0
      %v1168 = vmax.f32 %v1136, 0.0
      %v1169 = vmax.f32 %v1137, 0.0
      %v1170 = vmax.f32 %v1138, 0.0
      %v1171 = vmax.f32 %v1139, 0.0
      %v1172 = vmax.f32 %v1140, 0.0
      %v1173 = vpack.c.bf16 %v1142, %v1141
      %v1174 = vpack.c.bf16 %v1144, %v1143
      %v1175 = vpack.c.bf16 %v1146, %v1145
      %v1176 = vpack.c.bf16 %v1148, %v1147
      %v1177 = vpack.c.bf16 %v1150, %v1149
      %v1178 = vpack.c.bf16 %v1152, %v1151
      %v1179 = vpack.c.bf16 %v1154, %v1153
      %v1180 = vpack.c.bf16 %v1156, %v1155
      %v1181 = vpack.c.bf16 %v1158, %v1157
      %v1182 = vpack.c.bf16 %v1160, %v1159
      %v1183 = vpack.c.bf16 %v1162, %v1161
      %v1184 = vpack.c.bf16 %v1164, %v1163
      %v1185 = vpack.c.bf16 %v1166, %v1165
      %v1186 = vpack.c.bf16 %v1168, %v1167
      %v1187 = vpack.c.bf16 %v1170, %v1169
      %v1188 = vpack.c.bf16 %v1172, %v1171
      %v1189 = vld [vmem:[%s6] sm:$0xf]
      %v1190 = vld [vmem:[%s6 + $0x4] sm:$0xf]
      %v1191 = vld [vmem:[%s6 + $0x8] sm:$0xf]
      %v1192 = vld [vmem:[%s6 + $0xc] sm:$0xf]
      %v1193 = vld [vmem:[%s6 + $0x10] sm:$0xf]
      %v1194 = vld [vmem:[%s6 + $0x14] sm:$0xf]
      %v1195 = vld [vmem:[%s6 + $0x18] sm:$0xf]
      %v1196 = vld [vmem:[%s6 + $0x1c] sm:$0xf]
      %v1197 = vld [vmem:[%s6 + $0x20] sm:$0xf]
      %v1198 = vld [vmem:[%s6 + $0x24] sm:$0xf]
      %v1199 = vld [vmem:[%s6 + $0x28] sm:$0xf]
      %v1200 = vld [vmem:[%s6 + $0x2c] sm:$0xf]
      %v1201 = vld [vmem:[%s6 + $0x30] sm:$0xf]
      %v1202 = vld [vmem:[%s6 + $0x34] sm:$0xf]
      %v1203 = vld [vmem:[%s6 + $0x38] sm:$0xf]
      %v1204 = vld [vmem:[%s6 + $0x3c] sm:$0xf]
      %v1205 = vld [vmem:[%s7] sm:$0x1]
      %v1207 = vlaneseq
      %v1208 = vshrl.u32 %v1207, 7
      %v1209 = vsub.s32 0, %v1208
      %v1210 = vrot.slane %v1205, %v1209
      %v1228 = vunpack.c.l.b16 %v1189
      %v1229 = vunpack.c.l.b16 %v1190
      %v1230 = vunpack.c.l.b16 %v1191
      %v1231 = vunpack.c.l.b16 %v1192
      %v1232 = vunpack.c.l.b16 %v1193
      %v1233 = vunpack.c.l.b16 %v1194
      %v1234 = vunpack.c.l.b16 %v1195
      %v1235 = vunpack.c.l.b16 %v1196
      %v1236 = vunpack.c.l.b16 %v1197
      %v1237 = vunpack.c.l.b16 %v1198
      %v1238 = vunpack.c.l.b16 %v1199
      %v1239 = vunpack.c.l.b16 %v1200
      %v1240 = vunpack.c.l.b16 %v1201
      %v1241 = vunpack.c.l.b16 %v1202
      %v1242 = vunpack.c.l.b16 %v1203
      %v1243 = vunpack.c.l.b16 %v1204
      %v1244 = vpack.c.b16 %v1229, %v1228
      %v1245 = vpack.c.b16 %v1231, %v1230
      %v1246 = vpack.c.b16 %v1233, %v1232
      %v1247 = vpack.c.b16 %v1235, %v1234
      %v1248 = vpack.c.b16 %v1237, %v1236
      %v1249 = vpack.c.b16 %v1239, %v1238
      %v1250 = vpack.c.b16 %v1241, %v1240
      %v1251 = vpack.c.b16 %v1243, %v1242
      %1260 = vmatprep.subr.bf16.mxu0 0
      %1261 = vmatpush1.bf16.msra.mxu0 %v1244
      %1262 = vmatprep.subr.bf16.mxu0 0
      %1263 = vmatpush1.bf16.msra.mxu0 %v1245
      %1264 = vmatprep.subr.bf16.mxu0 0
      %1265 = vmatpush1.bf16.msra.mxu0 %v1246
      %1266 = vmatprep.subr.bf16.mxu0 0
      %1267 = vmatpush1.bf16.msra.mxu0 %v1247
      %1268 = vmatprep.subr.bf16.mxu0 0
      %1269 = vmatpush1.bf16.msra.mxu0 %v1248
      %1270 = vmatprep.subr.bf16.mxu0 0
      %1271 = vmatpush1.bf16.msra.mxu0 %v1249
      %1272 = vmatprep.subr.bf16.mxu0 0
      %1273 = vmatpush1.bf16.msra.mxu0 %v1250
      %1274 = vmatprep.subr.bf16.mxu0 0
      %1275 = vmatpush1.bf16.msra.mxu0 %v1251
      %1276 = vmatprep.subr.bf16.mxu0 0
      %1277 = vmatpush1.bf16.msra.mxu0 0
      %1278 = vmatprep.subr.bf16.mxu0 0
      %1279 = vmatpush1.bf16.msra.mxu0 0
      %1280 = vmatprep.subr.bf16.mxu0 0
      %1281 = vmatpush1.bf16.msra.mxu0 0
      %1282 = vmatprep.subr.bf16.mxu0 0
      %1283 = vmatpush1.bf16.msra.mxu0 0
      %1284 = vmatprep.subr.bf16.mxu0 0
      %1285 = vmatpush1.bf16.msra.mxu0 0
      %1286 = vmatprep.subr.bf16.mxu0 0
      %1287 = vmatpush1.bf16.msra.mxu0 0
      %1288 = vmatprep.subr.bf16.mxu0 0
      %1289 = vmatpush1.bf16.msra.mxu0 0
      %1290 = vmatprep.subr.bf16.mxu0 0
      %1291 = vmatpush1.bf16.msra.mxu0 0
      %1292 = vmatprep.mubr.bf16.mxu0 0
      %1293 = vmatmul.mubr.bf16.gmra.mrb[0].mxu0 %v1173
      %v1294 = vpop.f32.mrb[0].mxu0
      %v1295 = vadd.f32 %v1210, %v1294
      %v1296 = vpop.f32.mrb[0].mxu0
      %v1297 = vpop.f32.mrb[0].mxu0
      %v1298 = vadd.f32 %v1210, %v1297
      %v1299 = vpop.f32.mrb[0].mxu0
      %1300 = vmatprep.mubr.bf16.mxu0 0
      %1301 = vmatmul.mubr.bf16.gmra.mrb[0].mxu0 %v1174
      %v1302 = vpop.f32.mrb[0].mxu0
      %v1303 = vadd.f32 %v1210, %v1302
      %v1304 = vpop.f32.mrb[0].mxu0
      %v1305 = vpop.f32.mrb[0].mxu0
      %v1306 = vadd.f32 %v1210, %v1305
      %v1307 = vpop.f32.mrb[0].mxu0
      %1308 = vmatprep.mubr.bf16.mxu0 0
      %1309 = vmatmul.mubr.bf16.gmra.mrb[0].mxu0 %v1175
      %v1310 = vpop.f32.mrb[0].mxu0
      %v1311 = vadd.f32 %v1210, %v1310
      %v1312 = vpop.f32.mrb[0].mxu0
      %v1313 = vpop.f32.mrb[0].mxu0
      %v1314 = vadd.f32 %v1210, %v1313
      %v1315 = vpop.f32.mrb[0].mxu0
      %1316 = vmatprep.mubr.bf16.mxu0 0
      %1317 = vmatmul.mubr.bf16.gmra.mrb[0].mxu0 %v1176
      %v1318 = vpop.f32.mrb[0].mxu0
      %v1319 = vadd.f32 %v1210, %v1318
      %v1320 = vpop.f32.mrb[0].mxu0
      %v1321 = vpop.f32.mrb[0].mxu0
      %v1322 = vadd.f32 %v1210, %v1321
      %v1323 = vpop.f32.mrb[0].mxu0
      %1324 = vmatprep.mubr.bf16.mxu0 0
      %1325 = vmatmul.mubr.bf16.gmra.mrb[0].mxu0 %v1177
      %v1326 = vpop.f32.mrb[0].mxu0
      %v1327 = vadd.f32 %v1210, %v1326
      %v1328 = vpop.f32.mrb[0].mxu0
      %v1329 = vpop.f32.mrb[0].mxu0
      %v1330 = vadd.f32 %v1210, %v1329
      %v1331 = vpop.f32.mrb[0].mxu0
      %1332 = vmatprep.mubr.bf16.mxu0 0
      %1333 = vmatmul.mubr.bf16.gmra.mrb[0].mxu0 %v1178
      %v1334 = vpop.f32.mrb[0].mxu0
      %v1335 = vadd.f32 %v1210, %v1334
      %v1336 = vpop.f32.mrb[0].mxu0
      %v1337 = vpop.f32.mrb[0].mxu0
      %v1338 = vadd.f32 %v1210, %v1337
      %v1339 = vpop.f32.mrb[0].mxu0
      %1340 = vmatprep.mubr.bf16.mxu0 0
      %1341 = vmatmul.mubr.bf16.gmra.mrb[0].mxu0 %v1179
      %v1342 = vpop.f32.mrb[0].mxu0
      %v1343 = vadd.f32 %v1210, %v1342
      %v1344 = vpop.f32.mrb[0].mxu0
      %v1345 = vpop.f32.mrb[0].mxu0
      %v1346 = vadd.f32 %v1210, %v1345
      %v1347 = vpop.f32.mrb[0].mxu0
      %1348 = vmatprep.mubr.bf16.mxu0 0
      %1349 = vmatmul.mubr.bf16.gmra.mrb[0].mxu0 %v1180
      %v1350 = vpop.f32.mrb[0].mxu0
      %v1351 = vadd.f32 %v1210, %v1350
      %v1352 = vpop.f32.mrb[0].mxu0
      %v1353 = vpop.f32.mrb[0].mxu0
      %v1354 = vadd.f32 %v1210, %v1353
      %v1355 = vpop.f32.mrb[0].mxu0
      %1356 = vmatprep.mubr.bf16.mxu0 0
      %1357 = vmatmul.mubr.bf16.gmra.mrb[0].mxu0 %v1181
      %v1358 = vpop.f32.mrb[0].mxu0
      %v1359 = vadd.f32 %v1210, %v1358
      %v1360 = vpop.f32.mrb[0].mxu0
      %v1361 = vpop.f32.mrb[0].mxu0
      %v1362 = vadd.f32 %v1210, %v1361
      %v1363 = vpop.f32.mrb[0].mxu0
      %1364 = vmatprep.mubr.bf16.mxu0 0
      %1365 = vmatmul.mubr.bf16.gmra.mrb[0].mxu0 %v1182
      %v1366 = vpop.f32.mrb[0].mxu0
      %v1367 = vadd.f32 %v1210, %v1366
      %v1368 = vpop.f32.mrb[0].mxu0
      %v1369 = vpop.f32.mrb[0].mxu0
      %v1370 = vadd.f32 %v1210, %v1369
      %v1371 = vpop.f32.mrb[0].mxu0
      %1372 = vmatprep.mubr.bf16.mxu0 0
      %1373 = vmatmul.mubr.bf16.gmra.mrb[0].mxu0 %v1183
      %v1374 = vpop.f32.mrb[0].mxu0
      %v1375 = vadd.f32 %v1210, %v1374
      %v1376 = vpop.f32.mrb[0].mxu0
      %v1377 = vpop.f32.mrb[0].mxu0
      %v1378 = vadd.f32 %v1210, %v1377
      %v1379 = vpop.f32.mrb[0].mxu0
      %1380 = vmatprep.mubr.bf16.mxu0 0
      %1381 = vmatmul.mubr.bf16.gmra.mrb[0].mxu0 %v1184
      %v1382 = vpop.f32.mrb[0].mxu0
      %v1383 = vadd.f32 %v1210, %v1382
      %v1384 = vpop.f32.mrb[0].mxu0
      %v1385 = vpop.f32.mrb[0].mxu0
      %v1386 = vadd.f32 %v1210, %v1385
      %v1387 = vpop.f32.mrb[0].mxu0
      %1388 = vmatprep.mubr.bf16.mxu0 0
      %1389 = vmatmul.mubr.bf16.gmra.mrb[0].mxu0 %v1185
      %v1390 = vpop.f32.mrb[0].mxu0
      %v1391 = vadd.f32 %v1210, %v1390
      %v1392 = vpop.f32.mrb[0].mxu0
      %v1393 = vpop.f32.mrb[0].mxu0
      %v1394 = vadd.f32 %v1210, %v1393
      %v1395 = vpop.f32.mrb[0].mxu0
      %1396 = vmatprep.mubr.bf16.mxu0 0
      %1397 = vmatmul.mubr.bf16.gmra.mrb[0].mxu0 %v1186
      %v1398 = vpop.f32.mrb[0].mxu0
      %v1399 = vadd.f32 %v1210, %v1398
      %v1400 = vpop.f32.mrb[0].mxu0
      %v1401 = vpop.f32.mrb[0].mxu0
      %v1402 = vadd.f32 %v1210, %v1401
      %v1403 = vpop.f32.mrb[0].mxu0
      %1404 = vmatprep.mubr.bf16.mxu0 0
      %1405 = vmatmul.mubr.bf16.gmra.mrb[0].mxu0 %v1187
      %v1406 = vpop.f32.mrb[0].mxu0
      %v1407 = vadd.f32 %v1210, %v1406
      %v1408 = vpop.f32.mrb[0].mxu0
      %v1409 = vpop.f32.mrb[0].mxu0
      %v1410 = vadd.f32 %v1210, %v1409
      %v1411 = vpop.f32.mrb[0].mxu0
      %1412 = vmatprep.mubr.bf16.mxu0 0
      %1413 = vmatmul.mubr.bf16.gmra.mrb[0].mxu0 %v1188
      %v1414 = vpop.f32.mrb[0].mxu0
      %v1415 = vadd.f32 %v1210, %v1414
      %v1416 = vpop.f32.mrb[0].mxu0
      %v1417 = vpop.f32.mrb[0].mxu0
      %v1418 = vadd.f32 %v1210, %v1417
      %v1419 = vpop.f32.mrb[0].mxu0
      %1420 = vdwg.mxu0
      %v1421 = vld [vmem:[%s384] sm:$0x1]
      %v1423 = vlaneseq
      %v1424 = vshrl.u32 %v1423, 7
      %v1425 = vsub.s32 0, %v1424
      %v1426 = vrot.slane %v1421, %v1425
      %v1428 = vadd.f32 %v1295, %v1426
      %v1429 = vadd.f32 %v1298, %v1426
      %v1430 = vadd.f32 %v1303, %v1426
      %v1431 = vadd.f32 %v1306, %v1426
      %v1432 = vadd.f32 %v1311, %v1426
      %v1433 = vadd.f32 %v1314, %v1426
      %v1434 = vadd.f32 %v1319, %v1426
      %v1435 = vadd.f32 %v1322, %v1426
      %v1436 = vadd.f32 %v1327, %v1426
      %v1437 = vadd.f32 %v1330, %v1426
      %v1438 = vadd.f32 %v1335, %v1426
      %v1439 = vadd.f32 %v1338, %v1426
      %v1440 = vadd.f32 %v1343, %v1426
      %v1441 = vadd.f32 %v1346, %v1426
      %v1442 = vadd.f32 %v1351, %v1426
      %v1443 = vadd.f32 %v1354, %v1426
      %v1444 = vadd.f32 %v1359, %v1426
      %v1445 = vadd.f32 %v1362, %v1426
      %v1446 = vadd.f32 %v1367, %v1426
      %v1447 = vadd.f32 %v1370, %v1426
      %v1448 = vadd.f32 %v1375, %v1426
      %v1449 = vadd.f32 %v1378, %v1426
      %v1450 = vadd.f32 %v1383, %v1426
      %v1451 = vadd.f32 %v1386, %v1426
      %v1452 = vadd.f32 %v1391, %v1426
      %v1453 = vadd.f32 %v1394, %v1426
      %v1454 = vadd.f32 %v1399, %v1426
      %v1455 = vadd.f32 %v1402, %v1426
      %v1456 = vadd.f32 %v1407, %v1426
      %v1457 = vadd.f32 %v1410, %v1426
      %v1458 = vadd.f32 %v1415, %v1426
      %v1459 = vadd.f32 %v1418, %v1426
      %v1460 = vxor.u32 %v1428, 2147483648
      %v1461 = vxor.u32 %v1429, 2147483648
      %v1462 = vxor.u32 %v1430, 2147483648
      %v1463 = vxor.u32 %v1431, 2147483648
      %v1464 = vxor.u32 %v1432, 2147483648
      %v1465 = vxor.u32 %v1433, 2147483648
      %v1466 = vxor.u32 %v1434, 2147483648
      %v1467 = vxor.u32 %v1435, 2147483648
      %v1468 = vxor.u32 %v1436, 2147483648
      %v1469 = vxor.u32 %v1437, 2147483648
      %v1470 = vxor.u32 %v1438, 2147483648
      %v1471 = vxor.u32 %v1439, 2147483648
      %v1472 = vxor.u32 %v1440, 2147483648
      %v1473 = vxor.u32 %v1441, 2147483648
      %v1474 = vxor.u32 %v1442, 2147483648
      %v1475 = vxor.u32 %v1443, 2147483648
      %v1476 = vxor.u32 %v1444, 2147483648
      %v1477 = vxor.u32 %v1445, 2147483648
      %v1478 = vxor.u32 %v1446, 2147483648
      %v1479 = vxor.u32 %v1447, 2147483648
      %v1480 = vxor.u32 %v1448, 2147483648
      %v1481 = vxor.u32 %v1449, 2147483648
      %v1482 = vxor.u32 %v1450, 2147483648
      %v1483 = vxor.u32 %v1451, 2147483648
      %v1484 = vxor.u32 %v1452, 2147483648
      %v1485 = vxor.u32 %v1453, 2147483648
      %v1486 = vxor.u32 %v1454, 2147483648
      %v1487 = vxor.u32 %v1455, 2147483648
      %v1488 = vxor.u32 %v1456, 2147483648
      %v1489 = vxor.u32 %v1457, 2147483648
      %v1490 = vxor.u32 %v1458, 2147483648
      %v1491 = vxor.u32 %v1459, 2147483648
      %v1492 = vmul.f32 %v1460, 1.442695
      %v1493 = vpow.pop %v1492
      %v1494 = vmul.f32 %v1461, 1.442695
      %v1495 = vpow.pop %v1494
      %v1496 = vmul.f32 %v1462, 1.442695
      %v1497 = vpow.pop %v1496
      %v1498 = vmul.f32 %v1463, 1.442695
      %v1499 = vpow.pop %v1498
      %v1500 = vmul.f32 %v1464, 1.442695
      %v1501 = vpow.pop %v1500
      %v1502 = vmul.f32 %v1465, 1.442695
      %v1503 = vpow.pop %v1502
      %v1504 = vmul.f32 %v1466, 1.442695
      %v1505 = vpow.pop %v1504
      %v1506 = vmul.f32 %v1467, 1.442695
      %v1507 = vpow.pop %v1506
      %v1508 = vmul.f32 %v1468, 1.442695
      %v1509 = vpow.pop %v1508
      %v1510 = vmul.f32 %v1469, 1.442695
      %v1511 = vpow.pop %v1510
      %v1512 = vmul.f32 %v1470, 1.442695
      %v1513 = vpow.pop %v1512
      %v1514 = vmul.f32 %v1471, 1.442695
      %v1515 = vpow.pop %v1514
      %v1516 = vmul.f32 %v1472, 1.442695
      %v1517 = vpow.pop %v1516
      %v1518 = vmul.f32 %v1473, 1.442695
      %v1519 = vpow.pop %v1518
      %v1520 = vmul.f32 %v1474, 1.442695
      %v1521 = vpow.pop %v1520
      %v1522 = vmul.f32 %v1475, 1.442695
      %v1523 = vpow.pop %v1522
      %v1524 = vmul.f32 %v1476, 1.442695
      %v1525 = vpow.pop %v1524
      %v1526 = vmul.f32 %v1477, 1.442695
      %v1527 = vpow.pop %v1526
      %v1528 = vmul.f32 %v1478, 1.442695
      %v1529 = vpow.pop %v1528
      %v1530 = vmul.f32 %v1479, 1.442695
      %v1531 = vpow.pop %v1530
      %v1532 = vmul.f32 %v1480, 1.442695
      %v1533 = vpow.pop %v1532
      %v1534 = vmul.f32 %v1481, 1.442695
      %v1535 = vpow.pop %v1534
      %v1536 = vmul.f32 %v1482, 1.442695
      %v1537 = vpow.pop %v1536
      %v1538 = vmul.f32 %v1483, 1.442695
      %v1539 = vpow.pop %v1538
      %v1540 = vmul.f32 %v1484, 1.442695
      %v1541 = vpow.pop %v1540
      %v1542 = vmul.f32 %v1485, 1.442695
      %v1543 = vpow.pop %v1542
      %v1544 = vmul.f32 %v1486, 1.442695
      %v1545 = vpow.pop %v1544
      %v1546 = vmul.f32 %v1487, 1.442695
      %v1547 = vpow.pop %v1546
      %v1548 = vmul.f32 %v1488, 1.442695
      %v1549 = vpow.pop %v1548
      %v1550 = vmul.f32 %v1489, 1.442695
      %v1551 = vpow.pop %v1550
      %v1552 = vmul.f32 %v1490, 1.442695
      %v1553 = vpow.pop %v1552
      %v1554 = vmul.f32 %v1491, 1.442695
      %v1555 = vpow.pop %v1554
      %v1556 = vadd.f32 %v1493, 1.0
      %v1557 = vadd.f32 %v1495, 1.0
      %v1558 = vadd.f32 %v1497, 1.0
      %v1559 = vadd.f32 %v1499, 1.0
      %v1560 = vadd.f32 %v1501, 1.0
      %v1561 = vadd.f32 %v1503, 1.0
      %v1562 = vadd.f32 %v1505, 1.0
      %v1563 = vadd.f32 %v1507, 1.0
      %v1564 = vadd.f32 %v1509, 1.0
      %v1565 = vadd.f32 %v1511, 1.0
      %v1566 = vadd.f32 %v1513, 1.0
      %v1567 = vadd.f32 %v1515, 1.0
      %v1568 = vadd.f32 %v1517, 1.0
      %v1569 = vadd.f32 %v1519, 1.0
      %v1570 = vadd.f32 %v1521, 1.0
      %v1571 = vadd.f32 %v1523, 1.0
      %v1572 = vadd.f32 %v1525, 1.0
      %v1573 = vadd.f32 %v1527, 1.0
      %v1574 = vadd.f32 %v1529, 1.0
      %v1575 = vadd.f32 %v1531, 1.0
      %v1576 = vadd.f32 %v1533, 1.0
      %v1577 = vadd.f32 %v1535, 1.0
      %v1578 = vadd.f32 %v1537, 1.0
      %v1579 = vadd.f32 %v1539, 1.0
      %v1580 = vadd.f32 %v1541, 1.0
      %v1581 = vadd.f32 %v1543, 1.0
      %v1582 = vadd.f32 %v1545, 1.0
      %v1583 = vadd.f32 %v1547, 1.0
      %v1584 = vadd.f32 %v1549, 1.0
      %v1585 = vadd.f32 %v1551, 1.0
      %v1586 = vadd.f32 %v1553, 1.0
      %v1587 = vadd.f32 %v1555, 1.0
      %v1588 = vrcp.pop %v1556
      %v1589 = vmul.f32 1.0, %v1588
      %v1590 = vrcp.pop %v1557
      %v1591 = vmul.f32 1.0, %v1590
      %v1592 = vrcp.pop %v1558
      %v1593 = vmul.f32 1.0, %v1592
      %v1594 = vrcp.pop %v1559
      %v1595 = vmul.f32 1.0, %v1594
      %v1596 = vrcp.pop %v1560
      %v1597 = vmul.f32 1.0, %v1596
      %v1598 = vrcp.pop %v1561
      %v1599 = vmul.f32 1.0, %v1598
      %v1600 = vrcp.pop %v1562
      %v1601 = vmul.f32 1.0, %v1600
      %v1602 = vrcp.pop %v1563
      %v1603 = vmul.f32 1.0, %v1602
      %v1604 = vrcp.pop %v1564
      %v1605 = vmul.f32 1.0, %v1604
      %v1606 = vrcp.pop %v1565
      %v1607 = vmul.f32 1.0, %v1606
      %v1608 = vrcp.pop %v1566
      %v1609 = vmul.f32 1.0, %v1608
      %v1610 = vrcp.pop %v1567
      %v1611 = vmul.f32 1.0, %v1610
      %v1612 = vrcp.pop %v1568
      %v1613 = vmul.f32 1.0, %v1612
      %v1614 = vrcp.pop %v1569
      %v1615 = vmul.f32 1.0, %v1614
      %v1616 = vrcp.pop %v1570
      %v1617 = vmul.f32 1.0, %v1616
      %v1618 = vrcp.pop %v1571
      %v1619 = vmul.f32 1.0, %v1618
      %v1620 = vrcp.pop %v1572
      %v1621 = vmul.f32 1.0, %v1620
      %v1622 = vrcp.pop %v1573
      %v1623 = vmul.f32 1.0, %v1622
      %v1624 = vrcp.pop %v1574
      %v1625 = vmul.f32 1.0, %v1624
      %v1626 = vrcp.pop %v1575
      %v1627 = vmul.f32 1.0, %v1626
      %v1628 = vrcp.pop %v1576
      %v1629 = vmul.f32 1.0, %v1628
      %v1630 = vrcp.pop %v1577
      %v1631 = vmul.f32 1.0, %v1630
      %v1632 = vrcp.pop %v1578
      %v1633 = vmul.f32 1.0, %v1632
      %v1634 = vrcp.pop %v1579
      %v1635 = vmul.f32 1.0, %v1634
      %v1636 = vrcp.pop %v1580
      %v1637 = vmul.f32 1.0, %v1636
      %v1638 = vrcp.pop %v1581
      %v1639 = vmul.f32 1.0, %v1638
      %v1640 = vrcp.pop %v1582
      %v1641 = vmul.f32 1.0, %v1640
      %v1642 = vrcp.pop %v1583
      %v1643 = vmul.f32 1.0, %v1642
      %v1644 = vrcp.pop %v1584
      %v1645 = vmul.f32 1.0, %v1644
      %v1646 = vrcp.pop %v1585
      %v1647 = vmul.f32 1.0, %v1646
      %v1648 = vrcp.pop %v1586
      %v1649 = vmul.f32 1.0, %v1648
      %v1650 = vrcp.pop %v1587
      %v1651 = vmul.f32 1.0, %v1650
      %v1652 = vunpack.c.l.bf16 %v396
      %v1653 = vunpack.c.l.bf16 %v397
      %v1654 = vunpack.c.l.bf16 %v398
      %v1655 = vunpack.c.l.bf16 %v399
      %v1656 = vunpack.c.l.bf16 %v400
      %v1657 = vunpack.c.l.bf16 %v401
      %v1658 = vunpack.c.l.bf16 %v402
      %v1659 = vunpack.c.l.bf16 %v403
      %v1660 = vunpack.c.l.bf16 %v404
      %v1661 = vunpack.c.l.bf16 %v405
      %v1662 = vunpack.c.l.bf16 %v406
      %v1663 = vunpack.c.l.bf16 %v407
      %v1664 = vunpack.c.l.bf16 %v408
      %v1665 = vunpack.c.l.bf16 %v409
      %v1666 = vunpack.c.l.bf16 %v410
      %v1667 = vunpack.c.l.bf16 %v411
      %v1668 = vunpack.c.l.bf16 %v412
      %v1669 = vunpack.c.l.bf16 %v413
      %v1670 = vunpack.c.l.bf16 %v414
      %v1671 = vunpack.c.l.bf16 %v415
      %v1672 = vunpack.c.l.bf16 %v416
      %v1673 = vunpack.c.l.bf16 %v417
      %v1674 = vunpack.c.l.bf16 %v418
      %v1675 = vunpack.c.l.bf16 %v419
      %v1676 = vunpack.c.l.bf16 %v420
      %v1677 = vunpack.c.l.bf16 %v421
      %v1678 = vunpack.c.l.bf16 %v422
      %v1679 = vunpack.c.l.bf16 %v423
      %v1680 = vunpack.c.l.bf16 %v424
      %v1681 = vunpack.c.l.bf16 %v425
      %v1682 = vunpack.c.l.bf16 %v426
      %v1683 = vunpack.c.l.bf16 %v427
      %v1684 = vunpack.c.l.bf16 %v428
      %v1685 = vunpack.c.l.bf16 %v429
      %v1686 = vunpack.c.l.bf16 %v430
      %v1687 = vunpack.c.l.bf16 %v431
      %v1688 = vunpack.c.l.bf16 %v432
      %v1689 = vunpack.c.l.bf16 %v433
      %v1690 = vunpack.c.l.bf16 %v434
      %v1691 = vunpack.c.l.bf16 %v435
      %v1692 = vunpack.c.l.bf16 %v436
      %v1693 = vunpack.c.l.bf16 %v437
      %v1694 = vunpack.c.l.bf16 %v438
      %v1695 = vunpack.c.l.bf16 %v439
      %v1696 = vunpack.c.l.bf16 %v440
      %v1697 = vunpack.c.l.bf16 %v441
      %v1698 = vunpack.c.l.bf16 %v442
      %v1699 = vunpack.c.l.bf16 %v443
      %v1700 = vunpack.c.l.bf16 %v444
      %v1701 = vunpack.c.l.bf16 %v445
      %v1702 = vunpack.c.l.bf16 %v446
      %v1703 = vunpack.c.l.bf16 %v447
      %v1704 = vunpack.c.l.bf16 %v448
      %v1705 = vunpack.c.l.bf16 %v449
      %v1706 = vunpack.c.l.bf16 %v450
      %v1707 = vunpack.c.l.bf16 %v451
      %v1708 = vunpack.c.l.bf16 %v452
      %v1709 = vunpack.c.l.bf16 %v453
      %v1710 = vunpack.c.l.bf16 %v454
      %v1711 = vunpack.c.l.bf16 %v455
      %v1712 = vunpack.c.l.bf16 %v456
      %v1713 = vunpack.c.l.bf16 %v457
      %v1714 = vunpack.c.l.bf16 %v458
      %v1715 = vunpack.c.l.bf16 %v459
      %v1716 = vmul.f32 %v1652, %v1589
      %v1717 = vmul.f32 %v1653, %v1591
      %v1718 = vmul.f32 %v1654, %v1593
      %v1719 = vmul.f32 %v1655, %v1595
      %v1720 = vmul.f32 %v1656, %v1597
      %v1721 = vmul.f32 %v1657, %v1599
      %v1722 = vmul.f32 %v1658, %v1601
      %v1723 = vmul.f32 %v1659, %v1603
      %v1724 = vmul.f32 %v1660, %v1605
      %v1725 = vmul.f32 %v1661, %v1607
      %v1726 = vmul.f32 %v1662, %v1609
      %v1727 = vmul.f32 %v1663, %v1611
      %v1728 = vmul.f32 %v1664, %v1613
      %v1729 = vmul.f32 %v1665, %v1615
      %v1730 = vmul.f32 %v1666, %v1617
      %v1731 = vmul.f32 %v1667, %v1619
      %v1732 = vmul.f32 %v1668, %v1621
      %v1733 = vmul.f32 %v1669, %v1623
      %v1734 = vmul.f32 %v1670, %v1625
      %v1735 = vmul.f32 %v1671, %v1627
      %v1736 = vmul.f32 %v1672, %v1629
      %v1737 = vmul.f32 %v1673, %v1631
      %v1738 = vmul.f32 %v1674, %v1633
      %v1739 = vmul.f32 %v1675, %v1635
      %v1740 = vmul.f32 %v1676, %v1637
      %v1741 = vmul.f32 %v1677, %v1639
      %v1742 = vmul.f32 %v1678, %v1641
      %v1743 = vmul.f32 %v1679, %v1643
      %v1744 = vmul.f32 %v1680, %v1645
      %v1745 = vmul.f32 %v1681, %v1647
      %v1746 = vmul.f32 %v1682, %v1649
      %v1747 = vmul.f32 %v1683, %v1651
      %v1748 = vsub.f32 1.0, %v1589
      %v1749 = vsub.f32 1.0, %v1591
      %v1750 = vsub.f32 1.0, %v1593
      %v1751 = vsub.f32 1.0, %v1595
      %v1752 = vsub.f32 1.0, %v1597
      %v1753 = vsub.f32 1.0, %v1599
      %v1754 = vsub.f32 1.0, %v1601
      %v1755 = vsub.f32 1.0, %v1603
      %v1756 = vsub.f32 1.0, %v1605
      %v1757 = vsub.f32 1.0, %v1607
      %v1758 = vsub.f32 1.0, %v1609
      %v1759 = vsub.f32 1.0, %v1611
      %v1760 = vsub.f32 1.0, %v1613
      %v1761 = vsub.f32 1.0, %v1615
      %v1762 = vsub.f32 1.0, %v1617
      %v1763 = vsub.f32 1.0, %v1619
      %v1764 = vsub.f32 1.0, %v1621
      %v1765 = vsub.f32 1.0, %v1623
      %v1766 = vsub.f32 1.0, %v1625
      %v1767 = vsub.f32 1.0, %v1627
      %v1768 = vsub.f32 1.0, %v1629
      %v1769 = vsub.f32 1.0, %v1631
      %v1770 = vsub.f32 1.0, %v1633
      %v1771 = vsub.f32 1.0, %v1635
      %v1772 = vsub.f32 1.0, %v1637
      %v1773 = vsub.f32 1.0, %v1639
      %v1774 = vsub.f32 1.0, %v1641
      %v1775 = vsub.f32 1.0, %v1643
      %v1776 = vsub.f32 1.0, %v1645
      %v1777 = vsub.f32 1.0, %v1647
      %v1778 = vsub.f32 1.0, %v1649
      %v1779 = vsub.f32 1.0, %v1651
      %v1780 = vmul.f32 %v1684, %v1748
      %v1781 = vmul.f32 %v1685, %v1749
      %v1782 = vmul.f32 %v1686, %v1750
      %v1783 = vmul.f32 %v1687, %v1751
      %v1784 = vmul.f32 %v1688, %v1752
      %v1785 = vmul.f32 %v1689, %v1753
      %v1786 = vmul.f32 %v1690, %v1754
      %v1787 = vmul.f32 %v1691, %v1755
      %v1788 = vmul.f32 %v1692, %v1756
      %v1789 = vmul.f32 %v1693, %v1757
      %v1790 = vmul.f32 %v1694, %v1758
      %v1791 = vmul.f32 %v1695, %v1759
      %v1792 = vmul.f32 %v1696, %v1760
      %v1793 = vmul.f32 %v1697, %v1761
      %v1794 = vmul.f32 %v1698, %v1762
      %v1795 = vmul.f32 %v1699, %v1763
      %v1796 = vmul.f32 %v1700, %v1764
      %v1797 = vmul.f32 %v1701, %v1765
      %v1798 = vmul.f32 %v1702, %v1766
      %v1799 = vmul.f32 %v1703, %v1767
      %v1800 = vmul.f32 %v1704, %v1768
      %v1801 = vmul.f32 %v1705, %v1769
      %v1802 = vmul.f32 %v1706, %v1770
      %v1803 = vmul.f32 %v1707, %v1771
      %v1804 = vmul.f32 %v1708, %v1772
      %v1805 = vmul.f32 %v1709, %v1773
      %v1806 = vmul.f32 %v1710, %v1774
      %v1807 = vmul.f32 %v1711, %v1775
      %v1808 = vmul.f32 %v1712, %v1776
      %v1809 = vmul.f32 %v1713, %v1777
      %v1810 = vmul.f32 %v1714, %v1778
      %v1811 = vmul.f32 %v1715, %v1779
      %v1812 = vadd.f32 %v1716, %v1780
      %v1813 = vadd.f32 %v1717, %v1781
      %v1814 = vadd.f32 %v1718, %v1782
      %v1815 = vadd.f32 %v1719, %v1783
      %v1816 = vadd.f32 %v1720, %v1784
      %v1817 = vadd.f32 %v1721, %v1785
      %v1818 = vadd.f32 %v1722, %v1786
      %v1819 = vadd.f32 %v1723, %v1787
      %v1820 = vadd.f32 %v1724, %v1788
      %v1821 = vadd.f32 %v1725, %v1789
      %v1822 = vadd.f32 %v1726, %v1790
      %v1823 = vadd.f32 %v1727, %v1791
      %v1824 = vadd.f32 %v1728, %v1792
      %v1825 = vadd.f32 %v1729, %v1793
      %v1826 = vadd.f32 %v1730, %v1794
      %v1827 = vadd.f32 %v1731, %v1795
      %v1828 = vadd.f32 %v1732, %v1796
      %v1829 = vadd.f32 %v1733, %v1797
      %v1830 = vadd.f32 %v1734, %v1798
      %v1831 = vadd.f32 %v1735, %v1799
      %v1832 = vadd.f32 %v1736, %v1800
      %v1833 = vadd.f32 %v1737, %v1801
      %v1834 = vadd.f32 %v1738, %v1802
      %v1835 = vadd.f32 %v1739, %v1803
      %v1836 = vadd.f32 %v1740, %v1804
      %v1837 = vadd.f32 %v1741, %v1805
      %v1838 = vadd.f32 %v1742, %v1806
      %v1839 = vadd.f32 %v1743, %v1807
      %v1840 = vadd.f32 %v1744, %v1808
      %v1841 = vadd.f32 %v1745, %v1809
      %v1842 = vadd.f32 %v1746, %v1810
      %v1843 = vadd.f32 %v1747, %v1811
      %1844 = vst [vmem:[%s393] sm:$0xff] %v1812
      %1845 = vst [vmem:[%s393 + $0x8] sm:$0xff] %v1813
      %1846 = vst [vmem:[%s393 + $0x10] sm:$0xff] %v1814
      %1847 = vst [vmem:[%s393 + $0x18] sm:$0xff] %v1815
      %1848 = vst [vmem:[%s393 + $0x20] sm:$0xff] %v1816
      %1849 = vst [vmem:[%s393 + $0x28] sm:$0xff] %v1817
      %1850 = vst [vmem:[%s393 + $0x30] sm:$0xff] %v1818
      %1851 = vst [vmem:[%s393 + $0x38] sm:$0xff] %v1819
      %1852 = vst [vmem:[%s393 + $0x40] sm:$0xff] %v1820
      %1853 = vst [vmem:[%s393 + $0x48] sm:$0xff] %v1821
      %1854 = vst [vmem:[%s393 + $0x50] sm:$0xff] %v1822
      %1855 = vst [vmem:[%s393 + $0x58] sm:$0xff] %v1823
      %1856 = vst [vmem:[%s393 + $0x60] sm:$0xff] %v1824
      %1857 = vst [vmem:[%s393 + $0x68] sm:$0xff] %v1825
      %1858 = vst [vmem:[%s393 + $0x70] sm:$0xff] %v1826
      %1859 = vst [vmem:[%s393 + $0x78] sm:$0xff] %v1827
      %1860 = vst [vmem:[%s393 + $0x80] sm:$0xff] %v1828
      %1861 = vst [vmem:[%s393 + $0x88] sm:$0xff] %v1829
      %1862 = vst [vmem:[%s393 + $0x90] sm:$0xff] %v1830
      %1863 = vst [vmem:[%s393 + $0x98] sm:$0xff] %v1831
      %1864 = vst [vmem:[%s393 + $0xa0] sm:$0xff] %v1832
      %1865 = vst [vmem:[%s393 + $0xa8] sm:$0xff] %v1833
      %1866 = vst [vmem:[%s393 + $0xb0] sm:$0xff] %v1834
      %1867 = vst [vmem:[%s393 + $0xb8] sm:$0xff] %v1835
      %1868 = vst [vmem:[%s393 + $0xc0] sm:$0xff] %v1836
      %1869 = vst [vmem:[%s393 + $0xc8] sm:$0xff] %v1837
      %1870 = vst [vmem:[%s393 + $0xd0] sm:$0xff] %v1838
      %1871 = vst [vmem:[%s393 + $0xd8] sm:$0xff] %v1839
      %1872 = vst [vmem:[%s393 + $0xe0] sm:$0xff] %v1840
      %1873 = vst [vmem:[%s393 + $0xe8] sm:$0xff] %v1841
      %1874 = vst [vmem:[%s393 + $0xf0] sm:$0xff] %v1842
      %1875 = vst [vmem:[%s393 + $0xf8] sm:$0xff] %v1843
      %s1876 = smul.u32 32, %s24
      %p1877 = scmp.lt.s32.totalorder %s23, 1
      %s1878 = scalar_select %p1877, %s23, 1
      %p1879 = scmp.lt.s32.totalorder %s1876, 31
      %s1880 = scalar_select %p1879, %s1876, 31
      %s1881 = smul.addr %s1878, 32
      %s1882 = sadd.s32 %s1880, %s1881
      %s1883 = smul.addr %s1882, 8
      %s1884 = scalar_lea.vmem %s8, %s1883
      // Predicated region
      $region53: #{decoder2_forward.3} parent=51 // pred_check
        %p1885 = pneg %p238
      $region54: #{decoder2_forward.3} parent=51 // pred_check_branch
        %1887 = sbr.rel (%p1885) target = $region56
      $region55: #{decoder2_forward.3} parent=51 // pred_region
        %s1888 = smul.u32 32, %s24
      $region56: #{decoder2_forward.3} parent=51 // pred_fallthru
        _
    $region52: #{decoder2_forward.3} parent=5 // pred_fallthru
      _
    %p1889 = scmp.le.s32.totalorder 2, %s14
    // Predicated region
    $region57: #{decoder2_forward.3} parent=5 // pred_check
      %p1890 = pneg %p1889
    $region58: #{decoder2_forward.3} parent=5 // pred_check_branch
      %1892 = sbr.rel (%p1890) target = $region60
    $region59: #{decoder2_forward.3} parent=5 // pred_region
      %s1893 = ssub.s32 %s14, 2
      // Predicated region
      $region61: #{decoder2_forward.3} parent=59 // pred_check
        %p1894 = pneg %p244
      $region62: #{decoder2_forward.3} parent=59 // pred_check_branch
        %1896 = sbr.rel (%p1894) target = $region64
      $region63: #{decoder2_forward.3} parent=59 // pred_region
        %s1897 = smul.u32 32, %s26
        %p1898 = scmp.lt.s32.totalorder %s25, 1
        %s1899 = scalar_select %p1898, %s25, 1
        %p1900 = scmp.lt.s32.totalorder %s1897, 31
        %s1901 = scalar_select %p1900, %s1897, 31
        %s1902 = smul.addr %s1899, 32
        %s1903 = sadd.s32 %s1901, %s1902
        %s1904 = smul.addr %s1903, 8
        %s1905 = scalar_lea.vmem %s8, %s1904
      $region64: #{decoder2_forward.3} parent=59 // pred_fallthru
        _
    $region60: #{decoder2_forward.3} parent=5 // pred_fallthru
      _
  $region6: #{decoder2_forward.3} parent=0 // loop_footer
    %s18 = sadd.s32 1, %s14
  $region7: #{decoder2_forward.3} parent=0 // loop_footer_branch
    %13 = sbr.rel target = $region3
  $region8: #{decoder2_forward.3} parent=0 // loop_exit
    _

</llo_original>
